<compile_context>
chip_gen: v7x
topology: tpu7x:2x2x1
jax: 0.10.0
libtpu: 0.0.40
codegen_flags: <defaults>
</compile_context>

<pallas_src>
import jax
import jax.numpy as jnp
from jax.experimental import pallas as pl
from jax.experimental.pallas import tpu as pltpu


# ------------------------------ fused kernel factory ------------------------------ #
def _make_fused_kernel(num_layers, T, Bp, H):
    """Builds the fused LSTM+FC kernel body for a fixed (num_layers, T, Bp, H)."""
    H3 = 3 * H

    def kernel(*refs):
        n_in = 1 + 3 * num_layers + 2
        x_ref = refs[0]                              # (T*Bp, Din0)
        layer_refs = refs[1:1 + 3 * num_layers]      # per layer: wih_t, whh_t, bias
        fcw_ref = refs[1 + 3 * num_layers]           # (H, Op)
        fcb_ref = refs[2 + 3 * num_layers]           # (1, Op)
        out_ref = refs[n_in]                         # (Bp, Op)
        xproj_scr = refs[n_in + 1]                   # (T*Bp, 4H)
        seq_scr = refs[n_in + 2]                     # (T*Bp, H)
        h_scr = refs[n_in + 3]                       # (Bp, H)
        c_scr = refs[n_in + 4]                       # (Bp, H)

        for l in range(num_layers):
            wih_ref = layer_refs[3 * l]
            whh_ref = layer_refs[3 * l + 1]
            b_ref = layer_refs[3 * l + 2]

            # Hoisted input projection (+ bias) for the whole sequence: one MXU matmul
            # with M = T*Bp instead of T tiny matmuls on the recurrent critical path.
            src = x_ref if l == 0 else seq_scr
            xproj_scr[...] = (
                jnp.dot(src[...], wih_ref[...], preferred_element_type=jnp.float32)
                + b_ref[...]
            )

            h_scr[...] = jnp.zeros_like(h_scr)
            c_scr[...] = jnp.zeros_like(c_scr)
            whh = whh_ref[...]                       # loop-invariant (H, 4H)
            write_seq = l < num_layers - 1           # last layer only needs final h

            # T is small & static -> fully unrolled timestep loop (static slices).
            for t in range(T):
                row = t * Bp
                h_prev = h_scr[...]
                c_prev = c_scr[...]
                gates = (
                    jnp.dot(h_prev, whh, preferred_element_type=jnp.float32)
                    + xproj_scr[pl.ds(row, Bp), :]
                )                                    # (Bp, 4H), columns = [i | f | o | g]
                sig = jax.nn.sigmoid(gates[:, :H3])  # one EUP pass for i, f, o
                g_g = jnp.tanh(gates[:, H3:])        # one EUP pass for g
                i_g = sig[:, :H]
                f_g = sig[:, H:2 * H]
                o_g = sig[:, 2 * H:H3]
                c_new = f_g * c_prev + i_g * g_g
                h_new = o_g * jnp.tanh(c_new)
                c_scr[...] = c_new
                h_scr[...] = h_new
                if write_seq:
                    seq_scr[pl.ds(row, Bp), :] = h_new

        # Final Linear on the top layer's last-timestep hidden state.
        out_ref[...] = (
            jnp.dot(h_scr[...], fcw_ref[...], preferred_element_type=jnp.float32)
            + fcb_ref[...]
        ).astype(out_ref.dtype)

    return kernel


# ---------------------------------- forward wrapper -------------------------------- #
@jax.jit
def lstm0_forward(x, kparams):
    """x: (B, T, input_size) batch-first -> (B, output_size)."""
    B, T, Din = x.shape
    layers = kparams["layers"]
    num_layers = len(layers)
    H = layers[0]["w_hh_t"].shape[0]
    O = kparams["fc_w_t"].shape[1]

    Bp = ((B + 7) // 8) * 8          # pad batch to full sublane group
    Op = ((O + 127) // 128) * 128    # pad FC output to lane-dense width

    # One fused XLA copy: time-major, batch-padded, flattened to 2D so the in-kernel
    # hoisted projection is a single (T*Bp, Din) @ (Din, 4H) matmul and timestep t is
    # the contiguous row block [t*Bp : (t+1)*Bp].
    x_tm = jnp.transpose(x.astype(jnp.float32), (1, 0, 2))       # (T, B, Din)
    if Bp != B:
        x_tm = jnp.pad(x_tm, ((0, 0), (0, Bp - B), (0, 0)))
    x_2d = x_tm.reshape(T * Bp, Din)

    fc_w = kparams["fc_w_t"]
    fc_b = kparams["fc_b"]
    if Op != O:
        fc_w = jnp.pad(fc_w, ((0, 0), (0, Op - O)))
        fc_b = jnp.pad(fc_b, ((0, 0), (0, Op - O)))

    inputs = [x_2d]
    for lp in layers:
        inputs += [lp["w_ih_t"], lp["w_hh_t"], lp["bias"]]
    inputs += [fc_w, fc_b]

    idx0 = lambda: (0, 0)            # no grid -> index maps take no args
    in_specs = [pl.BlockSpec(a.shape, idx0) for a in inputs]
    out_spec = pl.BlockSpec((Bp, Op), idx0)

    kernel = _make_fused_kernel(num_layers, T, Bp, H)
    out = pl.pallas_call(
        kernel,
        out_shape=jax.ShapeDtypeStruct((Bp, Op), jnp.float32),
        in_specs=in_specs,
        out_specs=out_spec,
        scratch_shapes=[
            pltpu.VMEM((T * Bp, 4 * H), jnp.float32),   # hoisted input projection
            pltpu.VMEM((T * Bp, H), jnp.float32),       # layer output sequence
            pltpu.VMEM((Bp, H), jnp.float32),           # h state
            pltpu.VMEM((Bp, H), jnp.float32),           # c state
        ],
    )(*inputs)
    return out[:B, :O]


# ------------------------------------ parameters ----------------------------------- #
def init_lstm0_params(key, input_size, hidden_size, num_layers, output_size):
    """Raw params in PyTorch nn.LSTM / nn.Linear layout (gate order [i, f, g, o])."""
    H = hidden_size
    bound = 1.0 / float(H) ** 0.5
    layers = []
    for l in range(num_layers):
        din = input_size if l == 0 else H
        key, k1, k2, k3, k4 = jax.random.split(key, 5)
        layers.append({
            "w_ih": jax.random.uniform(k1, (4 * H, din), jnp.float32, -bound, bound),
            "w_hh": jax.random.uniform(k2, (4 * H, H), jnp.float32, -bound, bound),
            "b_ih": jax.random.uniform(k3, (4 * H,), jnp.float32, -bound, bound),
            "b_hh": jax.random.uniform(k4, (4 * H,), jnp.float32, -bound, bound),
        })
    key, k5, k6 = jax.random.split(key, 3)
    return {
        "layers": layers,
        "fc_w": jax.random.uniform(k5, (output_size, H), jnp.float32, -bound, bound),
        "fc_b": jax.random.uniform(k6, (output_size,), jnp.float32, -bound, bound),
    }


def prepare_kernel_params(raw):
    """PyTorch layout -> kernel layout: transpose weights, pre-sum biases, and permute
    gate columns from [i, f, g, o] to [i, f, o, g] (one sigmoid(3H) + one tanh(H))."""
    H = raw["layers"][0]["w_hh"].shape[1]
    perm = jnp.concatenate([
        jnp.arange(0, 2 * H),        # i, f
        jnp.arange(3 * H, 4 * H),    # o
        jnp.arange(2 * H, 3 * H),    # g
    ])
    layers = []
    for lp in raw["layers"]:
        layers.append({
            "w_ih_t": lp["w_ih"][perm].T,                      # (din, 4H)
            "w_hh_t": lp["w_hh"][perm].T,                      # (H, 4H)
            "bias": (lp["b_ih"] + lp["b_hh"])[perm][None, :],  # (1, 4H)
        })
    return {
        "layers": layers,
        "fc_w_t": raw["fc_w"].T,         # (H, O)
        "fc_b": raw["fc_b"][None, :],    # (1, O)
    }


# --------------------------------- pure-JAX reference ------------------------------- #
def lstm0_reference(x, raw):
    """Reference in PyTorch gate order / layout (validates the kernel's permutation)."""
    h_seq = jnp.transpose(x, (1, 0, 2)).astype(jnp.float32)      # (T, B, Din)
    for lp in raw["layers"]:
        w_ih, w_hh = lp["w_ih"], lp["w_hh"]
        bias = lp["b_ih"] + lp["b_hh"]
        H = w_hh.shape[1]
        B = h_seq.shape[1]

        def step(carry, x_t, w_ih=w_ih, w_hh=w_hh, bias=bias, H=H):
            h, c = carry
            gates = x_t @ w_ih.T + h @ w_hh.T + bias
            i = jax.nn.sigmoid(gates[:, 0 * H:1 * H])
            f = jax.nn.sigmoid(gates[:, 1 * H:2 * H])
            g = jnp.tanh(gates[:, 2 * H:3 * H])
            o = jax.nn.sigmoid(gates[:, 3 * H:4 * H])
            c = f * c + i * g
            h = o * jnp.tanh(c)
            return (h, c), h

        init = (jnp.zeros((B, H), jnp.float32), jnp.zeros((B, H), jnp.float32))
        _, h_seq = jax.lax.scan(step, init, h_seq)
    return h_seq[-1] @ raw["fc_w"].T + raw["fc_b"]


if __name__ == "__main__":
    B, T = 2, 8
    input_size, hidden_size, num_layers, output_size = 16, 32, 2, 4

    key = jax.random.PRNGKey(0)
    kx, kp = jax.random.split(key)
    x = jax.random.normal(kx, (B, T, input_size), jnp.float32)

    raw_params = init_lstm0_params(kp, input_size, hidden_size, num_layers, output_size)
    kparams = prepare_kernel_params(raw_params)

    out = lstm0_forward(x, kparams)
    jax.block_until_ready(out)

    ref = lstm0_reference(x, raw_params)
    assert out.shape == (B, output_size)
    assert jnp.allclose(out, ref, atol=1e-5, rtol=1e-5), "mismatch vs reference"

    print("KERNEL_OK")
</pallas_src>

<mosaic_0001>
module attributes {stable_mosaic.version = 11 : i64} {
  func.func @kernel(%arg0: memref<64x16xf32, #tpu.memory_space<vmem>>, %arg1: memref<16x128xf32, #tpu.memory_space<vmem>>, %arg2: memref<32x128xf32, #tpu.memory_space<vmem>>, %arg3: memref<1x128xf32, #tpu.memory_space<vmem>>, %arg4: memref<32x128xf32, #tpu.memory_space<vmem>>, %arg5: memref<32x128xf32, #tpu.memory_space<vmem>>, %arg6: memref<1x128xf32, #tpu.memory_space<vmem>>, %arg7: memref<32x128xf32, #tpu.memory_space<vmem>>, %arg8: memref<1x128xf32, #tpu.memory_space<vmem>>, %arg9: memref<8x128xf32, #tpu.memory_space<vmem>>, %arg10: memref<64x128xf32, #tpu.memory_space<vmem>>, %arg11: memref<64x32xf32, #tpu.memory_space<vmem>>, %arg12: memref<8x32xf32, #tpu.memory_space<vmem>>, %arg13: memref<8x32xf32, #tpu.memory_space<vmem>>) attributes {dimension_semantics = [], scalar_prefetch = 0 : i64, scratch_operands = 4 : i64, tpu.core_type = #tpu.core_type<tc>} {
    %c0 = arith.constant 0 : index
    %c0_0 = arith.constant 0 : index
    %0 = vector.load %arg0[%c0, %c0_0] : memref<64x16xf32, #tpu.memory_space<vmem>>, vector<64x16xf32>
    %c0_1 = arith.constant 0 : index
    %c0_2 = arith.constant 0 : index
    %1 = vector.load %arg1[%c0_1, %c0_2] : memref<16x128xf32, #tpu.memory_space<vmem>>, vector<16x128xf32>
    %cst = arith.constant dense<0.000000e+00> : vector<64x128xf32>
    %2 = tpu.matmul %0, %1, %cst {dimension_numbers = #tpu.dot_dimension_numbers<[1], [0], [0], [1], [0, 0, 1, 1], [], []>} : vector<64x16xf32>, vector<16x128xf32>, vector<64x128xf32> -> vector<64x128xf32>
    %c0_3 = arith.constant 0 : index
    %c0_4 = arith.constant 0 : index
    %3 = vector.load %arg3[%c0_3, %c0_4] : memref<1x128xf32, #tpu.memory_space<vmem>>, vector<1x128xf32>
    %4 = vector.broadcast %3 : vector<1x128xf32> to vector<64x128xf32>
    %5 = arith.addf %2, %4 : vector<64x128xf32>
    %c0_5 = arith.constant 0 : index
    %c0_6 = arith.constant 0 : index
    %6 = vector.load %arg10[%c0_5, %c0_6] : memref<64x128xf32, #tpu.memory_space<vmem>>, vector<64x128xf32>
    tpu.vector_store %arg10[%c0_5, %c0_6], %5 {strides = array<i32>} : memref<64x128xf32, #tpu.memory_space<vmem>>, vector<64x128xf32>,
    %cst_7 = arith.constant 0.000000e+00 : f32
    %7 = vector.broadcast %cst_7 : f32 to vector<8x32xf32>
    %c0_8 = arith.constant 0 : index
    %c0_9 = arith.constant 0 : index
    %8 = vector.load %arg12[%c0_8, %c0_9] : memref<8x32xf32, #tpu.memory_space<vmem>>, vector<8x32xf32>
    tpu.vector_store %arg12[%c0_8, %c0_9], %7 {strides = array<i32>} : memref<8x32xf32, #tpu.memory_space<vmem>>, vector<8x32xf32>,
    %cst_10 = arith.constant 0.000000e+00 : f32
    %9 = vector.broadcast %cst_10 : f32 to vector<8x32xf32>
    %c0_11 = arith.constant 0 : index
    %c0_12 = arith.constant 0 : index
    %10 = vector.load %arg13[%c0_11, %c0_12] : memref<8x32xf32, #tpu.memory_space<vmem>>, vector<8x32xf32>
    tpu.vector_store %arg13[%c0_11, %c0_12], %9 {strides = array<i32>} : memref<8x32xf32, #tpu.memory_space<vmem>>, vector<8x32xf32>,
    %c0_13 = arith.constant 0 : index
    %c0_14 = arith.constant 0 : index
    %11 = vector.load %arg2[%c0_13, %c0_14] : memref<32x128xf32, #tpu.memory_space<vmem>>, vector<32x128xf32>
    %c0_15 = arith.constant 0 : index
    %c0_16 = arith.constant 0 : index
    %12 = vector.load %arg12[%c0_15, %c0_16] : memref<8x32xf32, #tpu.memory_space<vmem>>, vector<8x32xf32>
    %c0_17 = arith.constant 0 : index
    %c0_18 = arith.constant 0 : index
    %13 = vector.load %arg13[%c0_17, %c0_18] : memref<8x32xf32, #tpu.memory_space<vmem>>, vector<8x32xf32>
    %cst_19 = arith.constant dense<0.000000e+00> : vector<8x128xf32>
    %14 = tpu.matmul %12, %11, %cst_19 {dimension_numbers = #tpu.dot_dimension_numbers<[1], [0], [0], [1], [0, 0, 1, 1], [], []>} : vector<8x32xf32>, vector<32x128xf32>, vector<8x128xf32> -> vector<8x128xf32>
    %c0_20 = arith.constant 0 : index
    %c0_21 = arith.constant 0 : index
    %15 = vector.load %arg10[%c0_20, %c0_21] : memref<64x128xf32, #tpu.memory_space<vmem>>, vector<8x128xf32>
    %16 = arith.addf %14, %15 : vector<8x128xf32>
    %17 = vector.extract_strided_slice %16 {offsets = [0, 0], sizes = [8, 96], strides = [1, 1]} : vector<8x128xf32> to vector<8x96xf32>
    %18 = arith.negf %17 : vector<8x96xf32>
    %19 = math.exp %18 : vector<8x96xf32>
    %cst_22 = arith.constant 1.000000e+00 : f32
    %20 = vector.broadcast %cst_22 : f32 to vector<8x96xf32>
    %21 = arith.addf %20, %19 : vector<8x96xf32>
    %22 = arith.divf %20, %21 : vector<8x96xf32>
    %23 = vector.extract_strided_slice %16 {offsets = [0, 96], sizes = [8, 32], strides = [1, 1]} : vector<8x128xf32> to vector<8x32xf32>
    %24 = math.tanh %23 : vector<8x32xf32>
    %25 = vector.extract_strided_slice %22 {offsets = [0, 0], sizes = [8, 32], strides = [1, 1]} : vector<8x96xf32> to vector<8x32xf32>
    %26 = vector.extract_strided_slice %22 {offsets = [0, 32], sizes = [8, 32], strides = [1, 1]} : vector<8x96xf32> to vector<8x32xf32>
    %27 = vector.extract_strided_slice %22 {offsets = [0, 64], sizes = [8, 32], strides = [1, 1]} : vector<8x96xf32> to vector<8x32xf32>
    %28 = arith.mulf %26, %13 : vector<8x32xf32>
    %29 = arith.mulf %25, %24 : vector<8x32xf32>
    %30 = arith.addf %28, %29 : vector<8x32xf32>
    %31 = math.tanh %30 : vector<8x32xf32>
    %32 = arith.mulf %27, %31 : vector<8x32xf32>
    %c0_23 = arith.constant 0 : index
    %c0_24 = arith.constant 0 : index
    %33 = vector.load %arg13[%c0_23, %c0_24] : memref<8x32xf32, #tpu.memory_space<vmem>>, vector<8x32xf32>
    tpu.vector_store %arg13[%c0_23, %c0_24], %30 {strides = array<i32>} : memref<8x32xf32, #tpu.memory_space<vmem>>, vector<8x32xf32>,
    %c0_25 = arith.constant 0 : index
    %c0_26 = arith.constant 0 : index
    %34 = vector.load %arg12[%c0_25, %c0_26] : memref<8x32xf32, #tpu.memory_space<vmem>>, vector<8x32xf32>
    tpu.vector_store %arg12[%c0_25, %c0_26], %32 {strides = array<i32>} : memref<8x32xf32, #tpu.memory_space<vmem>>, vector<8x32xf32>,
    %c0_27 = arith.constant 0 : index
    %c0_28 = arith.constant 0 : index
    %35 = vector.load %arg11[%c0_27, %c0_28] : memref<64x32xf32, #tpu.memory_space<vmem>>, vector<8x32xf32>
    tpu.vector_store %arg11[%c0_27, %c0_28], %32 {strides = array<i32>} : memref<64x32xf32, #tpu.memory_space<vmem>>, vector<8x32xf32>,
    %c0_29 = arith.constant 0 : index
    %c0_30 = arith.constant 0 : index
    %36 = vector.load %arg12[%c0_29, %c0_30] : memref<8x32xf32, #tpu.memory_space<vmem>>, vector<8x32xf32>
    %c0_31 = arith.constant 0 : index
    %c0_32 = arith.constant 0 : index
    %37 = vector.load %arg13[%c0_31, %c0_32] : memref<8x32xf32, #tpu.memory_space<vmem>>, vector<8x32xf32>
    %cst_33 = arith.constant dense<0.000000e+00> : vector<8x128xf32>
    %38 = tpu.matmul %36, %11, %cst_33 {dimension_numbers = #tpu.dot_dimension_numbers<[1], [0], [0], [1], [0, 0, 1, 1], [], []>} : vector<8x32xf32>, vector<32x128xf32>, vector<8x128xf32> -> vector<8x128xf32>
    %c8 = arith.constant 8 : index
    %c0_34 = arith.constant 0 : index
    %39 = vector.load %arg10[%c8, %c0_34] : memref<64x128xf32, #tpu.memory_space<vmem>>, vector<8x128xf32>
    %40 = arith.addf %38, %39 : vector<8x128xf32>
    %41 = vector.extract_strided_slice %40 {offsets = [0, 0], sizes = [8, 96], strides = [1, 1]} : vector<8x128xf32> to vector<8x96xf32>
    %42 = arith.negf %41 : vector<8x96xf32>
    %43 = math.exp %42 : vector<8x96xf32>
    %cst_35 = arith.constant 1.000000e+00 : f32
    %44 = vector.broadcast %cst_35 : f32 to vector<8x96xf32>
    %45 = arith.addf %44, %43 : vector<8x96xf32>
    %46 = arith.divf %44, %45 : vector<8x96xf32>
    %47 = vector.extract_strided_slice %40 {offsets = [0, 96], sizes = [8, 32], strides = [1, 1]} : vector<8x128xf32> to vector<8x32xf32>
    %48 = math.tanh %47 : vector<8x32xf32>
    %49 = vector.extract_strided_slice %46 {offsets = [0, 0], sizes = [8, 32], strides = [1, 1]} : vector<8x96xf32> to vector<8x32xf32>
    %50 = vector.extract_strided_slice %46 {offsets = [0, 32], sizes = [8, 32], strides = [1, 1]} : vector<8x96xf32> to vector<8x32xf32>
    %51 = vector.extract_strided_slice %46 {offsets = [0, 64], sizes = [8, 32], strides = [1, 1]} : vector<8x96xf32> to vector<8x32xf32>
    %52 = arith.mulf %50, %37 : vector<8x32xf32>
    %53 = arith.mulf %49, %48 : vector<8x32xf32>
    %54 = arith.addf %52, %53 : vector<8x32xf32>
    %55 = math.tanh %54 : vector<8x32xf32>
    %56 = arith.mulf %51, %55 : vector<8x32xf32>
    %c0_36 = arith.constant 0 : index
    %c0_37 = arith.constant 0 : index
    %57 = vector.load %arg13[%c0_36, %c0_37] : memref<8x32xf32, #tpu.memory_space<vmem>>, vector<8x32xf32>
    tpu.vector_store %arg13[%c0_36, %c0_37], %54 {strides = array<i32>} : memref<8x32xf32, #tpu.memory_space<vmem>>, vector<8x32xf32>,
    %c0_38 = arith.constant 0 : index
    %c0_39 = arith.constant 0 : index
    %58 = vector.load %arg12[%c0_38, %c0_39] : memref<8x32xf32, #tpu.memory_space<vmem>>, vector<8x32xf32>
    tpu.vector_store %arg12[%c0_38, %c0_39], %56 {strides = array<i32>} : memref<8x32xf32, #tpu.memory_space<vmem>>, vector<8x32xf32>,
    %c8_40 = arith.constant 8 : index
    %c0_41 = arith.constant 0 : index
    %59 = vector.load %arg11[%c8_40, %c0_41] : memref<64x32xf32, #tpu.memory_space<vmem>>, vector<8x32xf32>
    tpu.vector_store %arg11[%c8_40, %c0_41], %56 {strides = array<i32>} : memref<64x32xf32, #tpu.memory_space<vmem>>, vector<8x32xf32>,
    %c0_42 = arith.constant 0 : index
    %c0_43 = arith.constant 0 : index
    %60 = vector.load %arg12[%c0_42, %c0_43] : memref<8x32xf32, #tpu.memory_space<vmem>>, vector<8x32xf32>
    %c0_44 = arith.constant 0 : index
    %c0_45 = arith.constant 0 : index
    %61 = vector.load %arg13[%c0_44, %c0_45] : memref<8x32xf32, #tpu.memory_space<vmem>>, vector<8x32xf32>
    %cst_46 = arith.constant dense<0.000000e+00> : vector<8x128xf32>
    %62 = tpu.matmul %60, %11, %cst_46 {dimension_numbers = #tpu.dot_dimension_numbers<[1], [0], [0], [1], [0, 0, 1, 1], [], []>} : vector<8x32xf32>, vector<32x128xf32>, vector<8x128xf32> -> vector<8x128xf32>
    %c16 = arith.constant 16 : index
    %c0_47 = arith.constant 0 : index
    %63 = vector.load %arg10[%c16, %c0_47] : memref<64x128xf32, #tpu.memory_space<vmem>>, vector<8x128xf32>
    %64 = arith.addf %62, %63 : vector<8x128xf32>
    %65 = vector.extract_strided_slice %64 {offsets = [0, 0], sizes = [8, 96], strides = [1, 1]} : vector<8x128xf32> to vector<8x96xf32>
    %66 = arith.negf %65 : vector<8x96xf32>
    %67 = math.exp %66 : vector<8x96xf32>
    %cst_48 = arith.constant 1.000000e+00 : f32
    %68 = vector.broadcast %cst_48 : f32 to vector<8x96xf32>
    %69 = arith.addf %68, %67 : vector<8x96xf32>
    %70 = arith.divf %68, %69 : vector<8x96xf32>
    %71 = vector.extract_strided_slice %64 {offsets = [0, 96], sizes = [8, 32], strides = [1, 1]} : vector<8x128xf32> to vector<8x32xf32>
    %72 = math.tanh %71 : vector<8x32xf32>
    %73 = vector.extract_strided_slice %70 {offsets = [0, 0], sizes = [8, 32], strides = [1, 1]} : vector<8x96xf32> to vector<8x32xf32>
    %74 = vector.extract_strided_slice %70 {offsets = [0, 32], sizes = [8, 32], strides = [1, 1]} : vector<8x96xf32> to vector<8x32xf32>
    %75 = vector.extract_strided_slice %70 {offsets = [0, 64], sizes = [8, 32], strides = [1, 1]} : vector<8x96xf32> to vector<8x32xf32>
    %76 = arith.mulf %74, %61 : vector<8x32xf32>
    %77 = arith.mulf %73, %72 : vector<8x32xf32>
    %78 = arith.addf %76, %77 : vector<8x32xf32>
    %79 = math.tanh %78 : vector<8x32xf32>
    %80 = arith.mulf %75, %79 : vector<8x32xf32>
    %c0_49 = arith.constant 0 : index
    %c0_50 = arith.constant 0 : index
    %81 = vector.load %arg13[%c0_49, %c0_50] : memref<8x32xf32, #tpu.memory_space<vmem>>, vector<8x32xf32>
    tpu.vector_store %arg13[%c0_49, %c0_50], %78 {strides = array<i32>} : memref<8x32xf32, #tpu.memory_space<vmem>>, vector<8x32xf32>,
    %c0_51 = arith.constant 0 : index
    %c0_52 = arith.constant 0 : index
    %82 = vector.load %arg12[%c0_51, %c0_52] : memref<8x32xf32, #tpu.memory_space<vmem>>, vector<8x32xf32>
    tpu.vector_store %arg12[%c0_51, %c0_52], %80 {strides = array<i32>} : memref<8x32xf32, #tpu.memory_space<vmem>>, vector<8x32xf32>,
    %c16_53 = arith.constant 16 : index
    %c0_54 = arith.constant 0 : index
    %83 = vector.load %arg11[%c16_53, %c0_54] : memref<64x32xf32, #tpu.memory_space<vmem>>, vector<8x32xf32>
    tpu.vector_store %arg11[%c16_53, %c0_54], %80 {strides = array<i32>} : memref<64x32xf32, #tpu.memory_space<vmem>>, vector<8x32xf32>,
    %c0_55 = arith.constant 0 : index
    %c0_56 = arith.constant 0 : index
    %84 = vector.load %arg12[%c0_55, %c0_56] : memref<8x32xf32, #tpu.memory_space<vmem>>, vector<8x32xf32>
    %c0_57 = arith.constant 0 : index
    %c0_58 = arith.constant 0 : index
    %85 = vector.load %arg13[%c0_57, %c0_58] : memref<8x32xf32, #tpu.memory_space<vmem>>, vector<8x32xf32>
    %cst_59 = arith.constant dense<0.000000e+00> : vector<8x128xf32>
    %86 = tpu.matmul %84, %11, %cst_59 {dimension_numbers = #tpu.dot_dimension_numbers<[1], [0], [0], [1], [0, 0, 1, 1], [], []>} : vector<8x32xf32>, vector<32x128xf32>, vector<8x128xf32> -> vector<8x128xf32>
    %c24 = arith.constant 24 : index
    %c0_60 = arith.constant 0 : index
    %87 = vector.load %arg10[%c24, %c0_60] : memref<64x128xf32, #tpu.memory_space<vmem>>, vector<8x128xf32>
    %88 = arith.addf %86, %87 : vector<8x128xf32>
    %89 = vector.extract_strided_slice %88 {offsets = [0, 0], sizes = [8, 96], strides = [1, 1]} : vector<8x128xf32> to vector<8x96xf32>
    %90 = arith.negf %89 : vector<8x96xf32>
    %91 = math.exp %90 : vector<8x96xf32>
    %cst_61 = arith.constant 1.000000e+00 : f32
    %92 = vector.broadcast %cst_61 : f32 to vector<8x96xf32>
    %93 = arith.addf %92, %91 : vector<8x96xf32>
    %94 = arith.divf %92, %93 : vector<8x96xf32>
    %95 = vector.extract_strided_slice %88 {offsets = [0, 96], sizes = [8, 32], strides = [1, 1]} : vector<8x128xf32> to vector<8x32xf32>
    %96 = math.tanh %95 : vector<8x32xf32>
    %97 = vector.extract_strided_slice %94 {offsets = [0, 0], sizes = [8, 32], strides = [1, 1]} : vector<8x96xf32> to vector<8x32xf32>
    %98 = vector.extract_strided_slice %94 {offsets = [0, 32], sizes = [8, 32], strides = [1, 1]} : vector<8x96xf32> to vector<8x32xf32>
    %99 = vector.extract_strided_slice %94 {offsets = [0, 64], sizes = [8, 32], strides = [1, 1]} : vector<8x96xf32> to vector<8x32xf32>
    %100 = arith.mulf %98, %85 : vector<8x32xf32>
    %101 = arith.mulf %97, %96 : vector<8x32xf32>
    %102 = arith.addf %100, %101 : vector<8x32xf32>
    %103 = math.tanh %102 : vector<8x32xf32>
    %104 = arith.mulf %99, %103 : vector<8x32xf32>
    %c0_62 = arith.constant 0 : index
    %c0_63 = arith.constant 0 : index
    %105 = vector.load %arg13[%c0_62, %c0_63] : memref<8x32xf32, #tpu.memory_space<vmem>>, vector<8x32xf32>
    tpu.vector_store %arg13[%c0_62, %c0_63], %102 {strides = array<i32>} : memref<8x32xf32, #tpu.memory_space<vmem>>, vector<8x32xf32>,
    %c0_64 = arith.constant 0 : index
    %c0_65 = arith.constant 0 : index
    %106 = vector.load %arg12[%c0_64, %c0_65] : memref<8x32xf32, #tpu.memory_space<vmem>>, vector<8x32xf32>
    tpu.vector_store %arg12[%c0_64, %c0_65], %104 {strides = array<i32>} : memref<8x32xf32, #tpu.memory_space<vmem>>, vector<8x32xf32>,
    %c24_66 = arith.constant 24 : index
    %c0_67 = arith.constant 0 : index
    %107 = vector.load %arg11[%c24_66, %c0_67] : memref<64x32xf32, #tpu.memory_space<vmem>>, vector<8x32xf32>
    tpu.vector_store %arg11[%c24_66, %c0_67], %104 {strides = array<i32>} : memref<64x32xf32, #tpu.memory_space<vmem>>, vector<8x32xf32>,
    %c0_68 = arith.constant 0 : index
    %c0_69 = arith.constant 0 : index
    %108 = vector.load %arg12[%c0_68, %c0_69] : memref<8x32xf32, #tpu.memory_space<vmem>>, vector<8x32xf32>
    %c0_70 = arith.constant 0 : index
    %c0_71 = arith.constant 0 : index
    %109 = vector.load %arg13[%c0_70, %c0_71] : memref<8x32xf32, #tpu.memory_space<vmem>>, vector<8x32xf32>
    %cst_72 = arith.constant dense<0.000000e+00> : vector<8x128xf32>
    %110 = tpu.matmul %108, %11, %cst_72 {dimension_numbers = #tpu.dot_dimension_numbers<[1], [0], [0], [1], [0, 0, 1, 1], [], []>} : vector<8x32xf32>, vector<32x128xf32>, vector<8x128xf32> -> vector<8x128xf32>
    %c32 = arith.constant 32 : index
    %c0_73 = arith.constant 0 : index
    %111 = vector.load %arg10[%c32, %c0_73] : memref<64x128xf32, #tpu.memory_space<vmem>>, vector<8x128xf32>
    %112 = arith.addf %110, %111 : vector<8x128xf32>
    %113 = vector.extract_strided_slice %112 {offsets = [0, 0], sizes = [8, 96], strides = [1, 1]} : vector<8x128xf32> to vector<8x96xf32>
    %114 = arith.negf %113 : vector<8x96xf32>
    %115 = math.exp %114 : vector<8x96xf32>
    %cst_74 = arith.constant 1.000000e+00 : f32
    %116 = vector.broadcast %cst_74 : f32 to vector<8x96xf32>
    %117 = arith.addf %116, %115 : vector<8x96xf32>
    %118 = arith.divf %116, %117 : vector<8x96xf32>
    %119 = vector.extract_strided_slice %112 {offsets = [0, 96], sizes = [8, 32], strides = [1, 1]} : vector<8x128xf32> to vector<8x32xf32>
    %120 = math.tanh %119 : vector<8x32xf32>
    %121 = vector.extract_strided_slice %118 {offsets = [0, 0], sizes = [8, 32], strides = [1, 1]} : vector<8x96xf32> to vector<8x32xf32>
    %122 = vector.extract_strided_slice %118 {offsets = [0, 32], sizes = [8, 32], strides = [1, 1]} : vector<8x96xf32> to vector<8x32xf32>
    %123 = vector.extract_strided_slice %118 {offsets = [0, 64], sizes = [8, 32], strides = [1, 1]} : vector<8x96xf32> to vector<8x32xf32>
    %124 = arith.mulf %122, %109 : vector<8x32xf32>
    %125 = arith.mulf %121, %120 : vector<8x32xf32>
    %126 = arith.addf %124, %125 : vector<8x32xf32>
    %127 = math.tanh %126 : vector<8x32xf32>
    %128 = arith.mulf %123, %127 : vector<8x32xf32>
    %c0_75 = arith.constant 0 : index
    %c0_76 = arith.constant 0 : index
    %129 = vector.load %arg13[%c0_75, %c0_76] : memref<8x32xf32, #tpu.memory_space<vmem>>, vector<8x32xf32>
    tpu.vector_store %arg13[%c0_75, %c0_76], %126 {strides = array<i32>} : memref<8x32xf32, #tpu.memory_space<vmem>>, vector<8x32xf32>,
    %c0_77 = arith.constant 0 : index
    %c0_78 = arith.constant 0 : index
    %130 = vector.load %arg12[%c0_77, %c0_78] : memref<8x32xf32, #tpu.memory_space<vmem>>, vector<8x32xf32>
    tpu.vector_store %arg12[%c0_77, %c0_78], %128 {strides = array<i32>} : memref<8x32xf32, #tpu.memory_space<vmem>>, vector<8x32xf32>,
    %c32_79 = arith.constant 32 : index
    %c0_80 = arith.constant 0 : index
    %131 = vector.load %arg11[%c32_79, %c0_80] : memref<64x32xf32, #tpu.memory_space<vmem>>, vector<8x32xf32>
    tpu.vector_store %arg11[%c32_79, %c0_80], %128 {strides = array<i32>} : memref<64x32xf32, #tpu.memory_space<vmem>>, vector<8x32xf32>,
    %c0_81 = arith.constant 0 : index
    %c0_82 = arith.constant 0 : index
    %132 = vector.load %arg12[%c0_81, %c0_82] : memref<8x32xf32, #tpu.memory_space<vmem>>, vector<8x32xf32>
    %c0_83 = arith.constant 0 : index
    %c0_84 = arith.constant 0 : index
    %133 = vector.load %arg13[%c0_83, %c0_84] : memref<8x32xf32, #tpu.memory_space<vmem>>, vector<8x32xf32>
    %cst_85 = arith.constant dense<0.000000e+00> : vector<8x128xf32>
    %134 = tpu.matmul %132, %11, %cst_85 {dimension_numbers = #tpu.dot_dimension_numbers<[1], [0], [0], [1], [0, 0, 1, 1], [], []>} : vector<8x32xf32>, vector<32x128xf32>, vector<8x128xf32> -> vector<8x128xf32>
    %c40 = arith.constant 40 : index
    %c0_86 = arith.constant 0 : index
    %135 = vector.load %arg10[%c40, %c0_86] : memref<64x128xf32, #tpu.memory_space<vmem>>, vector<8x128xf32>
    %136 = arith.addf %134, %135 : vector<8x128xf32>
    %137 = vector.extract_strided_slice %136 {offsets = [0, 0], sizes = [8, 96], strides = [1, 1]} : vector<8x128xf32> to vector<8x96xf32>
    %138 = arith.negf %137 : vector<8x96xf32>
    %139 = math.exp %138 : vector<8x96xf32>
    %cst_87 = arith.constant 1.000000e+00 : f32
    %140 = vector.broadcast %cst_87 : f32 to vector<8x96xf32>
    %141 = arith.addf %140, %139 : vector<8x96xf32>
    %142 = arith.divf %140, %141 : vector<8x96xf32>
    %143 = vector.extract_strided_slice %136 {offsets = [0, 96], sizes = [8, 32], strides = [1, 1]} : vector<8x128xf32> to vector<8x32xf32>
    %144 = math.tanh %143 : vector<8x32xf32>
    %145 = vector.extract_strided_slice %142 {offsets = [0, 0], sizes = [8, 32], strides = [1, 1]} : vector<8x96xf32> to vector<8x32xf32>
    %146 = vector.extract_strided_slice %142 {offsets = [0, 32], sizes = [8, 32], strides = [1, 1]} : vector<8x96xf32> to vector<8x32xf32>
    %147 = vector.extract_strided_slice %142 {offsets = [0, 64], sizes = [8, 32], strides = [1, 1]} : vector<8x96xf32> to vector<8x32xf32>
    %148 = arith.mulf %146, %133 : vector<8x32xf32>
    %149 = arith.mulf %145, %144 : vector<8x32xf32>
    %150 = arith.addf %148, %149 : vector<8x32xf32>
    %151 = math.tanh %150 : vector<8x32xf32>
    %152 = arith.mulf %147, %151 : vector<8x32xf32>
    %c0_88 = arith.constant 0 : index
    %c0_89 = arith.constant 0 : index
    %153 = vector.load %arg13[%c0_88, %c0_89] : memref<8x32xf32, #tpu.memory_space<vmem>>, vector<8x32xf32>
    tpu.vector_store %arg13[%c0_88, %c0_89], %150 {strides = array<i32>} : memref<8x32xf32, #tpu.memory_space<vmem>>, vector<8x32xf32>,
    %c0_90 = arith.constant 0 : index
    %c0_91 = arith.constant 0 : index
    %154 = vector.load %arg12[%c0_90, %c0_91] : memref<8x32xf32, #tpu.memory_space<vmem>>, vector<8x32xf32>
    tpu.vector_store %arg12[%c0_90, %c0_91], %152 {strides = array<i32>} : memref<8x32xf32, #tpu.memory_space<vmem>>, vector<8x32xf32>,
    %c40_92 = arith.constant 40 : index
    %c0_93 = arith.constant 0 : index
    %155 = vector.load %arg11[%c40_92, %c0_93] : memref<64x32xf32, #tpu.memory_space<vmem>>, vector<8x32xf32>
    tpu.vector_store %arg11[%c40_92, %c0_93], %152 {strides = array<i32>} : memref<64x32xf32, #tpu.memory_space<vmem>>, vector<8x32xf32>,
    %c0_94 = arith.constant 0 : index
    %c0_95 = arith.constant 0 : index
    %156 = vector.load %arg12[%c0_94, %c0_95] : memref<8x32xf32, #tpu.memory_space<vmem>>, vector<8x32xf32>
    %c0_96 = arith.constant 0 : index
    %c0_97 = arith.constant 0 : index
    %157 = vector.load %arg13[%c0_96, %c0_97] : memref<8x32xf32, #tpu.memory_space<vmem>>, vector<8x32xf32>
    %cst_98 = arith.constant dense<0.000000e+00> : vector<8x128xf32>
    %158 = tpu.matmul %156, %11, %cst_98 {dimension_numbers = #tpu.dot_dimension_numbers<[1], [0], [0], [1], [0, 0, 1, 1], [], []>} : vector<8x32xf32>, vector<32x128xf32>, vector<8x128xf32> -> vector<8x128xf32>
    %c48 = arith.constant 48 : index
    %c0_99 = arith.constant 0 : index
    %159 = vector.load %arg10[%c48, %c0_99] : memref<64x128xf32, #tpu.memory_space<vmem>>, vector<8x128xf32>
    %160 = arith.addf %158, %159 : vector<8x128xf32>
    %161 = vector.extract_strided_slice %160 {offsets = [0, 0], sizes = [8, 96], strides = [1, 1]} : vector<8x128xf32> to vector<8x96xf32>
    %162 = arith.negf %161 : vector<8x96xf32>
    %163 = math.exp %162 : vector<8x96xf32>
    %cst_100 = arith.constant 1.000000e+00 : f32
    %164 = vector.broadcast %cst_100 : f32 to vector<8x96xf32>
    %165 = arith.addf %164, %163 : vector<8x96xf32>
    %166 = arith.divf %164, %165 : vector<8x96xf32>
    %167 = vector.extract_strided_slice %160 {offsets = [0, 96], sizes = [8, 32], strides = [1, 1]} : vector<8x128xf32> to vector<8x32xf32>
    %168 = math.tanh %167 : vector<8x32xf32>
    %169 = vector.extract_strided_slice %166 {offsets = [0, 0], sizes = [8, 32], strides = [1, 1]} : vector<8x96xf32> to vector<8x32xf32>
    %170 = vector.extract_strided_slice %166 {offsets = [0, 32], sizes = [8, 32], strides = [1, 1]} : vector<8x96xf32> to vector<8x32xf32>
    %171 = vector.extract_strided_slice %166 {offsets = [0, 64], sizes = [8, 32], strides = [1, 1]} : vector<8x96xf32> to vector<8x32xf32>
    %172 = arith.mulf %170, %157 : vector<8x32xf32>
    %173 = arith.mulf %169, %168 : vector<8x32xf32>
    %174 = arith.addf %172, %173 : vector<8x32xf32>
    %175 = math.tanh %174 : vector<8x32xf32>
    %176 = arith.mulf %171, %175 : vector<8x32xf32>
    %c0_101 = arith.constant 0 : index
    %c0_102 = arith.constant 0 : index
    %177 = vector.load %arg13[%c0_101, %c0_102] : memref<8x32xf32, #tpu.memory_space<vmem>>, vector<8x32xf32>
    tpu.vector_store %arg13[%c0_101, %c0_102], %174 {strides = array<i32>} : memref<8x32xf32, #tpu.memory_space<vmem>>, vector<8x32xf32>,
    %c0_103 = arith.constant 0 : index
    %c0_104 = arith.constant 0 : index
    %178 = vector.load %arg12[%c0_103, %c0_104] : memref<8x32xf32, #tpu.memory_space<vmem>>, vector<8x32xf32>
    tpu.vector_store %arg12[%c0_103, %c0_104], %176 {strides = array<i32>} : memref<8x32xf32, #tpu.memory_space<vmem>>, vector<8x32xf32>,
    %c48_105 = arith.constant 48 : index
    %c0_106 = arith.constant 0 : index
    %179 = vector.load %arg11[%c48_105, %c0_106] : memref<64x32xf32, #tpu.memory_space<vmem>>, vector<8x32xf32>
    tpu.vector_store %arg11[%c48_105, %c0_106], %176 {strides = array<i32>} : memref<64x32xf32, #tpu.memory_space<vmem>>, vector<8x32xf32>,
    %c0_107 = arith.constant 0 : index
    %c0_108 = arith.constant 0 : index
    %180 = vector.load %arg12[%c0_107, %c0_108] : memref<8x32xf32, #tpu.memory_space<vmem>>, vector<8x32xf32>
    %c0_109 = arith.constant 0 : index
    %c0_110 = arith.constant 0 : index
    %181 = vector.load %arg13[%c0_109, %c0_110] : memref<8x32xf32, #tpu.memory_space<vmem>>, vector<8x32xf32>
    %cst_111 = arith.constant dense<0.000000e+00> : vector<8x128xf32>
    %182 = tpu.matmul %180, %11, %cst_111 {dimension_numbers = #tpu.dot_dimension_numbers<[1], [0], [0], [1], [0, 0, 1, 1], [], []>} : vector<8x32xf32>, vector<32x128xf32>, vector<8x128xf32> -> vector<8x128xf32>
    %c56 = arith.constant 56 : index
    %c0_112 = arith.constant 0 : index
    %183 = vector.load %arg10[%c56, %c0_112] : memref<64x128xf32, #tpu.memory_space<vmem>>, vector<8x128xf32>
    %184 = arith.addf %182, %183 : vector<8x128xf32>
    %185 = vector.extract_strided_slice %184 {offsets = [0, 0], sizes = [8, 96], strides = [1, 1]} : vector<8x128xf32> to vector<8x96xf32>
    %186 = arith.negf %185 : vector<8x96xf32>
    %187 = math.exp %186 : vector<8x96xf32>
    %cst_113 = arith.constant 1.000000e+00 : f32
    %188 = vector.broadcast %cst_113 : f32 to vector<8x96xf32>
    %189 = arith.addf %188, %187 : vector<8x96xf32>
    %190 = arith.divf %188, %189 : vector<8x96xf32>
    %191 = vector.extract_strided_slice %184 {offsets = [0, 96], sizes = [8, 32], strides = [1, 1]} : vector<8x128xf32> to vector<8x32xf32>
    %192 = math.tanh %191 : vector<8x32xf32>
    %193 = vector.extract_strided_slice %190 {offsets = [0, 0], sizes = [8, 32], strides = [1, 1]} : vector<8x96xf32> to vector<8x32xf32>
    %194 = vector.extract_strided_slice %190 {offsets = [0, 32], sizes = [8, 32], strides = [1, 1]} : vector<8x96xf32> to vector<8x32xf32>
    %195 = vector.extract_strided_slice %190 {offsets = [0, 64], sizes = [8, 32], strides = [1, 1]} : vector<8x96xf32> to vector<8x32xf32>
    %196 = arith.mulf %194, %181 : vector<8x32xf32>
    %197 = arith.mulf %193, %192 : vector<8x32xf32>
    %198 = arith.addf %196, %197 : vector<8x32xf32>
    %199 = math.tanh %198 : vector<8x32xf32>
    %200 = arith.mulf %195, %199 : vector<8x32xf32>
    %c0_114 = arith.constant 0 : index
    %c0_115 = arith.constant 0 : index
    %201 = vector.load %arg13[%c0_114, %c0_115] : memref<8x32xf32, #tpu.memory_space<vmem>>, vector<8x32xf32>
    tpu.vector_store %arg13[%c0_114, %c0_115], %198 {strides = array<i32>} : memref<8x32xf32, #tpu.memory_space<vmem>>, vector<8x32xf32>,
    %c0_116 = arith.constant 0 : index
    %c0_117 = arith.constant 0 : index
    %202 = vector.load %arg12[%c0_116, %c0_117] : memref<8x32xf32, #tpu.memory_space<vmem>>, vector<8x32xf32>
    tpu.vector_store %arg12[%c0_116, %c0_117], %200 {strides = array<i32>} : memref<8x32xf32, #tpu.memory_space<vmem>>, vector<8x32xf32>,
    %c56_118 = arith.constant 56 : index
    %c0_119 = arith.constant 0 : index
    %203 = vector.load %arg11[%c56_118, %c0_119] : memref<64x32xf32, #tpu.memory_space<vmem>>, vector<8x32xf32>
    tpu.vector_store %arg11[%c56_118, %c0_119], %200 {strides = array<i32>} : memref<64x32xf32, #tpu.memory_space<vmem>>, vector<8x32xf32>,
    %c0_120 = arith.constant 0 : index
    %c0_121 = arith.constant 0 : index
    %204 = vector.load %arg11[%c0_120, %c0_121] : memref<64x32xf32, #tpu.memory_space<vmem>>, vector<64x32xf32>
    %c0_122 = arith.constant 0 : index
    %c0_123 = arith.constant 0 : index
    %205 = vector.load %arg4[%c0_122, %c0_123] : memref<32x128xf32, #tpu.memory_space<vmem>>, vector<32x128xf32>
    %cst_124 = arith.constant dense<0.000000e+00> : vector<64x128xf32>
    %206 = tpu.matmul %204, %205, %cst_124 {dimension_numbers = #tpu.dot_dimension_numbers<[1], [0], [0], [1], [0, 0, 1, 1], [], []>} : vector<64x32xf32>, vector<32x128xf32>, vector<64x128xf32> -> vector<64x128xf32>
    %c0_125 = arith.constant 0 : index
    %c0_126 = arith.constant 0 : index
    %207 = vector.load %arg6[%c0_125, %c0_126] : memref<1x128xf32, #tpu.memory_space<vmem>>, vector<1x128xf32>
    %208 = vector.broadcast %207 : vector<1x128xf32> to vector<64x128xf32>
    %209 = arith.addf %206, %208 : vector<64x128xf32>
    %c0_127 = arith.constant 0 : index
    %c0_128 = arith.constant 0 : index
    %210 = vector.load %arg10[%c0_127, %c0_128] : memref<64x128xf32, #tpu.memory_space<vmem>>, vector<64x128xf32>
    tpu.vector_store %arg10[%c0_127, %c0_128], %209 {strides = array<i32>} : memref<64x128xf32, #tpu.memory_space<vmem>>, vector<64x128xf32>,
    %cst_129 = arith.constant 0.000000e+00 : f32
    %211 = vector.broadcast %cst_129 : f32 to vector<8x32xf32>
    %c0_130 = arith.constant 0 : index
    %c0_131 = arith.constant 0 : index
    %212 = vector.load %arg12[%c0_130, %c0_131] : memref<8x32xf32, #tpu.memory_space<vmem>>, vector<8x32xf32>
    tpu.vector_store %arg12[%c0_130, %c0_131], %211 {strides = array<i32>} : memref<8x32xf32, #tpu.memory_space<vmem>>, vector<8x32xf32>,
    %cst_132 = arith.constant 0.000000e+00 : f32
    %213 = vector.broadcast %cst_132 : f32 to vector<8x32xf32>
    %c0_133 = arith.constant 0 : index
    %c0_134 = arith.constant 0 : index
    %214 = vector.load %arg13[%c0_133, %c0_134] : memref<8x32xf32, #tpu.memory_space<vmem>>, vector<8x32xf32>
    tpu.vector_store %arg13[%c0_133, %c0_134], %213 {strides = array<i32>} : memref<8x32xf32, #tpu.memory_space<vmem>>, vector<8x32xf32>,
    %c0_135 = arith.constant 0 : index
    %c0_136 = arith.constant 0 : index
    %215 = vector.load %arg5[%c0_135, %c0_136] : memref<32x128xf32, #tpu.memory_space<vmem>>, vector<32x128xf32>
    %c0_137 = arith.constant 0 : index
    %c0_138 = arith.constant 0 : index
    %216 = vector.load %arg12[%c0_137, %c0_138] : memref<8x32xf32, #tpu.memory_space<vmem>>, vector<8x32xf32>
    %c0_139 = arith.constant 0 : index
    %c0_140 = arith.constant 0 : index
    %217 = vector.load %arg13[%c0_139, %c0_140] : memref<8x32xf32, #tpu.memory_space<vmem>>, vector<8x32xf32>
    %cst_141 = arith.constant dense<0.000000e+00> : vector<8x128xf32>
    %218 = tpu.matmul %216, %215, %cst_141 {dimension_numbers = #tpu.dot_dimension_numbers<[1], [0], [0], [1], [0, 0, 1, 1], [], []>} : vector<8x32xf32>, vector<32x128xf32>, vector<8x128xf32> -> vector<8x128xf32>
    %c0_142 = arith.constant 0 : index
    %c0_143 = arith.constant 0 : index
    %219 = vector.load %arg10[%c0_142, %c0_143] : memref<64x128xf32, #tpu.memory_space<vmem>>, vector<8x128xf32>
    %220 = arith.addf %218, %219 : vector<8x128xf32>
    %221 = vector.extract_strided_slice %220 {offsets = [0, 0], sizes = [8, 96], strides = [1, 1]} : vector<8x128xf32> to vector<8x96xf32>
    %222 = arith.negf %221 : vector<8x96xf32>
    %223 = math.exp %222 : vector<8x96xf32>
    %cst_144 = arith.constant 1.000000e+00 : f32
    %224 = vector.broadcast %cst_144 : f32 to vector<8x96xf32>
    %225 = arith.addf %224, %223 : vector<8x96xf32>
    %226 = arith.divf %224, %225 : vector<8x96xf32>
    %227 = vector.extract_strided_slice %220 {offsets = [0, 96], sizes = [8, 32], strides = [1, 1]} : vector<8x128xf32> to vector<8x32xf32>
    %228 = math.tanh %227 : vector<8x32xf32>
    %229 = vector.extract_strided_slice %226 {offsets = [0, 0], sizes = [8, 32], strides = [1, 1]} : vector<8x96xf32> to vector<8x32xf32>
    %230 = vector.extract_strided_slice %226 {offsets = [0, 32], sizes = [8, 32], strides = [1, 1]} : vector<8x96xf32> to vector<8x32xf32>
    %231 = vector.extract_strided_slice %226 {offsets = [0, 64], sizes = [8, 32], strides = [1, 1]} : vector<8x96xf32> to vector<8x32xf32>
    %232 = arith.mulf %230, %217 : vector<8x32xf32>
    %233 = arith.mulf %229, %228 : vector<8x32xf32>
    %234 = arith.addf %232, %233 : vector<8x32xf32>
    %235 = math.tanh %234 : vector<8x32xf32>
    %236 = arith.mulf %231, %235 : vector<8x32xf32>
    %c0_145 = arith.constant 0 : index
    %c0_146 = arith.constant 0 : index
    %237 = vector.load %arg13[%c0_145, %c0_146] : memref<8x32xf32, #tpu.memory_space<vmem>>, vector<8x32xf32>
    tpu.vector_store %arg13[%c0_145, %c0_146], %234 {strides = array<i32>} : memref<8x32xf32, #tpu.memory_space<vmem>>, vector<8x32xf32>,
    %c0_147 = arith.constant 0 : index
    %c0_148 = arith.constant 0 : index
    %238 = vector.load %arg12[%c0_147, %c0_148] : memref<8x32xf32, #tpu.memory_space<vmem>>, vector<8x32xf32>
    tpu.vector_store %arg12[%c0_147, %c0_148], %236 {strides = array<i32>} : memref<8x32xf32, #tpu.memory_space<vmem>>, vector<8x32xf32>,
    %c0_149 = arith.constant 0 : index
    %c0_150 = arith.constant 0 : index
    %239 = vector.load %arg12[%c0_149, %c0_150] : memref<8x32xf32, #tpu.memory_space<vmem>>, vector<8x32xf32>
    %c0_151 = arith.constant 0 : index
    %c0_152 = arith.constant 0 : index
    %240 = vector.load %arg13[%c0_151, %c0_152] : memref<8x32xf32, #tpu.memory_space<vmem>>, vector<8x32xf32>
    %cst_153 = arith.constant dense<0.000000e+00> : vector<8x128xf32>
    %241 = tpu.matmul %239, %215, %cst_153 {dimension_numbers = #tpu.dot_dimension_numbers<[1], [0], [0], [1], [0, 0, 1, 1], [], []>} : vector<8x32xf32>, vector<32x128xf32>, vector<8x128xf32> -> vector<8x128xf32>
    %c8_154 = arith.constant 8 : index
    %c0_155 = arith.constant 0 : index
    %242 = vector.load %arg10[%c8_154, %c0_155] : memref<64x128xf32, #tpu.memory_space<vmem>>, vector<8x128xf32>
    %243 = arith.addf %241, %242 : vector<8x128xf32>
    %244 = vector.extract_strided_slice %243 {offsets = [0, 0], sizes = [8, 96], strides = [1, 1]} : vector<8x128xf32> to vector<8x96xf32>
    %245 = arith.negf %244 : vector<8x96xf32>
    %246 = math.exp %245 : vector<8x96xf32>
    %cst_156 = arith.constant 1.000000e+00 : f32
    %247 = vector.broadcast %cst_156 : f32 to vector<8x96xf32>
    %248 = arith.addf %247, %246 : vector<8x96xf32>
    %249 = arith.divf %247, %248 : vector<8x96xf32>
    %250 = vector.extract_strided_slice %243 {offsets = [0, 96], sizes = [8, 32], strides = [1, 1]} : vector<8x128xf32> to vector<8x32xf32>
    %251 = math.tanh %250 : vector<8x32xf32>
    %252 = vector.extract_strided_slice %249 {offsets = [0, 0], sizes = [8, 32], strides = [1, 1]} : vector<8x96xf32> to vector<8x32xf32>
    %253 = vector.extract_strided_slice %249 {offsets = [0, 32], sizes = [8, 32], strides = [1, 1]} : vector<8x96xf32> to vector<8x32xf32>
    %254 = vector.extract_strided_slice %249 {offsets = [0, 64], sizes = [8, 32], strides = [1, 1]} : vector<8x96xf32> to vector<8x32xf32>
    %255 = arith.mulf %253, %240 : vector<8x32xf32>
    %256 = arith.mulf %252, %251 : vector<8x32xf32>
    %257 = arith.addf %255, %256 : vector<8x32xf32>
    %258 = math.tanh %257 : vector<8x32xf32>
    %259 = arith.mulf %254, %258 : vector<8x32xf32>
    %c0_157 = arith.constant 0 : index
    %c0_158 = arith.constant 0 : index
    %260 = vector.load %arg13[%c0_157, %c0_158] : memref<8x32xf32, #tpu.memory_space<vmem>>, vector<8x32xf32>
    tpu.vector_store %arg13[%c0_157, %c0_158], %257 {strides = array<i32>} : memref<8x32xf32, #tpu.memory_space<vmem>>, vector<8x32xf32>,
    %c0_159 = arith.constant 0 : index
    %c0_160 = arith.constant 0 : index
    %261 = vector.load %arg12[%c0_159, %c0_160] : memref<8x32xf32, #tpu.memory_space<vmem>>, vector<8x32xf32>
    tpu.vector_store %arg12[%c0_159, %c0_160], %259 {strides = array<i32>} : memref<8x32xf32, #tpu.memory_space<vmem>>, vector<8x32xf32>,
    %c0_161 = arith.constant 0 : index
    %c0_162 = arith.constant 0 : index
    %262 = vector.load %arg12[%c0_161, %c0_162] : memref<8x32xf32, #tpu.memory_space<vmem>>, vector<8x32xf32>
    %c0_163 = arith.constant 0 : index
    %c0_164 = arith.constant 0 : index
    %263 = vector.load %arg13[%c0_163, %c0_164] : memref<8x32xf32, #tpu.memory_space<vmem>>, vector<8x32xf32>
    %cst_165 = arith.constant dense<0.000000e+00> : vector<8x128xf32>
    %264 = tpu.matmul %262, %215, %cst_165 {dimension_numbers = #tpu.dot_dimension_numbers<[1], [0], [0], [1], [0, 0, 1, 1], [], []>} : vector<8x32xf32>, vector<32x128xf32>, vector<8x128xf32> -> vector<8x128xf32>
    %c16_166 = arith.constant 16 : index
    %c0_167 = arith.constant 0 : index
    %265 = vector.load %arg10[%c16_166, %c0_167] : memref<64x128xf32, #tpu.memory_space<vmem>>, vector<8x128xf32>
    %266 = arith.addf %264, %265 : vector<8x128xf32>
    %267 = vector.extract_strided_slice %266 {offsets = [0, 0], sizes = [8, 96], strides = [1, 1]} : vector<8x128xf32> to vector<8x96xf32>
    %268 = arith.negf %267 : vector<8x96xf32>
    %269 = math.exp %268 : vector<8x96xf32>
    %cst_168 = arith.constant 1.000000e+00 : f32
    %270 = vector.broadcast %cst_168 : f32 to vector<8x96xf32>
    %271 = arith.addf %270, %269 : vector<8x96xf32>
    %272 = arith.divf %270, %271 : vector<8x96xf32>
    %273 = vector.extract_strided_slice %266 {offsets = [0, 96], sizes = [8, 32], strides = [1, 1]} : vector<8x128xf32> to vector<8x32xf32>
    %274 = math.tanh %273 : vector<8x32xf32>
    %275 = vector.extract_strided_slice %272 {offsets = [0, 0], sizes = [8, 32], strides = [1, 1]} : vector<8x96xf32> to vector<8x32xf32>
    %276 = vector.extract_strided_slice %272 {offsets = [0, 32], sizes = [8, 32], strides = [1, 1]} : vector<8x96xf32> to vector<8x32xf32>
    %277 = vector.extract_strided_slice %272 {offsets = [0, 64], sizes = [8, 32], strides = [1, 1]} : vector<8x96xf32> to vector<8x32xf32>
    %278 = arith.mulf %276, %263 : vector<8x32xf32>
    %279 = arith.mulf %275, %274 : vector<8x32xf32>
    %280 = arith.addf %278, %279 : vector<8x32xf32>
    %281 = math.tanh %280 : vector<8x32xf32>
    %282 = arith.mulf %277, %281 : vector<8x32xf32>
    %c0_169 = arith.constant 0 : index
    %c0_170 = arith.constant 0 : index
    %283 = vector.load %arg13[%c0_169, %c0_170] : memref<8x32xf32, #tpu.memory_space<vmem>>, vector<8x32xf32>
    tpu.vector_store %arg13[%c0_169, %c0_170], %280 {strides = array<i32>} : memref<8x32xf32, #tpu.memory_space<vmem>>, vector<8x32xf32>,
    %c0_171 = arith.constant 0 : index
    %c0_172 = arith.constant 0 : index
    %284 = vector.load %arg12[%c0_171, %c0_172] : memref<8x32xf32, #tpu.memory_space<vmem>>, vector<8x32xf32>
    tpu.vector_store %arg12[%c0_171, %c0_172], %282 {strides = array<i32>} : memref<8x32xf32, #tpu.memory_space<vmem>>, vector<8x32xf32>,
    %c0_173 = arith.constant 0 : index
    %c0_174 = arith.constant 0 : index
    %285 = vector.load %arg12[%c0_173, %c0_174] : memref<8x32xf32, #tpu.memory_space<vmem>>, vector<8x32xf32>
    %c0_175 = arith.constant 0 : index
    %c0_176 = arith.constant 0 : index
    %286 = vector.load %arg13[%c0_175, %c0_176] : memref<8x32xf32, #tpu.memory_space<vmem>>, vector<8x32xf32>
    %cst_177 = arith.constant dense<0.000000e+00> : vector<8x128xf32>
    %287 = tpu.matmul %285, %215, %cst_177 {dimension_numbers = #tpu.dot_dimension_numbers<[1], [0], [0], [1], [0, 0, 1, 1], [], []>} : vector<8x32xf32>, vector<32x128xf32>, vector<8x128xf32> -> vector<8x128xf32>
    %c24_178 = arith.constant 24 : index
    %c0_179 = arith.constant 0 : index
    %288 = vector.load %arg10[%c24_178, %c0_179] : memref<64x128xf32, #tpu.memory_space<vmem>>, vector<8x128xf32>
    %289 = arith.addf %287, %288 : vector<8x128xf32>
    %290 = vector.extract_strided_slice %289 {offsets = [0, 0], sizes = [8, 96], strides = [1, 1]} : vector<8x128xf32> to vector<8x96xf32>
    %291 = arith.negf %290 : vector<8x96xf32>
    %292 = math.exp %291 : vector<8x96xf32>
    %cst_180 = arith.constant 1.000000e+00 : f32
    %293 = vector.broadcast %cst_180 : f32 to vector<8x96xf32>
    %294 = arith.addf %293, %292 : vector<8x96xf32>
    %295 = arith.divf %293, %294 : vector<8x96xf32>
    %296 = vector.extract_strided_slice %289 {offsets = [0, 96], sizes = [8, 32], strides = [1, 1]} : vector<8x128xf32> to vector<8x32xf32>
    %297 = math.tanh %296 : vector<8x32xf32>
    %298 = vector.extract_strided_slice %295 {offsets = [0, 0], sizes = [8, 32], strides = [1, 1]} : vector<8x96xf32> to vector<8x32xf32>
    %299 = vector.extract_strided_slice %295 {offsets = [0, 32], sizes = [8, 32], strides = [1, 1]} : vector<8x96xf32> to vector<8x32xf32>
    %300 = vector.extract_strided_slice %295 {offsets = [0, 64], sizes = [8, 32], strides = [1, 1]} : vector<8x96xf32> to vector<8x32xf32>
    %301 = arith.mulf %299, %286 : vector<8x32xf32>
    %302 = arith.mulf %298, %297 : vector<8x32xf32>
    %303 = arith.addf %301, %302 : vector<8x32xf32>
    %304 = math.tanh %303 : vector<8x32xf32>
    %305 = arith.mulf %300, %304 : vector<8x32xf32>
    %c0_181 = arith.constant 0 : index
    %c0_182 = arith.constant 0 : index
    %306 = vector.load %arg13[%c0_181, %c0_182] : memref<8x32xf32, #tpu.memory_space<vmem>>, vector<8x32xf32>
    tpu.vector_store %arg13[%c0_181, %c0_182], %303 {strides = array<i32>} : memref<8x32xf32, #tpu.memory_space<vmem>>, vector<8x32xf32>,
    %c0_183 = arith.constant 0 : index
    %c0_184 = arith.constant 0 : index
    %307 = vector.load %arg12[%c0_183, %c0_184] : memref<8x32xf32, #tpu.memory_space<vmem>>, vector<8x32xf32>
    tpu.vector_store %arg12[%c0_183, %c0_184], %305 {strides = array<i32>} : memref<8x32xf32, #tpu.memory_space<vmem>>, vector<8x32xf32>,
    %c0_185 = arith.constant 0 : index
    %c0_186 = arith.constant 0 : index
    %308 = vector.load %arg12[%c0_185, %c0_186] : memref<8x32xf32, #tpu.memory_space<vmem>>, vector<8x32xf32>
    %c0_187 = arith.constant 0 : index
    %c0_188 = arith.constant 0 : index
    %309 = vector.load %arg13[%c0_187, %c0_188] : memref<8x32xf32, #tpu.memory_space<vmem>>, vector<8x32xf32>
    %cst_189 = arith.constant dense<0.000000e+00> : vector<8x128xf32>
    %310 = tpu.matmul %308, %215, %cst_189 {dimension_numbers = #tpu.dot_dimension_numbers<[1], [0], [0], [1], [0, 0, 1, 1], [], []>} : vector<8x32xf32>, vector<32x128xf32>, vector<8x128xf32> -> vector<8x128xf32>
    %c32_190 = arith.constant 32 : index
    %c0_191 = arith.constant 0 : index
    %311 = vector.load %arg10[%c32_190, %c0_191] : memref<64x128xf32, #tpu.memory_space<vmem>>, vector<8x128xf32>
    %312 = arith.addf %310, %311 : vector<8x128xf32>
    %313 = vector.extract_strided_slice %312 {offsets = [0, 0], sizes = [8, 96], strides = [1, 1]} : vector<8x128xf32> to vector<8x96xf32>
    %314 = arith.negf %313 : vector<8x96xf32>
    %315 = math.exp %314 : vector<8x96xf32>
    %cst_192 = arith.constant 1.000000e+00 : f32
    %316 = vector.broadcast %cst_192 : f32 to vector<8x96xf32>
    %317 = arith.addf %316, %315 : vector<8x96xf32>
    %318 = arith.divf %316, %317 : vector<8x96xf32>
    %319 = vector.extract_strided_slice %312 {offsets = [0, 96], sizes = [8, 32], strides = [1, 1]} : vector<8x128xf32> to vector<8x32xf32>
    %320 = math.tanh %319 : vector<8x32xf32>
    %321 = vector.extract_strided_slice %318 {offsets = [0, 0], sizes = [8, 32], strides = [1, 1]} : vector<8x96xf32> to vector<8x32xf32>
    %322 = vector.extract_strided_slice %318 {offsets = [0, 32], sizes = [8, 32], strides = [1, 1]} : vector<8x96xf32> to vector<8x32xf32>
    %323 = vector.extract_strided_slice %318 {offsets = [0, 64], sizes = [8, 32], strides = [1, 1]} : vector<8x96xf32> to vector<8x32xf32>
    %324 = arith.mulf %322, %309 : vector<8x32xf32>
    %325 = arith.mulf %321, %320 : vector<8x32xf32>
    %326 = arith.addf %324, %325 : vector<8x32xf32>
    %327 = math.tanh %326 : vector<8x32xf32>
    %328 = arith.mulf %323, %327 : vector<8x32xf32>
    %c0_193 = arith.constant 0 : index
    %c0_194 = arith.constant 0 : index
    %329 = vector.load %arg13[%c0_193, %c0_194] : memref<8x32xf32, #tpu.memory_space<vmem>>, vector<8x32xf32>
    tpu.vector_store %arg13[%c0_193, %c0_194], %326 {strides = array<i32>} : memref<8x32xf32, #tpu.memory_space<vmem>>, vector<8x32xf32>,
    %c0_195 = arith.constant 0 : index
    %c0_196 = arith.constant 0 : index
    %330 = vector.load %arg12[%c0_195, %c0_196] : memref<8x32xf32, #tpu.memory_space<vmem>>, vector<8x32xf32>
    tpu.vector_store %arg12[%c0_195, %c0_196], %328 {strides = array<i32>} : memref<8x32xf32, #tpu.memory_space<vmem>>, vector<8x32xf32>,
    %c0_197 = arith.constant 0 : index
    %c0_198 = arith.constant 0 : index
    %331 = vector.load %arg12[%c0_197, %c0_198] : memref<8x32xf32, #tpu.memory_space<vmem>>, vector<8x32xf32>
    %c0_199 = arith.constant 0 : index
    %c0_200 = arith.constant 0 : index
    %332 = vector.load %arg13[%c0_199, %c0_200] : memref<8x32xf32, #tpu.memory_space<vmem>>, vector<8x32xf32>
    %cst_201 = arith.constant dense<0.000000e+00> : vector<8x128xf32>
    %333 = tpu.matmul %331, %215, %cst_201 {dimension_numbers = #tpu.dot_dimension_numbers<[1], [0], [0], [1], [0, 0, 1, 1], [], []>} : vector<8x32xf32>, vector<32x128xf32>, vector<8x128xf32> -> vector<8x128xf32>
    %c40_202 = arith.constant 40 : index
    %c0_203 = arith.constant 0 : index
    %334 = vector.load %arg10[%c40_202, %c0_203] : memref<64x128xf32, #tpu.memory_space<vmem>>, vector<8x128xf32>
    %335 = arith.addf %333, %334 : vector<8x128xf32>
    %336 = vector.extract_strided_slice %335 {offsets = [0, 0], sizes = [8, 96], strides = [1, 1]} : vector<8x128xf32> to vector<8x96xf32>
    %337 = arith.negf %336 : vector<8x96xf32>
    %338 = math.exp %337 : vector<8x96xf32>
    %cst_204 = arith.constant 1.000000e+00 : f32
    %339 = vector.broadcast %cst_204 : f32 to vector<8x96xf32>
    %340 = arith.addf %339, %338 : vector<8x96xf32>
    %341 = arith.divf %339, %340 : vector<8x96xf32>
    %342 = vector.extract_strided_slice %335 {offsets = [0, 96], sizes = [8, 32], strides = [1, 1]} : vector<8x128xf32> to vector<8x32xf32>
    %343 = math.tanh %342 : vector<8x32xf32>
    %344 = vector.extract_strided_slice %341 {offsets = [0, 0], sizes = [8, 32], strides = [1, 1]} : vector<8x96xf32> to vector<8x32xf32>
    %345 = vector.extract_strided_slice %341 {offsets = [0, 32], sizes = [8, 32], strides = [1, 1]} : vector<8x96xf32> to vector<8x32xf32>
    %346 = vector.extract_strided_slice %341 {offsets = [0, 64], sizes = [8, 32], strides = [1, 1]} : vector<8x96xf32> to vector<8x32xf32>
    %347 = arith.mulf %345, %332 : vector<8x32xf32>
    %348 = arith.mulf %344, %343 : vector<8x32xf32>
    %349 = arith.addf %347, %348 : vector<8x32xf32>
    %350 = math.tanh %349 : vector<8x32xf32>
    %351 = arith.mulf %346, %350 : vector<8x32xf32>
    %c0_205 = arith.constant 0 : index
    %c0_206 = arith.constant 0 : index
    %352 = vector.load %arg13[%c0_205, %c0_206] : memref<8x32xf32, #tpu.memory_space<vmem>>, vector<8x32xf32>
    tpu.vector_store %arg13[%c0_205, %c0_206], %349 {strides = array<i32>} : memref<8x32xf32, #tpu.memory_space<vmem>>, vector<8x32xf32>,
    %c0_207 = arith.constant 0 : index
    %c0_208 = arith.constant 0 : index
    %353 = vector.load %arg12[%c0_207, %c0_208] : memref<8x32xf32, #tpu.memory_space<vmem>>, vector<8x32xf32>
    tpu.vector_store %arg12[%c0_207, %c0_208], %351 {strides = array<i32>} : memref<8x32xf32, #tpu.memory_space<vmem>>, vector<8x32xf32>,
    %c0_209 = arith.constant 0 : index
    %c0_210 = arith.constant 0 : index
    %354 = vector.load %arg12[%c0_209, %c0_210] : memref<8x32xf32, #tpu.memory_space<vmem>>, vector<8x32xf32>
    %c0_211 = arith.constant 0 : index
    %c0_212 = arith.constant 0 : index
    %355 = vector.load %arg13[%c0_211, %c0_212] : memref<8x32xf32, #tpu.memory_space<vmem>>, vector<8x32xf32>
    %cst_213 = arith.constant dense<0.000000e+00> : vector<8x128xf32>
    %356 = tpu.matmul %354, %215, %cst_213 {dimension_numbers = #tpu.dot_dimension_numbers<[1], [0], [0], [1], [0, 0, 1, 1], [], []>} : vector<8x32xf32>, vector<32x128xf32>, vector<8x128xf32> -> vector<8x128xf32>
    %c48_214 = arith.constant 48 : index
    %c0_215 = arith.constant 0 : index
    %357 = vector.load %arg10[%c48_214, %c0_215] : memref<64x128xf32, #tpu.memory_space<vmem>>, vector<8x128xf32>
    %358 = arith.addf %356, %357 : vector<8x128xf32>
    %359 = vector.extract_strided_slice %358 {offsets = [0, 0], sizes = [8, 96], strides = [1, 1]} : vector<8x128xf32> to vector<8x96xf32>
    %360 = arith.negf %359 : vector<8x96xf32>
    %361 = math.exp %360 : vector<8x96xf32>
    %cst_216 = arith.constant 1.000000e+00 : f32
    %362 = vector.broadcast %cst_216 : f32 to vector<8x96xf32>
    %363 = arith.addf %362, %361 : vector<8x96xf32>
    %364 = arith.divf %362, %363 : vector<8x96xf32>
    %365 = vector.extract_strided_slice %358 {offsets = [0, 96], sizes = [8, 32], strides = [1, 1]} : vector<8x128xf32> to vector<8x32xf32>
    %366 = math.tanh %365 : vector<8x32xf32>
    %367 = vector.extract_strided_slice %364 {offsets = [0, 0], sizes = [8, 32], strides = [1, 1]} : vector<8x96xf32> to vector<8x32xf32>
    %368 = vector.extract_strided_slice %364 {offsets = [0, 32], sizes = [8, 32], strides = [1, 1]} : vector<8x96xf32> to vector<8x32xf32>
    %369 = vector.extract_strided_slice %364 {offsets = [0, 64], sizes = [8, 32], strides = [1, 1]} : vector<8x96xf32> to vector<8x32xf32>
    %370 = arith.mulf %368, %355 : vector<8x32xf32>
    %371 = arith.mulf %367, %366 : vector<8x32xf32>
    %372 = arith.addf %370, %371 : vector<8x32xf32>
    %373 = math.tanh %372 : vector<8x32xf32>
    %374 = arith.mulf %369, %373 : vector<8x32xf32>
    %c0_217 = arith.constant 0 : index
    %c0_218 = arith.constant 0 : index
    %375 = vector.load %arg13[%c0_217, %c0_218] : memref<8x32xf32, #tpu.memory_space<vmem>>, vector<8x32xf32>
    tpu.vector_store %arg13[%c0_217, %c0_218], %372 {strides = array<i32>} : memref<8x32xf32, #tpu.memory_space<vmem>>, vector<8x32xf32>,
    %c0_219 = arith.constant 0 : index
    %c0_220 = arith.constant 0 : index
    %376 = vector.load %arg12[%c0_219, %c0_220] : memref<8x32xf32, #tpu.memory_space<vmem>>, vector<8x32xf32>
    tpu.vector_store %arg12[%c0_219, %c0_220], %374 {strides = array<i32>} : memref<8x32xf32, #tpu.memory_space<vmem>>, vector<8x32xf32>,
    %c0_221 = arith.constant 0 : index
    %c0_222 = arith.constant 0 : index
    %377 = vector.load %arg12[%c0_221, %c0_222] : memref<8x32xf32, #tpu.memory_space<vmem>>, vector<8x32xf32>
    %c0_223 = arith.constant 0 : index
    %c0_224 = arith.constant 0 : index
    %378 = vector.load %arg13[%c0_223, %c0_224] : memref<8x32xf32, #tpu.memory_space<vmem>>, vector<8x32xf32>
    %cst_225 = arith.constant dense<0.000000e+00> : vector<8x128xf32>
    %379 = tpu.matmul %377, %215, %cst_225 {dimension_numbers = #tpu.dot_dimension_numbers<[1], [0], [0], [1], [0, 0, 1, 1], [], []>} : vector<8x32xf32>, vector<32x128xf32>, vector<8x128xf32> -> vector<8x128xf32>
    %c56_226 = arith.constant 56 : index
    %c0_227 = arith.constant 0 : index
    %380 = vector.load %arg10[%c56_226, %c0_227] : memref<64x128xf32, #tpu.memory_space<vmem>>, vector<8x128xf32>
    %381 = arith.addf %379, %380 : vector<8x128xf32>
    %382 = vector.extract_strided_slice %381 {offsets = [0, 0], sizes = [8, 96], strides = [1, 1]} : vector<8x128xf32> to vector<8x96xf32>
    %383 = arith.negf %382 : vector<8x96xf32>
    %384 = math.exp %383 : vector<8x96xf32>
    %cst_228 = arith.constant 1.000000e+00 : f32
    %385 = vector.broadcast %cst_228 : f32 to vector<8x96xf32>
    %386 = arith.addf %385, %384 : vector<8x96xf32>
    %387 = arith.divf %385, %386 : vector<8x96xf32>
    %388 = vector.extract_strided_slice %381 {offsets = [0, 96], sizes = [8, 32], strides = [1, 1]} : vector<8x128xf32> to vector<8x32xf32>
    %389 = math.tanh %388 : vector<8x32xf32>
    %390 = vector.extract_strided_slice %387 {offsets = [0, 0], sizes = [8, 32], strides = [1, 1]} : vector<8x96xf32> to vector<8x32xf32>
    %391 = vector.extract_strided_slice %387 {offsets = [0, 32], sizes = [8, 32], strides = [1, 1]} : vector<8x96xf32> to vector<8x32xf32>
    %392 = vector.extract_strided_slice %387 {offsets = [0, 64], sizes = [8, 32], strides = [1, 1]} : vector<8x96xf32> to vector<8x32xf32>
    %393 = arith.mulf %391, %378 : vector<8x32xf32>
    %394 = arith.mulf %390, %389 : vector<8x32xf32>
    %395 = arith.addf %393, %394 : vector<8x32xf32>
    %396 = math.tanh %395 : vector<8x32xf32>
    %397 = arith.mulf %392, %396 : vector<8x32xf32>
    %c0_229 = arith.constant 0 : index
    %c0_230 = arith.constant 0 : index
    %398 = vector.load %arg13[%c0_229, %c0_230] : memref<8x32xf32, #tpu.memory_space<vmem>>, vector<8x32xf32>
    tpu.vector_store %arg13[%c0_229, %c0_230], %395 {strides = array<i32>} : memref<8x32xf32, #tpu.memory_space<vmem>>, vector<8x32xf32>,
    %c0_231 = arith.constant 0 : index
    %c0_232 = arith.constant 0 : index
    %399 = vector.load %arg12[%c0_231, %c0_232] : memref<8x32xf32, #tpu.memory_space<vmem>>, vector<8x32xf32>
    tpu.vector_store %arg12[%c0_231, %c0_232], %397 {strides = array<i32>} : memref<8x32xf32, #tpu.memory_space<vmem>>, vector<8x32xf32>,
    %c0_233 = arith.constant 0 : index
    %c0_234 = arith.constant 0 : index
    %400 = vector.load %arg12[%c0_233, %c0_234] : memref<8x32xf32, #tpu.memory_space<vmem>>, vector<8x32xf32>
    %c0_235 = arith.constant 0 : index
    %c0_236 = arith.constant 0 : index
    %401 = vector.load %arg7[%c0_235, %c0_236] : memref<32x128xf32, #tpu.memory_space<vmem>>, vector<32x128xf32>
    %cst_237 = arith.constant dense<0.000000e+00> : vector<8x128xf32>
    %402 = tpu.matmul %400, %401, %cst_237 {dimension_numbers = #tpu.dot_dimension_numbers<[1], [0], [0], [1], [0, 0, 1, 1], [], []>} : vector<8x32xf32>, vector<32x128xf32>, vector<8x128xf32> -> vector<8x128xf32>
    %c0_238 = arith.constant 0 : index
    %c0_239 = arith.constant 0 : index
    %403 = vector.load %arg8[%c0_238, %c0_239] : memref<1x128xf32, #tpu.memory_space<vmem>>, vector<1x128xf32>
    %404 = vector.broadcast %403 : vector<1x128xf32> to vector<8x128xf32>
    %405 = arith.addf %402, %404 : vector<8x128xf32>
    %c0_240 = arith.constant 0 : index
    %c0_241 = arith.constant 0 : index
    %406 = vector.load %arg9[%c0_240, %c0_241] : memref<8x128xf32, #tpu.memory_space<vmem>>, vector<8x128xf32>
    tpu.vector_store %arg9[%c0_240, %c0_241], %405 {strides = array<i32>} : memref<8x128xf32, #tpu.memory_space<vmem>>, vector<8x128xf32>,
    return
  }
}

</mosaic_0001>

<llo_original>
// kernel: lstm0_forward.1
$region0: #{lstm0_forward.1}
  #allocation0 [shape = 'u32[]', space=smem, size = 0x4, offset = 0x4, fixed_abs, tag = 'smem constant byte address 0x4 - core index']
  #allocation1 [shape = 'u32[144,128]{1,0:T(1,128)}', space=vmem, size = 0x12000, scoped, tag = 'internal scratch']
  #allocation2 [shape = 'f32[64,128]{1,0:T(8,128)}', space=vmem, size = 0x8000, scoped, tag = 'scratch operand']
  #allocation3 [shape = 'f32[64,32]{1,0:T(8,128)}', space=vmem, size = 0x8000, scoped, tag = 'scratch operand']
  #allocation4 [shape = 'f32[8,32]{1,0:T(8,128)}', space=vmem, size = 0x1000, scoped, tag = 'scratch operand']
  #allocation5 [shape = 'f32[8,32]{1,0:T(8,128)}', space=vmem, size = 0x1000, scoped, tag = 'scratch operand']
  %s0 = inlined_call_operand.vmem [shape: f32[64,16], index: 0, kind: input, shape index: {}]
  %s1 = inlined_call_operand.vmem [shape: f32[16,128], index: 1, kind: input, shape index: {}]
  %s2 = inlined_call_operand.vmem [shape: f32[32,128], index: 2, kind: input, shape index: {}]
  %s3 = inlined_call_operand.vmem [shape: f32[1,128], index: 3, kind: input, shape index: {}]
  %s4 = inlined_call_operand.vmem [shape: f32[32,128], index: 4, kind: input, shape index: {}]
  %s5 = inlined_call_operand.vmem [shape: f32[32,128], index: 5, kind: input, shape index: {}]
  %s6 = inlined_call_operand.vmem [shape: f32[1,128], index: 6, kind: input, shape index: {}]
  %s7 = inlined_call_operand.vmem [shape: f32[32,128], index: 7, kind: input, shape index: {}]
  %s8 = inlined_call_operand.vmem [shape: f32[1,128], index: 8, kind: input, shape index: {}]
  %s9 = inlined_call_operand.vmem [shape: f32[8,128], index: 9, kind: output, shape index: {}]
  %s10 = sld [smem:[#allocation0]]
  $region46: #{lstm0_forward.1} parent=0
    _
  %s12 = ssub.s32 1, %s10
  %s13 = scalar_select 0, %s12, %s10
  // Predicated region
  $region2: #{lstm0_forward.1} parent=0 // pred_check
    _
  $region3: #{lstm0_forward.1} parent=0 // pred_check_branch
    %15 = sbr.rel (0) target = $region5
  $region4: #{lstm0_forward.1} parent=0 // pred_region
    _
  $region5: #{lstm0_forward.1} parent=0 // pred_fallthru
    _
  // Predicated region
  $region6: #{lstm0_forward.1} parent=0 // pred_check
    _
  $region7: #{lstm0_forward.1} parent=0 // pred_check_branch
    %17 = sbr.rel (0) target = $region9
  $region8: #{lstm0_forward.1} parent=0 // pred_region
    _
  $region9: #{lstm0_forward.1} parent=0 // pred_fallthru
    _
  // Predicated region
  $region10: #{lstm0_forward.1} parent=0 // pred_check
    _
  $region11: #{lstm0_forward.1} parent=0 // pred_check_branch
    %19 = sbr.rel (0) target = $region13
  $region12: #{lstm0_forward.1} parent=0 // pred_region
    _
  $region13: #{lstm0_forward.1} parent=0 // pred_fallthru
    _
  // Predicated region
  $region14: #{lstm0_forward.1} parent=0 // pred_check
    _
  $region15: #{lstm0_forward.1} parent=0 // pred_check_branch
    %21 = sbr.rel (0) target = $region17
  $region16: #{lstm0_forward.1} parent=0 // pred_region
    _
  $region17: #{lstm0_forward.1} parent=0 // pred_fallthru
    _
  // Predicated region
  $region18: #{lstm0_forward.1} parent=0 // pred_check
    _
  $region19: #{lstm0_forward.1} parent=0 // pred_check_branch
    %23 = sbr.rel (0) target = $region21
  $region20: #{lstm0_forward.1} parent=0 // pred_region
    _
  $region21: #{lstm0_forward.1} parent=0 // pred_fallthru
    _
  // Predicated region
  $region22: #{lstm0_forward.1} parent=0 // pred_check
    _
  $region23: #{lstm0_forward.1} parent=0 // pred_check_branch
    %25 = sbr.rel (0) target = $region25
  $region24: #{lstm0_forward.1} parent=0 // pred_region
    _
  $region25: #{lstm0_forward.1} parent=0 // pred_fallthru
    _
  // Predicated region
  $region26: #{lstm0_forward.1} parent=0 // pred_check
    _
  $region27: #{lstm0_forward.1} parent=0 // pred_check_branch
    %27 = sbr.rel (0) target = $region29
  $region28: #{lstm0_forward.1} parent=0 // pred_region
    _
  $region29: #{lstm0_forward.1} parent=0 // pred_fallthru
    _
  // Predicated region
  $region30: #{lstm0_forward.1} parent=0 // pred_check
    _
  $region31: #{lstm0_forward.1} parent=0 // pred_check_branch
    %29 = sbr.rel (0) target = $region33
  $region32: #{lstm0_forward.1} parent=0 // pred_region
    _
  $region33: #{lstm0_forward.1} parent=0 // pred_fallthru
    _
  // Predicated region
  $region34: #{lstm0_forward.1} parent=0 // pred_check
    _
  $region35: #{lstm0_forward.1} parent=0 // pred_check_branch
    %31 = sbr.rel (0) target = $region37
  $region36: #{lstm0_forward.1} parent=0 // pred_region
    _
  $region37: #{lstm0_forward.1} parent=0 // pred_fallthru
    _
  %v32 = vld [vmem:[%s0] sm:$0xff]
  %v33 = vld [vmem:[%s0 + $0x8] sm:$0xff]
  %v34 = vld [vmem:[%s0 + $0x10] sm:$0xff]
  %v35 = vld [vmem:[%s0 + $0x18] sm:$0xff]
  %v36 = vld [vmem:[%s0 + $0x20] sm:$0xff]
  %v37 = vld [vmem:[%s0 + $0x28] sm:$0xff]
  %v38 = vld [vmem:[%s0 + $0x30] sm:$0xff]
  %v39 = vld [vmem:[%s0 + $0x38] sm:$0xff]
  %v40 = vld [vmem:[%s1] sm:$0xff]
  %v41 = vld [vmem:[%s1 + $0x8] sm:$0xff]
  %v42 = vld [vmem:[%s3] sm:$0x1]
  %v44 = vlaneseq
  %v45 = vshrl.u32 %v44, 7
  %v46 = vsub.s32 0, %v45
  %v47 = vrot.slane %v42, %v46
  %vm49 = vcmask 130048
  %v51 = vsel %vm49, %v32, 0
  %v54 = vsel %vm49, %v33, 0
  %v57 = vsel %vm49, %v34, 0
  %v60 = vsel %vm49, %v35, 0
  %v63 = vsel %vm49, %v36, 0
  %v66 = vsel %vm49, %v37, 0
  %v69 = vsel %vm49, %v38, 0
  %v72 = vsel %vm49, %v39, 0
  %74 = vmatprep.subr.mxu0 0.0
  %75 = vmatpush1.msra.mxu0 %v40
  %76 = vmatprep.subr.mxu0 0.0
  %77 = vmatpush1.msra.mxu0 %v41
  %78 = vmatprep.subr.mxu0 0.0
  %79 = vmatpush1.msra.mxu0 0.0
  %80 = vmatprep.subr.mxu0 0.0
  %81 = vmatpush1.msra.mxu0 0.0
  %82 = vmatprep.subr.mxu0 0.0
  %83 = vmatpush1.msra.mxu0 0.0
  %84 = vmatprep.subr.mxu0 0.0
  %85 = vmatpush1.msra.mxu0 0.0
  %86 = vmatprep.subr.mxu0 0.0
  %87 = vmatpush1.msra.mxu0 0.0
  %88 = vmatprep.subr.mxu0 0.0
  %89 = vmatpush1.msra.mxu0 0.0
  %90 = vmatprep.subr.mxu0 0.0
  %91 = vmatpush1.msra.mxu0 0.0
  %92 = vmatprep.subr.mxu0 0.0
  %93 = vmatpush1.msra.mxu0 0.0
  %94 = vmatprep.subr.mxu0 0.0
  %95 = vmatpush1.msra.mxu0 0.0
  %96 = vmatprep.subr.mxu0 0.0
  %97 = vmatpush1.msra.mxu0 0.0
  %98 = vmatprep.subr.mxu0 0.0
  %99 = vmatpush1.msra.mxu0 0.0
  %100 = vmatprep.subr.mxu0 0.0
  %101 = vmatpush1.msra.mxu0 0.0
  %102 = vmatprep.subr.mxu0 0.0
  %103 = vmatpush1.msra.mxu0 0.0
  %104 = vmatprep.subr.mxu0 0.0
  %105 = vmatpush1.msra.mxu0 0.0
  %106 = vmatprep.subr.mxu0 0.0
  %107 = vmatpush1.msra.mxu0 0.0
  %108 = vmatprep.subr.mxu0 0.0
  %109 = vmatpush1.msra.mxu0 0.0
  %110 = vmatprep.subr.mxu0 0.0
  %111 = vmatpush1.msra.mxu0 0.0
  %112 = vmatprep.subr.mxu0 0.0
  %113 = vmatpush1.msra.mxu0 0.0
  %114 = vmatprep.subr.mxu0 0.0
  %115 = vmatpush1.msra.mxu0 0.0
  %116 = vmatprep.subr.mxu0 0.0
  %117 = vmatpush1.msra.mxu0 0.0
  %118 = vmatprep.subr.mxu0 0.0
  %119 = vmatpush1.msra.mxu0 0.0
  %120 = vmatprep.subr.mxu0 0.0
  %121 = vmatpush1.msra.mxu0 0.0
  %122 = vmatprep.subr.mxu0 0.0
  %123 = vmatpush1.msra.mxu0 0.0
  %124 = vmatprep.subr.mxu0 0.0
  %125 = vmatpush1.msra.mxu0 0.0
  %126 = vmatprep.subr.mxu0 0.0
  %127 = vmatpush1.msra.mxu0 0.0
  %128 = vmatprep.subr.mxu0 0.0
  %129 = vmatpush1.msra.mxu0 0.0
  %130 = vmatprep.subr.mxu0 0.0
  %131 = vmatpush1.msra.mxu0 0.0
  %132 = vmatprep.subr.mxu0 0.0
  %133 = vmatpush1.msra.mxu0 0.0
  %134 = vmatprep.subr.mxu0 0.0
  %135 = vmatpush1.msra.mxu0 0.0
  %136 = vmatprep.subr.mxu0 0.0
  %137 = vmatpush1.msra.mxu0 0.0
  %138 = vmatprep.mubr.f32.mxu0 0.0
  %139 = vmatmul.mubr.f32.gmra.mrb[0].mxu0 %v51
  %v140 = vpop.f32.mrb[0].mxu0
  %v141 = vadd.f32 %v47, %v140
  %v142 = vpop.f32.mrb[0].mxu0
  %143 = vmatprep.mubr.f32.mxu0 0.0
  %144 = vmatmul.mubr.f32.gmra.mrb[0].mxu0 %v54
  %v145 = vpop.f32.mrb[0].mxu0
  %v146 = vadd.f32 %v47, %v145
  %v147 = vpop.f32.mrb[0].mxu0
  %148 = vmatprep.mubr.f32.mxu0 0.0
  %149 = vmatmul.mubr.f32.gmra.mrb[0].mxu0 %v57
  %v150 = vpop.f32.mrb[0].mxu0
  %v151 = vadd.f32 %v47, %v150
  %v152 = vpop.f32.mrb[0].mxu0
  %153 = vmatprep.mubr.f32.mxu0 0.0
  %154 = vmatmul.mubr.f32.gmra.mrb[0].mxu0 %v60
  %v155 = vpop.f32.mrb[0].mxu0
  %v156 = vadd.f32 %v47, %v155
  %v157 = vpop.f32.mrb[0].mxu0
  %158 = vmatprep.mubr.f32.mxu0 0.0
  %159 = vmatmul.mubr.f32.gmra.mrb[0].mxu0 %v63
  %v160 = vpop.f32.mrb[0].mxu0
  %v161 = vadd.f32 %v47, %v160
  %v162 = vpop.f32.mrb[0].mxu0
  %163 = vmatprep.mubr.f32.mxu0 0.0
  %164 = vmatmul.mubr.f32.gmra.mrb[0].mxu0 %v66
  %v165 = vpop.f32.mrb[0].mxu0
  %v166 = vadd.f32 %v47, %v165
  %v167 = vpop.f32.mrb[0].mxu0
  %168 = vmatprep.mubr.f32.mxu0 0.0
  %169 = vmatmul.mubr.f32.gmra.mrb[0].mxu0 %v69
  %v170 = vpop.f32.mrb[0].mxu0
  %v171 = vadd.f32 %v47, %v170
  %v172 = vpop.f32.mrb[0].mxu0
  %173 = vmatprep.mubr.f32.mxu0 0.0
  %174 = vmatmul.mubr.f32.gmra.mrb[0].mxu0 %v72
  %v175 = vpop.f32.mrb[0].mxu0
  %v176 = vadd.f32 %v47, %v175
  %v177 = vpop.f32.mrb[0].mxu0
  %178 = vdwg.mxu0
  %179 = vst [vmem:[#allocation2] sm:$0xff] %v141
  %180 = vst [vmem:[#allocation2 + $0x8] sm:$0xff] %v146
  %181 = vst [vmem:[#allocation2 + $0x10] sm:$0xff] %v151
  %182 = vst [vmem:[#allocation2 + $0x18] sm:$0xff] %v156
  %183 = vst [vmem:[#allocation2 + $0x20] sm:$0xff] %v161
  %184 = vst [vmem:[#allocation2 + $0x28] sm:$0xff] %v166
  %185 = vst [vmem:[#allocation2 + $0x30] sm:$0xff] %v171
  %186 = vst [vmem:[#allocation2 + $0x38] sm:$0xff] %v176
  %vm187 = vcmask 261120
  %188 = vst.msk [vmem:[#allocation4] sm:$0xff] %vm187, 0.0
  %189 = vst.msk [vmem:[#allocation5] sm:$0xff] %vm187, 0.0
  %v190 = vld [vmem:[%s2] sm:$0xff]
  %v191 = vld [vmem:[%s2 + $0x8] sm:$0xff]
  %v192 = vld [vmem:[%s2 + $0x10] sm:$0xff]
  %v193 = vld [vmem:[%s2 + $0x18] sm:$0xff]
  %v194 = vld [vmem:[#allocation4] sm:$0xff]
  %v195 = vld [vmem:[#allocation5] sm:$0xff]
  %v196 = vld [vmem:[#allocation2] sm:$0xff]
  %v198 = vsel %vm187, %v194, 0
  %200 = vmatprep.subr.mxu0 0.0
  %201 = vmatpush1.msra.mxu0 %v190
  %202 = vmatprep.subr.mxu0 0.0
  %203 = vmatpush1.msra.mxu0 %v191
  %204 = vmatprep.subr.mxu0 0.0
  %205 = vmatpush1.msra.mxu0 %v192
  %206 = vmatprep.subr.mxu0 0.0
  %207 = vmatpush1.msra.mxu0 %v193
  %208 = vmatprep.subr.mxu0 0.0
  %209 = vmatpush1.msra.mxu0 0.0
  %210 = vmatprep.subr.mxu0 0.0
  %211 = vmatpush1.msra.mxu0 0.0
  %212 = vmatprep.subr.mxu0 0.0
  %213 = vmatpush1.msra.mxu0 0.0
  %214 = vmatprep.subr.mxu0 0.0
  %215 = vmatpush1.msra.mxu0 0.0
  %216 = vmatprep.subr.mxu0 0.0
  %217 = vmatpush1.msra.mxu0 0.0
  %218 = vmatprep.subr.mxu0 0.0
  %219 = vmatpush1.msra.mxu0 0.0
  %220 = vmatprep.subr.mxu0 0.0
  %221 = vmatpush1.msra.mxu0 0.0
  %222 = vmatprep.subr.mxu0 0.0
  %223 = vmatpush1.msra.mxu0 0.0
  %224 = vmatprep.subr.mxu0 0.0
  %225 = vmatpush1.msra.mxu0 0.0
  %226 = vmatprep.subr.mxu0 0.0
  %227 = vmatpush1.msra.mxu0 0.0
  %228 = vmatprep.subr.mxu0 0.0
  %229 = vmatpush1.msra.mxu0 0.0
  %230 = vmatprep.subr.mxu0 0.0
  %231 = vmatpush1.msra.mxu0 0.0
  %232 = vmatprep.subr.mxu0 0.0
  %233 = vmatpush1.msra.mxu0 0.0
  %234 = vmatprep.subr.mxu0 0.0
  %235 = vmatpush1.msra.mxu0 0.0
  %236 = vmatprep.subr.mxu0 0.0
  %237 = vmatpush1.msra.mxu0 0.0
  %238 = vmatprep.subr.mxu0 0.0
  %239 = vmatpush1.msra.mxu0 0.0
  %240 = vmatprep.subr.mxu0 0.0
  %241 = vmatpush1.msra.mxu0 0.0
  %242 = vmatprep.subr.mxu0 0.0
  %243 = vmatpush1.msra.mxu0 0.0
  %244 = vmatprep.subr.mxu0 0.0
  %245 = vmatpush1.msra.mxu0 0.0
  %246 = vmatprep.subr.mxu0 0.0
  %247 = vmatpush1.msra.mxu0 0.0
  %248 = vmatprep.subr.mxu0 0.0
  %249 = vmatpush1.msra.mxu0 0.0
  %250 = vmatprep.subr.mxu0 0.0
  %251 = vmatpush1.msra.mxu0 0.0
  %252 = vmatprep.subr.mxu0 0.0
  %253 = vmatpush1.msra.mxu0 0.0
  %254 = vmatprep.subr.mxu0 0.0
  %255 = vmatpush1.msra.mxu0 0.0
  %256 = vmatprep.subr.mxu0 0.0
  %257 = vmatpush1.msra.mxu0 0.0
  %258 = vmatprep.subr.mxu0 0.0
  %259 = vmatpush1.msra.mxu0 0.0
  %260 = vmatprep.subr.mxu0 0.0
  %261 = vmatpush1.msra.mxu0 0.0
  %262 = vmatprep.subr.mxu0 0.0
  %263 = vmatpush1.msra.mxu0 0.0
  %264 = vmatprep.mubr.f32.mxu0 0.0
  %265 = vmatmul.mubr.f32.gmra.mrb[0].mxu0 %v198
  %v266 = vpop.f32.mrb[0].mxu0
  %v267 = vadd.f32 %v196, %v266
  %v268 = vpop.f32.mrb[0].mxu0
  %269 = vdwg.mxu0
  %v270 = vxor.u32 %v267, 2147483648
  %v271 = vmul.f32 %v270, 1.442695
  %v272 = vpow.pop %v271
  %v273 = vadd.f32 %v272, 1.0
  %v274 = vrcp.pop %v273
  %v275 = vmul.f32 1.0, %v274
  %v276 = vtanh.pop %v267
  %278 = vrot.lane.b32.xlu0 %v195, 32
  %v279 = vpop.permute.xlu0 %278
  %v281 = vmul.f32 %v275, %v279
  %283 = vrot.lane.b32.xlu0 %v276, 32
  %v284 = vpop.permute.xlu0 %283
  %v286 = vmul.f32 %v275, %v284
  %288 = vrot.lane.b32.xlu0 %v286, 32
  %v289 = vpop.permute.xlu0 %288
  %v291 = vadd.f32 %v281, %v289
  %v292 = vtanh.pop %v291
  %294 = vrot.lane.b32.xlu0 %v292, 32
  %v295 = vpop.permute.xlu0 %294
  %v297 = vmul.f32 %v275, %v295
  %299 = vrot.lane.b32.xlu0 %v291, 96
  %v300 = vpop.permute.xlu0 %299
  %302 = vst.msk [vmem:[#allocation5] sm:$0xff] %vm187, %v300
  %304 = vrot.lane.b32.xlu0 %v297, 64
  %v305 = vpop.permute.xlu0 %304
  %307 = vst.msk [vmem:[#allocation4] sm:$0xff] %vm187, %v305
  %308 = vst.msk [vmem:[#allocation3] sm:$0xff] %vm187, %v305
  %v309 = vld [vmem:[#allocation4] sm:$0xff]
  %v310 = vld [vmem:[#allocation5] sm:$0xff]
  %v311 = vld [vmem:[#allocation2 + $0x8] sm:$0xff]
  %v313 = vsel %vm187, %v309, 0
  %315 = vmatprep.subr.mxu0 0.0
  %316 = vmatpush1.msra.mxu0 %v190
  %317 = vmatprep.subr.mxu0 0.0
  %318 = vmatpush1.msra.mxu0 %v191
  %319 = vmatprep.subr.mxu0 0.0
  %320 = vmatpush1.msra.mxu0 %v192
  %321 = vmatprep.subr.mxu0 0.0
  %322 = vmatpush1.msra.mxu0 %v193
  %323 = vmatprep.subr.mxu0 0.0
  %324 = vmatpush1.msra.mxu0 0.0
  %325 = vmatprep.subr.mxu0 0.0
  %326 = vmatpush1.msra.mxu0 0.0
  %327 = vmatprep.subr.mxu0 0.0
  %328 = vmatpush1.msra.mxu0 0.0
  %329 = vmatprep.subr.mxu0 0.0
  %330 = vmatpush1.msra.mxu0 0.0
  %331 = vmatprep.subr.mxu0 0.0
  %332 = vmatpush1.msra.mxu0 0.0
  %333 = vmatprep.subr.mxu0 0.0
  %334 = vmatpush1.msra.mxu0 0.0
  %335 = vmatprep.subr.mxu0 0.0
  %336 = vmatpush1.msra.mxu0 0.0
  %337 = vmatprep.subr.mxu0 0.0
  %338 = vmatpush1.msra.mxu0 0.0
  %339 = vmatprep.subr.mxu0 0.0
  %340 = vmatpush1.msra.mxu0 0.0
  %341 = vmatprep.subr.mxu0 0.0
  %342 = vmatpush1.msra.mxu0 0.0
  %343 = vmatprep.subr.mxu0 0.0
  %344 = vmatpush1.msra.mxu0 0.0
  %345 = vmatprep.subr.mxu0 0.0
  %346 = vmatpush1.msra.mxu0 0.0
  %347 = vmatprep.subr.mxu0 0.0
  %348 = vmatpush1.msra.mxu0 0.0
  %349 = vmatprep.subr.mxu0 0.0
  %350 = vmatpush1.msra.mxu0 0.0
  %351 = vmatprep.subr.mxu0 0.0
  %352 = vmatpush1.msra.mxu0 0.0
  %353 = vmatprep.subr.mxu0 0.0
  %354 = vmatpush1.msra.mxu0 0.0
  %355 = vmatprep.subr.mxu0 0.0
  %356 = vmatpush1.msra.mxu0 0.0
  %357 = vmatprep.subr.mxu0 0.0
  %358 = vmatpush1.msra.mxu0 0.0
  %359 = vmatprep.subr.mxu0 0.0
  %360 = vmatpush1.msra.mxu0 0.0
  %361 = vmatprep.subr.mxu0 0.0
  %362 = vmatpush1.msra.mxu0 0.0
  %363 = vmatprep.subr.mxu0 0.0
  %364 = vmatpush1.msra.mxu0 0.0
  %365 = vmatprep.subr.mxu0 0.0
  %366 = vmatpush1.msra.mxu0 0.0
  %367 = vmatprep.subr.mxu0 0.0
  %368 = vmatpush1.msra.mxu0 0.0
  %369 = vmatprep.subr.mxu0 0.0
  %370 = vmatpush1.msra.mxu0 0.0
  %371 = vmatprep.subr.mxu0 0.0
  %372 = vmatpush1.msra.mxu0 0.0
  %373 = vmatprep.subr.mxu0 0.0
  %374 = vmatpush1.msra.mxu0 0.0
  %375 = vmatprep.subr.mxu0 0.0
  %376 = vmatpush1.msra.mxu0 0.0
  %377 = vmatprep.subr.mxu0 0.0
  %378 = vmatpush1.msra.mxu0 0.0
  %379 = vmatprep.mubr.f32.mxu0 0.0
  %380 = vmatmul.mubr.f32.gmra.mrb[0].mxu0 %v313
  %v381 = vpop.f32.mrb[0].mxu0
  %v382 = vadd.f32 %v311, %v381
  %v383 = vpop.f32.mrb[0].mxu0
  %384 = vdwg.mxu0
  %v385 = vxor.u32 %v382, 2147483648
  %v386 = vmul.f32 %v385, 1.442695
  %v387 = vpow.pop %v386
  %v388 = vadd.f32 %v387, 1.0
  %v389 = vrcp.pop %v388
  %v390 = vmul.f32 1.0, %v389
  %v391 = vtanh.pop %v382
  %393 = vrot.lane.b32.xlu0 %v310, 32
  %v394 = vpop.permute.xlu0 %393
  %v396 = vmul.f32 %v390, %v394
  %398 = vrot.lane.b32.xlu0 %v391, 32
  %v399 = vpop.permute.xlu0 %398
  %v401 = vmul.f32 %v390, %v399
  %403 = vrot.lane.b32.xlu0 %v401, 32
  %v404 = vpop.permute.xlu0 %403
  %v406 = vadd.f32 %v396, %v404
  %v407 = vtanh.pop %v406
  %409 = vrot.lane.b32.xlu0 %v407, 32
  %v410 = vpop.permute.xlu0 %409
  %v412 = vmul.f32 %v390, %v410
  %414 = vrot.lane.b32.xlu0 %v406, 96
  %v415 = vpop.permute.xlu0 %414
  %417 = vst.msk [vmem:[#allocation5] sm:$0xff] %vm187, %v415
  %419 = vrot.lane.b32.xlu0 %v412, 64
  %v420 = vpop.permute.xlu0 %419
  %422 = vst.msk [vmem:[#allocation4] sm:$0xff] %vm187, %v420
  %423 = vst.msk [vmem:[#allocation3 + $0x8] sm:$0xff] %vm187, %v420
  %v424 = vld [vmem:[#allocation4] sm:$0xff]
  %v425 = vld [vmem:[#allocation5] sm:$0xff]
  %v426 = vld [vmem:[#allocation2 + $0x10] sm:$0xff]
  %v428 = vsel %vm187, %v424, 0
  %430 = vmatprep.subr.mxu0 0.0
  %431 = vmatpush1.msra.mxu0 %v190
  %432 = vmatprep.subr.mxu0 0.0
  %433 = vmatpush1.msra.mxu0 %v191
  %434 = vmatprep.subr.mxu0 0.0
  %435 = vmatpush1.msra.mxu0 %v192
  %436 = vmatprep.subr.mxu0 0.0
  %437 = vmatpush1.msra.mxu0 %v193
  %438 = vmatprep.subr.mxu0 0.0
  %439 = vmatpush1.msra.mxu0 0.0
  %440 = vmatprep.subr.mxu0 0.0
  %441 = vmatpush1.msra.mxu0 0.0
  %442 = vmatprep.subr.mxu0 0.0
  %443 = vmatpush1.msra.mxu0 0.0
  %444 = vmatprep.subr.mxu0 0.0
  %445 = vmatpush1.msra.mxu0 0.0
  %446 = vmatprep.subr.mxu0 0.0
  %447 = vmatpush1.msra.mxu0 0.0
  %448 = vmatprep.subr.mxu0 0.0
  %449 = vmatpush1.msra.mxu0 0.0
  %450 = vmatprep.subr.mxu0 0.0
  %451 = vmatpush1.msra.mxu0 0.0
  %452 = vmatprep.subr.mxu0 0.0
  %453 = vmatpush1.msra.mxu0 0.0
  %454 = vmatprep.subr.mxu0 0.0
  %455 = vmatpush1.msra.mxu0 0.0
  %456 = vmatprep.subr.mxu0 0.0
  %457 = vmatpush1.msra.mxu0 0.0
  %458 = vmatprep.subr.mxu0 0.0
  %459 = vmatpush1.msra.mxu0 0.0
  %460 = vmatprep.subr.mxu0 0.0
  %461 = vmatpush1.msra.mxu0 0.0
  %462 = vmatprep.subr.mxu0 0.0
  %463 = vmatpush1.msra.mxu0 0.0
  %464 = vmatprep.subr.mxu0 0.0
  %465 = vmatpush1.msra.mxu0 0.0
  %466 = vmatprep.subr.mxu0 0.0
  %467 = vmatpush1.msra.mxu0 0.0
  %468 = vmatprep.subr.mxu0 0.0
  %469 = vmatpush1.msra.mxu0 0.0
  %470 = vmatprep.subr.mxu0 0.0
  %471 = vmatpush1.msra.mxu0 0.0
  %472 = vmatprep.subr.mxu0 0.0
  %473 = vmatpush1.msra.mxu0 0.0
  %474 = vmatprep.subr.mxu0 0.0
  %475 = vmatpush1.msra.mxu0 0.0
  %476 = vmatprep.subr.mxu0 0.0
  %477 = vmatpush1.msra.mxu0 0.0
  %478 = vmatprep.subr.mxu0 0.0
  %479 = vmatpush1.msra.mxu0 0.0
  %480 = vmatprep.subr.mxu0 0.0
  %481 = vmatpush1.msra.mxu0 0.0
  %482 = vmatprep.subr.mxu0 0.0
  %483 = vmatpush1.msra.mxu0 0.0
  %484 = vmatprep.subr.mxu0 0.0
  %485 = vmatpush1.msra.mxu0 0.0
  %486 = vmatprep.subr.mxu0 0.0
  %487 = vmatpush1.msra.mxu0 0.0
  %488 = vmatprep.subr.mxu0 0.0
  %489 = vmatpush1.msra.mxu0 0.0
  %490 = vmatprep.subr.mxu0 0.0
  %491 = vmatpush1.msra.mxu0 0.0
  %492 = vmatprep.subr.mxu0 0.0
  %493 = vmatpush1.msra.mxu0 0.0
  %494 = vmatprep.mubr.f32.mxu0 0.0
  %495 = vmatmul.mubr.f32.gmra.mrb[0].mxu0 %v428
  %v496 = vpop.f32.mrb[0].mxu0
  %v497 = vadd.f32 %v426, %v496
  %v498 = vpop.f32.mrb[0].mxu0
  %499 = vdwg.mxu0
  %v500 = vxor.u32 %v497, 2147483648
  %v501 = vmul.f32 %v500, 1.442695
  %v502 = vpow.pop %v501
  %v503 = vadd.f32 %v502, 1.0
  %v504 = vrcp.pop %v503
  %v505 = vmul.f32 1.0, %v504
  %v506 = vtanh.pop %v497
  %508 = vrot.lane.b32.xlu0 %v425, 32
  %v509 = vpop.permute.xlu0 %508
  %v511 = vmul.f32 %v505, %v509
  %513 = vrot.lane.b32.xlu0 %v506, 32
  %v514 = vpop.permute.xlu0 %513
  %v516 = vmul.f32 %v505, %v514
  %518 = vrot.lane.b32.xlu0 %v516, 32
  %v519 = vpop.permute.xlu0 %518
  %v521 = vadd.f32 %v511, %v519
  %v522 = vtanh.pop %v521
  %524 = vrot.lane.b32.xlu0 %v522, 32
  %v525 = vpop.permute.xlu0 %524
  %v527 = vmul.f32 %v505, %v525
  %529 = vrot.lane.b32.xlu0 %v521, 96
  %v530 = vpop.permute.xlu0 %529
  %532 = vst.msk [vmem:[#allocation5] sm:$0xff] %vm187, %v530
  %534 = vrot.lane.b32.xlu0 %v527, 64
  %v535 = vpop.permute.xlu0 %534
  %537 = vst.msk [vmem:[#allocation4] sm:$0xff] %vm187, %v535
  %538 = vst.msk [vmem:[#allocation3 + $0x10] sm:$0xff] %vm187, %v535
  %v539 = vld [vmem:[#allocation4] sm:$0xff]
  %v540 = vld [vmem:[#allocation5] sm:$0xff]
  %v541 = vld [vmem:[#allocation2 + $0x18] sm:$0xff]
  %v543 = vsel %vm187, %v539, 0
  %545 = vmatprep.subr.mxu0 0.0
  %546 = vmatpush1.msra.mxu0 %v190
  %547 = vmatprep.subr.mxu0 0.0
  %548 = vmatpush1.msra.mxu0 %v191
  %549 = vmatprep.subr.mxu0 0.0
  %550 = vmatpush1.msra.mxu0 %v192
  %551 = vmatprep.subr.mxu0 0.0
  %552 = vmatpush1.msra.mxu0 %v193
  %553 = vmatprep.subr.mxu0 0.0
  %554 = vmatpush1.msra.mxu0 0.0
  %555 = vmatprep.subr.mxu0 0.0
  %556 = vmatpush1.msra.mxu0 0.0
  %557 = vmatprep.subr.mxu0 0.0
  %558 = vmatpush1.msra.mxu0 0.0
  %559 = vmatprep.subr.mxu0 0.0
  %560 = vmatpush1.msra.mxu0 0.0
  %561 = vmatprep.subr.mxu0 0.0
  %562 = vmatpush1.msra.mxu0 0.0
  %563 = vmatprep.subr.mxu0 0.0
  %564 = vmatpush1.msra.mxu0 0.0
  %565 = vmatprep.subr.mxu0 0.0
  %566 = vmatpush1.msra.mxu0 0.0
  %567 = vmatprep.subr.mxu0 0.0
  %568 = vmatpush1.msra.mxu0 0.0
  %569 = vmatprep.subr.mxu0 0.0
  %570 = vmatpush1.msra.mxu0 0.0
  %571 = vmatprep.subr.mxu0 0.0
  %572 = vmatpush1.msra.mxu0 0.0
  %573 = vmatprep.subr.mxu0 0.0
  %574 = vmatpush1.msra.mxu0 0.0
  %575 = vmatprep.subr.mxu0 0.0
  %576 = vmatpush1.msra.mxu0 0.0
  %577 = vmatprep.subr.mxu0 0.0
  %578 = vmatpush1.msra.mxu0 0.0
  %579 = vmatprep.subr.mxu0 0.0
  %580 = vmatpush1.msra.mxu0 0.0
  %581 = vmatprep.subr.mxu0 0.0
  %582 = vmatpush1.msra.mxu0 0.0
  %583 = vmatprep.subr.mxu0 0.0
  %584 = vmatpush1.msra.mxu0 0.0
  %585 = vmatprep.subr.mxu0 0.0
  %586 = vmatpush1.msra.mxu0 0.0
  %587 = vmatprep.subr.mxu0 0.0
  %588 = vmatpush1.msra.mxu0 0.0
  %589 = vmatprep.subr.mxu0 0.0
  %590 = vmatpush1.msra.mxu0 0.0
  %591 = vmatprep.subr.mxu0 0.0
  %592 = vmatpush1.msra.mxu0 0.0
  %593 = vmatprep.subr.mxu0 0.0
  %594 = vmatpush1.msra.mxu0 0.0
  %595 = vmatprep.subr.mxu0 0.0
  %596 = vmatpush1.msra.mxu0 0.0
  %597 = vmatprep.subr.mxu0 0.0
  %598 = vmatpush1.msra.mxu0 0.0
  %599 = vmatprep.subr.mxu0 0.0
  %600 = vmatpush1.msra.mxu0 0.0
  %601 = vmatprep.subr.mxu0 0.0
  %602 = vmatpush1.msra.mxu0 0.0
  %603 = vmatprep.subr.mxu0 0.0
  %604 = vmatpush1.msra.mxu0 0.0
  %605 = vmatprep.subr.mxu0 0.0
  %606 = vmatpush1.msra.mxu0 0.0
  %607 = vmatprep.subr.mxu0 0.0
  %608 = vmatpush1.msra.mxu0 0.0
  %609 = vmatprep.mubr.f32.mxu0 0.0
  %610 = vmatmul.mubr.f32.gmra.mrb[0].mxu0 %v543
  %v611 = vpop.f32.mrb[0].mxu0
  %v612 = vadd.f32 %v541, %v611
  %v613 = vpop.f32.mrb[0].mxu0
  %614 = vdwg.mxu0
  %v615 = vxor.u32 %v612, 2147483648
  %v616 = vmul.f32 %v615, 1.442695
  %v617 = vpow.pop %v616
  %v618 = vadd.f32 %v617, 1.0
  %v619 = vrcp.pop %v618
  %v620 = vmul.f32 1.0, %v619
  %v621 = vtanh.pop %v612
  %623 = vrot.lane.b32.xlu0 %v540, 32
  %v624 = vpop.permute.xlu0 %623
  %v626 = vmul.f32 %v620, %v624
  %628 = vrot.lane.b32.xlu0 %v621, 32
  %v629 = vpop.permute.xlu0 %628
  %v631 = vmul.f32 %v620, %v629
  %633 = vrot.lane.b32.xlu0 %v631, 32
  %v634 = vpop.permute.xlu0 %633
  %v636 = vadd.f32 %v626, %v634
  %v637 = vtanh.pop %v636
  %639 = vrot.lane.b32.xlu0 %v637, 32
  %v640 = vpop.permute.xlu0 %639
  %v642 = vmul.f32 %v620, %v640
  %644 = vrot.lane.b32.xlu0 %v636, 96
  %v645 = vpop.permute.xlu0 %644
  %647 = vst.msk [vmem:[#allocation5] sm:$0xff] %vm187, %v645
  %649 = vrot.lane.b32.xlu0 %v642, 64
  %v650 = vpop.permute.xlu0 %649
  %652 = vst.msk [vmem:[#allocation4] sm:$0xff] %vm187, %v650
  %653 = vst.msk [vmem:[#allocation3 + $0x18] sm:$0xff] %vm187, %v650
  %v654 = vld [vmem:[#allocation4] sm:$0xff]
  %v655 = vld [vmem:[#allocation5] sm:$0xff]
  %v656 = vld [vmem:[#allocation2 + $0x20] sm:$0xff]
  %v658 = vsel %vm187, %v654, 0
  %660 = vmatprep.subr.mxu0 0.0
  %661 = vmatpush1.msra.mxu0 %v190
  %662 = vmatprep.subr.mxu0 0.0
  %663 = vmatpush1.msra.mxu0 %v191
  %664 = vmatprep.subr.mxu0 0.0
  %665 = vmatpush1.msra.mxu0 %v192
  %666 = vmatprep.subr.mxu0 0.0
  %667 = vmatpush1.msra.mxu0 %v193
  %668 = vmatprep.subr.mxu0 0.0
  %669 = vmatpush1.msra.mxu0 0.0
  %670 = vmatprep.subr.mxu0 0.0
  %671 = vmatpush1.msra.mxu0 0.0
  %672 = vmatprep.subr.mxu0 0.0
  %673 = vmatpush1.msra.mxu0 0.0
  %674 = vmatprep.subr.mxu0 0.0
  %675 = vmatpush1.msra.mxu0 0.0
  %676 = vmatprep.subr.mxu0 0.0
  %677 = vmatpush1.msra.mxu0 0.0
  %678 = vmatprep.subr.mxu0 0.0
  %679 = vmatpush1.msra.mxu0 0.0
  %680 = vmatprep.subr.mxu0 0.0
  %681 = vmatpush1.msra.mxu0 0.0
  %682 = vmatprep.subr.mxu0 0.0
  %683 = vmatpush1.msra.mxu0 0.0
  %684 = vmatprep.subr.mxu0 0.0
  %685 = vmatpush1.msra.mxu0 0.0
  %686 = vmatprep.subr.mxu0 0.0
  %687 = vmatpush1.msra.mxu0 0.0
  %688 = vmatprep.subr.mxu0 0.0
  %689 = vmatpush1.msra.mxu0 0.0
  %690 = vmatprep.subr.mxu0 0.0
  %691 = vmatpush1.msra.mxu0 0.0
  %692 = vmatprep.subr.mxu0 0.0
  %693 = vmatpush1.msra.mxu0 0.0
  %694 = vmatprep.subr.mxu0 0.0
  %695 = vmatpush1.msra.mxu0 0.0
  %696 = vmatprep.subr.mxu0 0.0
  %697 = vmatpush1.msra.mxu0 0.0
  %698 = vmatprep.subr.mxu0 0.0
  %699 = vmatpush1.msra.mxu0 0.0
  %700 = vmatprep.subr.mxu0 0.0
  %701 = vmatpush1.msra.mxu0 0.0
  %702 = vmatprep.subr.mxu0 0.0
  %703 = vmatpush1.msra.mxu0 0.0
  %704 = vmatprep.subr.mxu0 0.0
  %705 = vmatpush1.msra.mxu0 0.0
  %706 = vmatprep.subr.mxu0 0.0
  %707 = vmatpush1.msra.mxu0 0.0
  %708 = vmatprep.subr.mxu0 0.0
  %709 = vmatpush1.msra.mxu0 0.0
  %710 = vmatprep.subr.mxu0 0.0
  %711 = vmatpush1.msra.mxu0 0.0
  %712 = vmatprep.subr.mxu0 0.0
  %713 = vmatpush1.msra.mxu0 0.0
  %714 = vmatprep.subr.mxu0 0.0
  %715 = vmatpush1.msra.mxu0 0.0
  %716 = vmatprep.subr.mxu0 0.0
  %717 = vmatpush1.msra.mxu0 0.0
  %718 = vmatprep.subr.mxu0 0.0
  %719 = vmatpush1.msra.mxu0 0.0
  %720 = vmatprep.subr.mxu0 0.0
  %721 = vmatpush1.msra.mxu0 0.0
  %722 = vmatprep.subr.mxu0 0.0
  %723 = vmatpush1.msra.mxu0 0.0
  %724 = vmatprep.mubr.f32.mxu0 0.0
  %725 = vmatmul.mubr.f32.gmra.mrb[0].mxu0 %v658
  %v726 = vpop.f32.mrb[0].mxu0
  %v727 = vadd.f32 %v656, %v726
  %v728 = vpop.f32.mrb[0].mxu0
  %729 = vdwg.mxu0
  %v730 = vxor.u32 %v727, 2147483648
  %v731 = vmul.f32 %v730, 1.442695
  %v732 = vpow.pop %v731
  %v733 = vadd.f32 %v732, 1.0
  %v734 = vrcp.pop %v733
  %v735 = vmul.f32 1.0, %v734
  %v736 = vtanh.pop %v727
  %738 = vrot.lane.b32.xlu0 %v655, 32
  %v739 = vpop.permute.xlu0 %738
  %v741 = vmul.f32 %v735, %v739
  %743 = vrot.lane.b32.xlu0 %v736, 32
  %v744 = vpop.permute.xlu0 %743
  %v746 = vmul.f32 %v735, %v744
  %748 = vrot.lane.b32.xlu0 %v746, 32
  %v749 = vpop.permute.xlu0 %748
  %v751 = vadd.f32 %v741, %v749
  %v752 = vtanh.pop %v751
  %754 = vrot.lane.b32.xlu0 %v752, 32
  %v755 = vpop.permute.xlu0 %754
  %v757 = vmul.f32 %v735, %v755
  %759 = vrot.lane.b32.xlu0 %v751, 96
  %v760 = vpop.permute.xlu0 %759
  %762 = vst.msk [vmem:[#allocation5] sm:$0xff] %vm187, %v760
  %764 = vrot.lane.b32.xlu0 %v757, 64
  %v765 = vpop.permute.xlu0 %764
  %767 = vst.msk [vmem:[#allocation4] sm:$0xff] %vm187, %v765
  %768 = vst.msk [vmem:[#allocation3 + $0x20] sm:$0xff] %vm187, %v765
  %v769 = vld [vmem:[#allocation4] sm:$0xff]
  %v770 = vld [vmem:[#allocation5] sm:$0xff]
  %v771 = vld [vmem:[#allocation2 + $0x28] sm:$0xff]
  %v773 = vsel %vm187, %v769, 0
  %775 = vmatprep.subr.mxu0 0.0
  %776 = vmatpush1.msra.mxu0 %v190
  %777 = vmatprep.subr.mxu0 0.0
  %778 = vmatpush1.msra.mxu0 %v191
  %779 = vmatprep.subr.mxu0 0.0
  %780 = vmatpush1.msra.mxu0 %v192
  %781 = vmatprep.subr.mxu0 0.0
  %782 = vmatpush1.msra.mxu0 %v193
  %783 = vmatprep.subr.mxu0 0.0
  %784 = vmatpush1.msra.mxu0 0.0
  %785 = vmatprep.subr.mxu0 0.0
  %786 = vmatpush1.msra.mxu0 0.0
  %787 = vmatprep.subr.mxu0 0.0
  %788 = vmatpush1.msra.mxu0 0.0
  %789 = vmatprep.subr.mxu0 0.0
  %790 = vmatpush1.msra.mxu0 0.0
  %791 = vmatprep.subr.mxu0 0.0
  %792 = vmatpush1.msra.mxu0 0.0
  %793 = vmatprep.subr.mxu0 0.0
  %794 = vmatpush1.msra.mxu0 0.0
  %795 = vmatprep.subr.mxu0 0.0
  %796 = vmatpush1.msra.mxu0 0.0
  %797 = vmatprep.subr.mxu0 0.0
  %798 = vmatpush1.msra.mxu0 0.0
  %799 = vmatprep.subr.mxu0 0.0
  %800 = vmatpush1.msra.mxu0 0.0
  %801 = vmatprep.subr.mxu0 0.0
  %802 = vmatpush1.msra.mxu0 0.0
  %803 = vmatprep.subr.mxu0 0.0
  %804 = vmatpush1.msra.mxu0 0.0
  %805 = vmatprep.subr.mxu0 0.0
  %806 = vmatpush1.msra.mxu0 0.0
  %807 = vmatprep.subr.mxu0 0.0
  %808 = vmatpush1.msra.mxu0 0.0
  %809 = vmatprep.subr.mxu0 0.0
  %810 = vmatpush1.msra.mxu0 0.0
  %811 = vmatprep.subr.mxu0 0.0
  %812 = vmatpush1.msra.mxu0 0.0
  %813 = vmatprep.subr.mxu0 0.0
  %814 = vmatpush1.msra.mxu0 0.0
  %815 = vmatprep.subr.mxu0 0.0
  %816 = vmatpush1.msra.mxu0 0.0
  %817 = vmatprep.subr.mxu0 0.0
  %818 = vmatpush1.msra.mxu0 0.0
  %819 = vmatprep.subr.mxu0 0.0
  %820 = vmatpush1.msra.mxu0 0.0
  %821 = vmatprep.subr.mxu0 0.0
  %822 = vmatpush1.msra.mxu0 0.0
  %823 = vmatprep.subr.mxu0 0.0
  %824 = vmatpush1.msra.mxu0 0.0
  %825 = vmatprep.subr.mxu0 0.0
  %826 = vmatpush1.msra.mxu0 0.0
  %827 = vmatprep.subr.mxu0 0.0
  %828 = vmatpush1.msra.mxu0 0.0
  %829 = vmatprep.subr.mxu0 0.0
  %830 = vmatpush1.msra.mxu0 0.0
  %831 = vmatprep.subr.mxu0 0.0
  %832 = vmatpush1.msra.mxu0 0.0
  %833 = vmatprep.subr.mxu0 0.0
  %834 = vmatpush1.msra.mxu0 0.0
  %835 = vmatprep.subr.mxu0 0.0
  %836 = vmatpush1.msra.mxu0 0.0
  %837 = vmatprep.subr.mxu0 0.0
  %838 = vmatpush1.msra.mxu0 0.0
  %839 = vmatprep.mubr.f32.mxu0 0.0
  %840 = vmatmul.mubr.f32.gmra.mrb[0].mxu0 %v773
  %v841 = vpop.f32.mrb[0].mxu0
  %v842 = vadd.f32 %v771, %v841
  %v843 = vpop.f32.mrb[0].mxu0
  %844 = vdwg.mxu0
  %v845 = vxor.u32 %v842, 2147483648
  %v846 = vmul.f32 %v845, 1.442695
  %v847 = vpow.pop %v846
  %v848 = vadd.f32 %v847, 1.0
  %v849 = vrcp.pop %v848
  %v850 = vmul.f32 1.0, %v849
  %v851 = vtanh.pop %v842
  %853 = vrot.lane.b32.xlu0 %v770, 32
  %v854 = vpop.permute.xlu0 %853
  %v856 = vmul.f32 %v850, %v854
  %858 = vrot.lane.b32.xlu0 %v851, 32
  %v859 = vpop.permute.xlu0 %858
  %v861 = vmul.f32 %v850, %v859
  %863 = vrot.lane.b32.xlu0 %v861, 32
  %v864 = vpop.permute.xlu0 %863
  %v866 = vadd.f32 %v856, %v864
  %v867 = vtanh.pop %v866
  %869 = vrot.lane.b32.xlu0 %v867, 32
  %v870 = vpop.permute.xlu0 %869
  %v872 = vmul.f32 %v850, %v870
  %874 = vrot.lane.b32.xlu0 %v866, 96
  %v875 = vpop.permute.xlu0 %874
  %877 = vst.msk [vmem:[#allocation5] sm:$0xff] %vm187, %v875
  %879 = vrot.lane.b32.xlu0 %v872, 64
  %v880 = vpop.permute.xlu0 %879
  %882 = vst.msk [vmem:[#allocation4] sm:$0xff] %vm187, %v880
  %883 = vst.msk [vmem:[#allocation3 + $0x28] sm:$0xff] %vm187, %v880
  %v884 = vld [vmem:[#allocation4] sm:$0xff]
  %v885 = vld [vmem:[#allocation5] sm:$0xff]
  %v886 = vld [vmem:[#allocation2 + $0x30] sm:$0xff]
  %v888 = vsel %vm187, %v884, 0
  %890 = vmatprep.subr.mxu0 0.0
  %891 = vmatpush1.msra.mxu0 %v190
  %892 = vmatprep.subr.mxu0 0.0
  %893 = vmatpush1.msra.mxu0 %v191
  %894 = vmatprep.subr.mxu0 0.0
  %895 = vmatpush1.msra.mxu0 %v192
  %896 = vmatprep.subr.mxu0 0.0
  %897 = vmatpush1.msra.mxu0 %v193
  %898 = vmatprep.subr.mxu0 0.0
  %899 = vmatpush1.msra.mxu0 0.0
  %900 = vmatprep.subr.mxu0 0.0
  %901 = vmatpush1.msra.mxu0 0.0
  %902 = vmatprep.subr.mxu0 0.0
  %903 = vmatpush1.msra.mxu0 0.0
  %904 = vmatprep.subr.mxu0 0.0
  %905 = vmatpush1.msra.mxu0 0.0
  %906 = vmatprep.subr.mxu0 0.0
  %907 = vmatpush1.msra.mxu0 0.0
  %908 = vmatprep.subr.mxu0 0.0
  %909 = vmatpush1.msra.mxu0 0.0
  %910 = vmatprep.subr.mxu0 0.0
  %911 = vmatpush1.msra.mxu0 0.0
  %912 = vmatprep.subr.mxu0 0.0
  %913 = vmatpush1.msra.mxu0 0.0
  %914 = vmatprep.subr.mxu0 0.0
  %915 = vmatpush1.msra.mxu0 0.0
  %916 = vmatprep.subr.mxu0 0.0
  %917 = vmatpush1.msra.mxu0 0.0
  %918 = vmatprep.subr.mxu0 0.0
  %919 = vmatpush1.msra.mxu0 0.0
  %920 = vmatprep.subr.mxu0 0.0
  %921 = vmatpush1.msra.mxu0 0.0
  %922 = vmatprep.subr.mxu0 0.0
  %923 = vmatpush1.msra.mxu0 0.0
  %924 = vmatprep.subr.mxu0 0.0
  %925 = vmatpush1.msra.mxu0 0.0
  %926 = vmatprep.subr.mxu0 0.0
  %927 = vmatpush1.msra.mxu0 0.0
  %928 = vmatprep.subr.mxu0 0.0
  %929 = vmatpush1.msra.mxu0 0.0
  %930 = vmatprep.subr.mxu0 0.0
  %931 = vmatpush1.msra.mxu0 0.0
  %932 = vmatprep.subr.mxu0 0.0
  %933 = vmatpush1.msra.mxu0 0.0
  %934 = vmatprep.subr.mxu0 0.0
  %935 = vmatpush1.msra.mxu0 0.0
  %936 = vmatprep.subr.mxu0 0.0
  %937 = vmatpush1.msra.mxu0 0.0
  %938 = vmatprep.subr.mxu0 0.0
  %939 = vmatpush1.msra.mxu0 0.0
  %940 = vmatprep.subr.mxu0 0.0
  %941 = vmatpush1.msra.mxu0 0.0
  %942 = vmatprep.subr.mxu0 0.0
  %943 = vmatpush1.msra.mxu0 0.0
  %944 = vmatprep.subr.mxu0 0.0
  %945 = vmatpush1.msra.mxu0 0.0
  %946 = vmatprep.subr.mxu0 0.0
  %947 = vmatpush1.msra.mxu0 0.0
  %948 = vmatprep.subr.mxu0 0.0
  %949 = vmatpush1.msra.mxu0 0.0
  %950 = vmatprep.subr.mxu0 0.0
  %951 = vmatpush1.msra.mxu0 0.0
  %952 = vmatprep.subr.mxu0 0.0
  %953 = vmatpush1.msra.mxu0 0.0
  %954 = vmatprep.mubr.f32.mxu0 0.0
  %955 = vmatmul.mubr.f32.gmra.mrb[0].mxu0 %v888
  %v956 = vpop.f32.mrb[0].mxu0
  %v957 = vadd.f32 %v886, %v956
  %v958 = vpop.f32.mrb[0].mxu0
  %959 = vdwg.mxu0
  %v960 = vxor.u32 %v957, 2147483648
  %v961 = vmul.f32 %v960, 1.442695
  %v962 = vpow.pop %v961
  %v963 = vadd.f32 %v962, 1.0
  %v964 = vrcp.pop %v963
  %v965 = vmul.f32 1.0, %v964
  %v966 = vtanh.pop %v957
  %968 = vrot.lane.b32.xlu0 %v885, 32
  %v969 = vpop.permute.xlu0 %968
  %v971 = vmul.f32 %v965, %v969
  %973 = vrot.lane.b32.xlu0 %v966, 32
  %v974 = vpop.permute.xlu0 %973
  %v976 = vmul.f32 %v965, %v974
  %978 = vrot.lane.b32.xlu0 %v976, 32
  %v979 = vpop.permute.xlu0 %978
  %v981 = vadd.f32 %v971, %v979
  %v982 = vtanh.pop %v981
  %984 = vrot.lane.b32.xlu0 %v982, 32
  %v985 = vpop.permute.xlu0 %984
  %v987 = vmul.f32 %v965, %v985
  %989 = vrot.lane.b32.xlu0 %v981, 96
  %v990 = vpop.permute.xlu0 %989
  %992 = vst.msk [vmem:[#allocation5] sm:$0xff] %vm187, %v990
  %994 = vrot.lane.b32.xlu0 %v987, 64
  %v995 = vpop.permute.xlu0 %994
  %997 = vst.msk [vmem:[#allocation4] sm:$0xff] %vm187, %v995
  %998 = vst.msk [vmem:[#allocation3 + $0x30] sm:$0xff] %vm187, %v995
  %v999 = vld [vmem:[#allocation4] sm:$0xff]
  %v1000 = vld [vmem:[#allocation5] sm:$0xff]
  %v1001 = vld [vmem:[#allocation2 + $0x38] sm:$0xff]
  %v1003 = vsel %vm187, %v999, 0
  %1005 = vmatprep.subr.mxu0 0.0
  %1006 = vmatpush1.msra.mxu0 %v190
  %1007 = vmatprep.subr.mxu0 0.0
  %1008 = vmatpush1.msra.mxu0 %v191
  %1009 = vmatprep.subr.mxu0 0.0
  %1010 = vmatpush1.msra.mxu0 %v192
  %1011 = vmatprep.subr.mxu0 0.0
  %1012 = vmatpush1.msra.mxu0 %v193
  %1013 = vmatprep.subr.mxu0 0.0
  %1014 = vmatpush1.msra.mxu0 0.0
  %1015 = vmatprep.subr.mxu0 0.0
  %1016 = vmatpush1.msra.mxu0 0.0
  %1017 = vmatprep.subr.mxu0 0.0
  %1018 = vmatpush1.msra.mxu0 0.0
  %1019 = vmatprep.subr.mxu0 0.0
  %1020 = vmatpush1.msra.mxu0 0.0
  %1021 = vmatprep.subr.mxu0 0.0
  %1022 = vmatpush1.msra.mxu0 0.0
  %1023 = vmatprep.subr.mxu0 0.0
  %1024 = vmatpush1.msra.mxu0 0.0
  %1025 = vmatprep.subr.mxu0 0.0
  %1026 = vmatpush1.msra.mxu0 0.0
  %1027 = vmatprep.subr.mxu0 0.0
  %1028 = vmatpush1.msra.mxu0 0.0
  %1029 = vmatprep.subr.mxu0 0.0
  %1030 = vmatpush1.msra.mxu0 0.0
  %1031 = vmatprep.subr.mxu0 0.0
  %1032 = vmatpush1.msra.mxu0 0.0
  %1033 = vmatprep.subr.mxu0 0.0
  %1034 = vmatpush1.msra.mxu0 0.0
  %1035 = vmatprep.subr.mxu0 0.0
  %1036 = vmatpush1.msra.mxu0 0.0
  %1037 = vmatprep.subr.mxu0 0.0
  %1038 = vmatpush1.msra.mxu0 0.0
  %1039 = vmatprep.subr.mxu0 0.0
  %1040 = vmatpush1.msra.mxu0 0.0
  %1041 = vmatprep.subr.mxu0 0.0
  %1042 = vmatpush1.msra.mxu0 0.0
  %1043 = vmatprep.subr.mxu0 0.0
  %1044 = vmatpush1.msra.mxu0 0.0
  %1045 = vmatprep.subr.mxu0 0.0
  %1046 = vmatpush1.msra.mxu0 0.0
  %1047 = vmatprep.subr.mxu0 0.0
  %1048 = vmatpush1.msra.mxu0 0.0
  %1049 = vmatprep.subr.mxu0 0.0
  %1050 = vmatpush1.msra.mxu0 0.0
  %1051 = vmatprep.subr.mxu0 0.0
  %1052 = vmatpush1.msra.mxu0 0.0
  %1053 = vmatprep.subr.mxu0 0.0
  %1054 = vmatpush1.msra.mxu0 0.0
  %1055 = vmatprep.subr.mxu0 0.0
  %1056 = vmatpush1.msra.mxu0 0.0
  %1057 = vmatprep.subr.mxu0 0.0
  %1058 = vmatpush1.msra.mxu0 0.0
  %1059 = vmatprep.subr.mxu0 0.0
  %1060 = vmatpush1.msra.mxu0 0.0
  %1061 = vmatprep.subr.mxu0 0.0
  %1062 = vmatpush1.msra.mxu0 0.0
  %1063 = vmatprep.subr.mxu0 0.0
  %1064 = vmatpush1.msra.mxu0 0.0
  %1065 = vmatprep.subr.mxu0 0.0
  %1066 = vmatpush1.msra.mxu0 0.0
  %1067 = vmatprep.subr.mxu0 0.0
  %1068 = vmatpush1.msra.mxu0 0.0
  %1069 = vmatprep.mubr.f32.mxu0 0.0
  %1070 = vmatmul.mubr.f32.gmra.mrb[0].mxu0 %v1003
  %v1071 = vpop.f32.mrb[0].mxu0
  %v1072 = vadd.f32 %v1001, %v1071
  %v1073 = vpop.f32.mrb[0].mxu0
  %1074 = vdwg.mxu0
  %v1075 = vxor.u32 %v1072, 2147483648
  %v1076 = vmul.f32 %v1075, 1.442695
  %v1077 = vpow.pop %v1076
  %v1078 = vadd.f32 %v1077, 1.0
  %v1079 = vrcp.pop %v1078
  %v1080 = vmul.f32 1.0, %v1079
  %v1081 = vtanh.pop %v1072
  %1083 = vrot.lane.b32.xlu0 %v1000, 32
  %v1084 = vpop.permute.xlu0 %1083
  %v1086 = vmul.f32 %v1080, %v1084
  %1088 = vrot.lane.b32.xlu0 %v1081, 32
  %v1089 = vpop.permute.xlu0 %1088
  %v1091 = vmul.f32 %v1080, %v1089
  %1093 = vrot.lane.b32.xlu0 %v1091, 32
  %v1094 = vpop.permute.xlu0 %1093
  %v1096 = vadd.f32 %v1086, %v1094
  %v1097 = vtanh.pop %v1096
  %1099 = vrot.lane.b32.xlu0 %v1097, 32
  %v1100 = vpop.permute.xlu0 %1099
  %v1102 = vmul.f32 %v1080, %v1100
  %1104 = vrot.lane.b32.xlu0 %v1096, 96
  %v1105 = vpop.permute.xlu0 %1104
  %1107 = vst.msk [vmem:[#allocation5] sm:$0xff] %vm187, %v1105
  %1109 = vrot.lane.b32.xlu0 %v1102, 64
  %v1110 = vpop.permute.xlu0 %1109
  %1112 = vst.msk [vmem:[#allocation4] sm:$0xff] %vm187, %v1110
  %1113 = vst.msk [vmem:[#allocation3 + $0x38] sm:$0xff] %vm187, %v1110
  %v1114 = vld [vmem:[#allocation3] sm:$0xff]
  %v1115 = vld [vmem:[#allocation3 + $0x8] sm:$0xff]
  %v1116 = vld [vmem:[#allocation3 + $0x10] sm:$0xff]
  %v1117 = vld [vmem:[#allocation3 + $0x18] sm:$0xff]
  %v1118 = vld [vmem:[#allocation3 + $0x20] sm:$0xff]
  %v1119 = vld [vmem:[#allocation3 + $0x28] sm:$0xff]
  %v1120 = vld [vmem:[#allocation3 + $0x30] sm:$0xff]
  %v1121 = vld [vmem:[#allocation3 + $0x38] sm:$0xff]
  %v1122 = vld [vmem:[%s4] sm:$0xff]
  %v1123 = vld [vmem:[%s4 + $0x8] sm:$0xff]
  %v1124 = vld [vmem:[%s4 + $0x10] sm:$0xff]
  %v1125 = vld [vmem:[%s4 + $0x18] sm:$0xff]
  %v1126 = vld [vmem:[%s6] sm:$0x1]
  %v1128 = vlaneseq
  %v1129 = vshrl.u32 %v1128, 7
  %v1130 = vsub.s32 0, %v1129
  %v1131 = vrot.slane %v1126, %v1130
  %v1134 = vsel %vm187, %v1114, 0
  %v1137 = vsel %vm187, %v1115, 0
  %v1140 = vsel %vm187, %v1116, 0
  %v1143 = vsel %vm187, %v1117, 0
  %v1146 = vsel %vm187, %v1118, 0
  %v1149 = vsel %vm187, %v1119, 0
  %v1152 = vsel %vm187, %v1120, 0
  %v1155 = vsel %vm187, %v1121, 0
  %1157 = vmatprep.subr.mxu0 0.0
  %1158 = vmatpush1.msra.mxu0 %v1122
  %1159 = vmatprep.subr.mxu0 0.0
  %1160 = vmatpush1.msra.mxu0 %v1123
  %1161 = vmatprep.subr.mxu0 0.0
  %1162 = vmatpush1.msra.mxu0 %v1124
  %1163 = vmatprep.subr.mxu0 0.0
  %1164 = vmatpush1.msra.mxu0 %v1125
  %1165 = vmatprep.subr.mxu0 0.0
  %1166 = vmatpush1.msra.mxu0 0.0
  %1167 = vmatprep.subr.mxu0 0.0
  %1168 = vmatpush1.msra.mxu0 0.0
  %1169 = vmatprep.subr.mxu0 0.0
  %1170 = vmatpush1.msra.mxu0 0.0
  %1171 = vmatprep.subr.mxu0 0.0
  %1172 = vmatpush1.msra.mxu0 0.0
  %1173 = vmatprep.subr.mxu0 0.0
  %1174 = vmatpush1.msra.mxu0 0.0
  %1175 = vmatprep.subr.mxu0 0.0
  %1176 = vmatpush1.msra.mxu0 0.0
  %1177 = vmatprep.subr.mxu0 0.0
  %1178 = vmatpush1.msra.mxu0 0.0
  %1179 = vmatprep.subr.mxu0 0.0
  %1180 = vmatpush1.msra.mxu0 0.0
  %1181 = vmatprep.subr.mxu0 0.0
  %1182 = vmatpush1.msra.mxu0 0.0
  %1183 = vmatprep.subr.mxu0 0.0
  %1184 = vmatpush1.msra.mxu0 0.0
  %1185 = vmatprep.subr.mxu0 0.0
  %1186 = vmatpush1.msra.mxu0 0.0
  %1187 = vmatprep.subr.mxu0 0.0
  %1188 = vmatpush1.msra.mxu0 0.0
  %1189 = vmatprep.subr.mxu0 0.0
  %1190 = vmatpush1.msra.mxu0 0.0
  %1191 = vmatprep.subr.mxu0 0.0
  %1192 = vmatpush1.msra.mxu0 0.0
  %1193 = vmatprep.subr.mxu0 0.0
  %1194 = vmatpush1.msra.mxu0 0.0
  %1195 = vmatprep.subr.mxu0 0.0
  %1196 = vmatpush1.msra.mxu0 0.0
  %1197 = vmatprep.subr.mxu0 0.0
  %1198 = vmatpush1.msra.mxu0 0.0
  %1199 = vmatprep.subr.mxu0 0.0
  %1200 = vmatpush1.msra.mxu0 0.0
  %1201 = vmatprep.subr.mxu0 0.0
  %1202 = vmatpush1.msra.mxu0 0.0
  %1203 = vmatprep.subr.mxu0 0.0
  %1204 = vmatpush1.msra.mxu0 0.0
  %1205 = vmatprep.subr.mxu0 0.0
  %1206 = vmatpush1.msra.mxu0 0.0
  %1207 = vmatprep.subr.mxu0 0.0
  %1208 = vmatpush1.msra.mxu0 0.0
  %1209 = vmatprep.subr.mxu0 0.0
  %1210 = vmatpush1.msra.mxu0 0.0
  %1211 = vmatprep.subr.mxu0 0.0
  %1212 = vmatpush1.msra.mxu0 0.0
  %1213 = vmatprep.subr.mxu0 0.0
  %1214 = vmatpush1.msra.mxu0 0.0
  %1215 = vmatprep.subr.mxu0 0.0
  %1216 = vmatpush1.msra.mxu0 0.0
  %1217 = vmatprep.subr.mxu0 0.0
  %1218 = vmatpush1.msra.mxu0 0.0
  %1219 = vmatprep.subr.mxu0 0.0
  %1220 = vmatpush1.msra.mxu0 0.0
  %1221 = vmatprep.mubr.f32.mxu0 0.0
  %1222 = vmatmul.mubr.f32.gmra.mrb[0].mxu0 %v1134
  %v1223 = vpop.f32.mrb[0].mxu0
  %v1224 = vadd.f32 %v1131, %v1223
  %v1225 = vpop.f32.mrb[0].mxu0
  %1226 = vmatprep.mubr.f32.mxu0 0.0
  %1227 = vmatmul.mubr.f32.gmra.mrb[0].mxu0 %v1137
  %v1228 = vpop.f32.mrb[0].mxu0
  %v1229 = vadd.f32 %v1131, %v1228
  %v1230 = vpop.f32.mrb[0].mxu0
  %1231 = vmatprep.mubr.f32.mxu0 0.0
  %1232 = vmatmul.mubr.f32.gmra.mrb[0].mxu0 %v1140
  %v1233 = vpop.f32.mrb[0].mxu0
  %v1234 = vadd.f32 %v1131, %v1233
  %v1235 = vpop.f32.mrb[0].mxu0
  %1236 = vmatprep.mubr.f32.mxu0 0.0
  %1237 = vmatmul.mubr.f32.gmra.mrb[0].mxu0 %v1143
  %v1238 = vpop.f32.mrb[0].mxu0
  %v1239 = vadd.f32 %v1131, %v1238
  %v1240 = vpop.f32.mrb[0].mxu0
  %1241 = vmatprep.mubr.f32.mxu0 0.0
  %1242 = vmatmul.mubr.f32.gmra.mrb[0].mxu0 %v1146
  %v1243 = vpop.f32.mrb[0].mxu0
  %v1244 = vadd.f32 %v1131, %v1243
  %v1245 = vpop.f32.mrb[0].mxu0
  %1246 = vmatprep.mubr.f32.mxu0 0.0
  %1247 = vmatmul.mubr.f32.gmra.mrb[0].mxu0 %v1149
  %v1248 = vpop.f32.mrb[0].mxu0
  %v1249 = vadd.f32 %v1131, %v1248
  %v1250 = vpop.f32.mrb[0].mxu0
  %1251 = vmatprep.mubr.f32.mxu0 0.0
  %1252 = vmatmul.mubr.f32.gmra.mrb[0].mxu0 %v1152
  %v1253 = vpop.f32.mrb[0].mxu0
  %v1254 = vadd.f32 %v1131, %v1253
  %v1255 = vpop.f32.mrb[0].mxu0
  %1256 = vmatprep.mubr.f32.mxu0 0.0
  %1257 = vmatmul.mubr.f32.gmra.mrb[0].mxu0 %v1155
  %v1258 = vpop.f32.mrb[0].mxu0
  %v1259 = vadd.f32 %v1131, %v1258
  %v1260 = vpop.f32.mrb[0].mxu0
  %1261 = vdwg.mxu0
  %1262 = vst [vmem:[#allocation2] sm:$0xff] %v1224
  %1263 = vst [vmem:[#allocation2 + $0x8] sm:$0xff] %v1229
  %1264 = vst [vmem:[#allocation2 + $0x10] sm:$0xff] %v1234
  %1265 = vst [vmem:[#allocation2 + $0x18] sm:$0xff] %v1239
  %1266 = vst [vmem:[#allocation2 + $0x20] sm:$0xff] %v1244
  %1267 = vst [vmem:[#allocation2 + $0x28] sm:$0xff] %v1249
  %1268 = vst [vmem:[#allocation2 + $0x30] sm:$0xff] %v1254
  %1269 = vst [vmem:[#allocation2 + $0x38] sm:$0xff] %v1259
  %1270 = vst.msk [vmem:[#allocation4] sm:$0xff] %vm187, 0.0
  %1271 = vst.msk [vmem:[#allocation5] sm:$0xff] %vm187, 0.0
  %v1272 = vld [vmem:[%s5] sm:$0xff]
  %v1273 = vld [vmem:[%s5 + $0x8] sm:$0xff]
  %v1274 = vld [vmem:[%s5 + $0x10] sm:$0xff]
  %v1275 = vld [vmem:[%s5 + $0x18] sm:$0xff]
  %v1276 = vld [vmem:[#allocation4] sm:$0xff]
  %v1277 = vld [vmem:[#allocation5] sm:$0xff]
  %v1278 = vld [vmem:[#allocation2] sm:$0xff]
  %v1280 = vsel %vm187, %v1276, 0
  %1282 = vmatprep.subr.mxu0 0.0
  %1283 = vmatpush1.msra.mxu0 %v1272
  %1284 = vmatprep.subr.mxu0 0.0
  %1285 = vmatpush1.msra.mxu0 %v1273
  %1286 = vmatprep.subr.mxu0 0.0
  %1287 = vmatpush1.msra.mxu0 %v1274
  %1288 = vmatprep.subr.mxu0 0.0
  %1289 = vmatpush1.msra.mxu0 %v1275
  %1290 = vmatprep.subr.mxu0 0.0
  %1291 = vmatpush1.msra.mxu0 0.0
  %1292 = vmatprep.subr.mxu0 0.0
  %1293 = vmatpush1.msra.mxu0 0.0
  %1294 = vmatprep.subr.mxu0 0.0
  %1295 = vmatpush1.msra.mxu0 0.0
  %1296 = vmatprep.subr.mxu0 0.0
  %1297 = vmatpush1.msra.mxu0 0.0
  %1298 = vmatprep.subr.mxu0 0.0
  %1299 = vmatpush1.msra.mxu0 0.0
  %1300 = vmatprep.subr.mxu0 0.0
  %1301 = vmatpush1.msra.mxu0 0.0
  %1302 = vmatprep.subr.mxu0 0.0
  %1303 = vmatpush1.msra.mxu0 0.0
  %1304 = vmatprep.subr.mxu0 0.0
  %1305 = vmatpush1.msra.mxu0 0.0
  %1306 = vmatprep.subr.mxu0 0.0
  %1307 = vmatpush1.msra.mxu0 0.0
  %1308 = vmatprep.subr.mxu0 0.0
  %1309 = vmatpush1.msra.mxu0 0.0
  %1310 = vmatprep.subr.mxu0 0.0
  %1311 = vmatpush1.msra.mxu0 0.0
  %1312 = vmatprep.subr.mxu0 0.0
  %1313 = vmatpush1.msra.mxu0 0.0
  %1314 = vmatprep.subr.mxu0 0.0
  %1315 = vmatpush1.msra.mxu0 0.0
  %1316 = vmatprep.subr.mxu0 0.0
  %1317 = vmatpush1.msra.mxu0 0.0
  %1318 = vmatprep.subr.mxu0 0.0
  %1319 = vmatpush1.msra.mxu0 0.0
  %1320 = vmatprep.subr.mxu0 0.0
  %1321 = vmatpush1.msra.mxu0 0.0
  %1322 = vmatprep.subr.mxu0 0.0
  %1323 = vmatpush1.msra.mxu0 0.0
  %1324 = vmatprep.subr.mxu0 0.0
  %1325 = vmatpush1.msra.mxu0 0.0
  %1326 = vmatprep.subr.mxu0 0.0
  %1327 = vmatpush1.msra.mxu0 0.0
  %1328 = vmatprep.subr.mxu0 0.0
  %1329 = vmatpush1.msra.mxu0 0.0
  %1330 = vmatprep.subr.mxu0 0.0
  %1331 = vmatpush1.msra.mxu0 0.0
  %1332 = vmatprep.subr.mxu0 0.0
  %1333 = vmatpush1.msra.mxu0 0.0
  %1334 = vmatprep.subr.mxu0 0.0
  %1335 = vmatpush1.msra.mxu0 0.0
  %1336 = vmatprep.subr.mxu0 0.0
  %1337 = vmatpush1.msra.mxu0 0.0
  %1338 = vmatprep.subr.mxu0 0.0
  %1339 = vmatpush1.msra.mxu0 0.0
  %1340 = vmatprep.subr.mxu0 0.0
  %1341 = vmatpush1.msra.mxu0 0.0
  %1342 = vmatprep.subr.mxu0 0.0
  %1343 = vmatpush1.msra.mxu0 0.0
  %1344 = vmatprep.subr.mxu0 0.0
  %1345 = vmatpush1.msra.mxu0 0.0
  %1346 = vmatprep.mubr.f32.mxu0 0.0
  %1347 = vmatmul.mubr.f32.gmra.mrb[0].mxu0 %v1280
  %v1348 = vpop.f32.mrb[0].mxu0
  %v1349 = vadd.f32 %v1278, %v1348
  %v1350 = vpop.f32.mrb[0].mxu0
  %1351 = vdwg.mxu0
  %v1352 = vxor.u32 %v1349, 2147483648
  %v1353 = vmul.f32 %v1352, 1.442695
  %v1354 = vpow.pop %v1353
  %v1355 = vadd.f32 %v1354, 1.0
  %v1356 = vrcp.pop %v1355
  %v1357 = vmul.f32 1.0, %v1356
  %v1358 = vtanh.pop %v1349
  %1360 = vrot.lane.b32.xlu0 %v1277, 32
  %v1361 = vpop.permute.xlu0 %1360
  %v1363 = vmul.f32 %v1357, %v1361
  %1365 = vrot.lane.b32.xlu0 %v1358, 32
  %v1366 = vpop.permute.xlu0 %1365
  %v1368 = vmul.f32 %v1357, %v1366
  %1370 = vrot.lane.b32.xlu0 %v1368, 32
  %v1371 = vpop.permute.xlu0 %1370
  %v1373 = vadd.f32 %v1363, %v1371
  %v1374 = vtanh.pop %v1373
  %1376 = vrot.lane.b32.xlu0 %v1374, 32
  %v1377 = vpop.permute.xlu0 %1376
  %v1379 = vmul.f32 %v1357, %v1377
  %1381 = vrot.lane.b32.xlu0 %v1373, 96
  %v1382 = vpop.permute.xlu0 %1381
  %1384 = vst.msk [vmem:[#allocation5] sm:$0xff] %vm187, %v1382
  %1386 = vrot.lane.b32.xlu0 %v1379, 64
  %v1387 = vpop.permute.xlu0 %1386
  %1389 = vst.msk [vmem:[#allocation4] sm:$0xff] %vm187, %v1387
  %v1390 = vld [vmem:[#allocation4] sm:$0xff]
  %v1391 = vld [vmem:[#allocation5] sm:$0xff]
  %v1392 = vld [vmem:[#allocation2 + $0x8] sm:$0xff]
  %v1394 = vsel %vm187, %v1390, 0
  %1396 = vmatprep.subr.mxu0 0.0
  %1397 = vmatpush1.msra.mxu0 %v1272
  %1398 = vmatprep.subr.mxu0 0.0
  %1399 = vmatpush1.msra.mxu0 %v1273
  %1400 = vmatprep.subr.mxu0 0.0
  %1401 = vmatpush1.msra.mxu0 %v1274
  %1402 = vmatprep.subr.mxu0 0.0
  %1403 = vmatpush1.msra.mxu0 %v1275
  %1404 = vmatprep.subr.mxu0 0.0
  %1405 = vmatpush1.msra.mxu0 0.0
  %1406 = vmatprep.subr.mxu0 0.0
  %1407 = vmatpush1.msra.mxu0 0.0
  %1408 = vmatprep.subr.mxu0 0.0
  %1409 = vmatpush1.msra.mxu0 0.0
  %1410 = vmatprep.subr.mxu0 0.0
  %1411 = vmatpush1.msra.mxu0 0.0
  %1412 = vmatprep.subr.mxu0 0.0
  %1413 = vmatpush1.msra.mxu0 0.0
  %1414 = vmatprep.subr.mxu0 0.0
  %1415 = vmatpush1.msra.mxu0 0.0
  %1416 = vmatprep.subr.mxu0 0.0
  %1417 = vmatpush1.msra.mxu0 0.0
  %1418 = vmatprep.subr.mxu0 0.0
  %1419 = vmatpush1.msra.mxu0 0.0
  %1420 = vmatprep.subr.mxu0 0.0
  %1421 = vmatpush1.msra.mxu0 0.0
  %1422 = vmatprep.subr.mxu0 0.0
  %1423 = vmatpush1.msra.mxu0 0.0
  %1424 = vmatprep.subr.mxu0 0.0
  %1425 = vmatpush1.msra.mxu0 0.0
  %1426 = vmatprep.subr.mxu0 0.0
  %1427 = vmatpush1.msra.mxu0 0.0
  %1428 = vmatprep.subr.mxu0 0.0
  %1429 = vmatpush1.msra.mxu0 0.0
  %1430 = vmatprep.subr.mxu0 0.0
  %1431 = vmatpush1.msra.mxu0 0.0
  %1432 = vmatprep.subr.mxu0 0.0
  %1433 = vmatpush1.msra.mxu0 0.0
  %1434 = vmatprep.subr.mxu0 0.0
  %1435 = vmatpush1.msra.mxu0 0.0
  %1436 = vmatprep.subr.mxu0 0.0
  %1437 = vmatpush1.msra.mxu0 0.0
  %1438 = vmatprep.subr.mxu0 0.0
  %1439 = vmatpush1.msra.mxu0 0.0
  %1440 = vmatprep.subr.mxu0 0.0
  %1441 = vmatpush1.msra.mxu0 0.0
  %1442 = vmatprep.subr.mxu0 0.0
  %1443 = vmatpush1.msra.mxu0 0.0
  %1444 = vmatprep.subr.mxu0 0.0
  %1445 = vmatpush1.msra.mxu0 0.0
  %1446 = vmatprep.subr.mxu0 0.0
  %1447 = vmatpush1.msra.mxu0 0.0
  %1448 = vmatprep.subr.mxu0 0.0
  %1449 = vmatpush1.msra.mxu0 0.0
  %1450 = vmatprep.subr.mxu0 0.0
  %1451 = vmatpush1.msra.mxu0 0.0
  %1452 = vmatprep.subr.mxu0 0.0
  %1453 = vmatpush1.msra.mxu0 0.0
  %1454 = vmatprep.subr.mxu0 0.0
  %1455 = vmatpush1.msra.mxu0 0.0
  %1456 = vmatprep.subr.mxu0 0.0
  %1457 = vmatpush1.msra.mxu0 0.0
  %1458 = vmatprep.subr.mxu0 0.0
  %1459 = vmatpush1.msra.mxu0 0.0
  %1460 = vmatprep.mubr.f32.mxu0 0.0
  %1461 = vmatmul.mubr.f32.gmra.mrb[0].mxu0 %v1394
  %v1462 = vpop.f32.mrb[0].mxu0
  %v1463 = vadd.f32 %v1392, %v1462
  %v1464 = vpop.f32.mrb[0].mxu0
  %1465 = vdwg.mxu0
  %v1466 = vxor.u32 %v1463, 2147483648
  %v1467 = vmul.f32 %v1466, 1.442695
  %v1468 = vpow.pop %v1467
  %v1469 = vadd.f32 %v1468, 1.0
  %v1470 = vrcp.pop %v1469
  %v1471 = vmul.f32 1.0, %v1470
  %v1472 = vtanh.pop %v1463
  %1474 = vrot.lane.b32.xlu0 %v1391, 32
  %v1475 = vpop.permute.xlu0 %1474
  %v1477 = vmul.f32 %v1471, %v1475
  %1479 = vrot.lane.b32.xlu0 %v1472, 32
  %v1480 = vpop.permute.xlu0 %1479
  %v1482 = vmul.f32 %v1471, %v1480
  %1484 = vrot.lane.b32.xlu0 %v1482, 32
  %v1485 = vpop.permute.xlu0 %1484
  %v1487 = vadd.f32 %v1477, %v1485
  %v1488 = vtanh.pop %v1487
  %1490 = vrot.lane.b32.xlu0 %v1488, 32
  %v1491 = vpop.permute.xlu0 %1490
  %v1493 = vmul.f32 %v1471, %v1491
  %1495 = vrot.lane.b32.xlu0 %v1487, 96
  %v1496 = vpop.permute.xlu0 %1495
  %1498 = vst.msk [vmem:[#allocation5] sm:$0xff] %vm187, %v1496
  %1500 = vrot.lane.b32.xlu0 %v1493, 64
  %v1501 = vpop.permute.xlu0 %1500
  %1503 = vst.msk [vmem:[#allocation4] sm:$0xff] %vm187, %v1501
  %v1504 = vld [vmem:[#allocation4] sm:$0xff]
  %v1505 = vld [vmem:[#allocation5] sm:$0xff]
  %v1506 = vld [vmem:[#allocation2 + $0x10] sm:$0xff]
  %v1508 = vsel %vm187, %v1504, 0
  %1510 = vmatprep.subr.mxu0 0.0
  %1511 = vmatpush1.msra.mxu0 %v1272
  %1512 = vmatprep.subr.mxu0 0.0
  %1513 = vmatpush1.msra.mxu0 %v1273
  %1514 = vmatprep.subr.mxu0 0.0
  %1515 = vmatpush1.msra.mxu0 %v1274
  %1516 = vmatprep.subr.mxu0 0.0
  %1517 = vmatpush1.msra.mxu0 %v1275
  %1518 = vmatprep.subr.mxu0 0.0
  %1519 = vmatpush1.msra.mxu0 0.0
  %1520 = vmatprep.subr.mxu0 0.0
  %1521 = vmatpush1.msra.mxu0 0.0
  %1522 = vmatprep.subr.mxu0 0.0
  %1523 = vmatpush1.msra.mxu0 0.0
  %1524 = vmatprep.subr.mxu0 0.0
  %1525 = vmatpush1.msra.mxu0 0.0
  %1526 = vmatprep.subr.mxu0 0.0
  %1527 = vmatpush1.msra.mxu0 0.0
  %1528 = vmatprep.subr.mxu0 0.0
  %1529 = vmatpush1.msra.mxu0 0.0
  %1530 = vmatprep.subr.mxu0 0.0
  %1531 = vmatpush1.msra.mxu0 0.0
  %1532 = vmatprep.subr.mxu0 0.0
  %1533 = vmatpush1.msra.mxu0 0.0
  %1534 = vmatprep.subr.mxu0 0.0
  %1535 = vmatpush1.msra.mxu0 0.0
  %1536 = vmatprep.subr.mxu0 0.0
  %1537 = vmatpush1.msra.mxu0 0.0
  %1538 = vmatprep.subr.mxu0 0.0
  %1539 = vmatpush1.msra.mxu0 0.0
  %1540 = vmatprep.subr.mxu0 0.0
  %1541 = vmatpush1.msra.mxu0 0.0
  %1542 = vmatprep.subr.mxu0 0.0
  %1543 = vmatpush1.msra.mxu0 0.0
  %1544 = vmatprep.subr.mxu0 0.0
  %1545 = vmatpush1.msra.mxu0 0.0
  %1546 = vmatprep.subr.mxu0 0.0
  %1547 = vmatpush1.msra.mxu0 0.0
  %1548 = vmatprep.subr.mxu0 0.0
  %1549 = vmatpush1.msra.mxu0 0.0
  %1550 = vmatprep.subr.mxu0 0.0
  %1551 = vmatpush1.msra.mxu0 0.0
  %1552 = vmatprep.subr.mxu0 0.0
  %1553 = vmatpush1.msra.mxu0 0.0
  %1554 = vmatprep.subr.mxu0 0.0
  %1555 = vmatpush1.msra.mxu0 0.0
  %1556 = vmatprep.subr.mxu0 0.0
  %1557 = vmatpush1.msra.mxu0 0.0
  %1558 = vmatprep.subr.mxu0 0.0
  %1559 = vmatpush1.msra.mxu0 0.0
  %1560 = vmatprep.subr.mxu0 0.0
  %1561 = vmatpush1.msra.mxu0 0.0
  %1562 = vmatprep.subr.mxu0 0.0
  %1563 = vmatpush1.msra.mxu0 0.0
  %1564 = vmatprep.subr.mxu0 0.0
  %1565 = vmatpush1.msra.mxu0 0.0
  %1566 = vmatprep.subr.mxu0 0.0
  %1567 = vmatpush1.msra.mxu0 0.0
  %1568 = vmatprep.subr.mxu0 0.0
  %1569 = vmatpush1.msra.mxu0 0.0
  %1570 = vmatprep.subr.mxu0 0.0
  %1571 = vmatpush1.msra.mxu0 0.0
  %1572 = vmatprep.subr.mxu0 0.0
  %1573 = vmatpush1.msra.mxu0 0.0
  %1574 = vmatprep.mubr.f32.mxu0 0.0
  %1575 = vmatmul.mubr.f32.gmra.mrb[0].mxu0 %v1508
  %v1576 = vpop.f32.mrb[0].mxu0
  %v1577 = vadd.f32 %v1506, %v1576
  %v1578 = vpop.f32.mrb[0].mxu0
  %1579 = vdwg.mxu0
  %v1580 = vxor.u32 %v1577, 2147483648
  %v1581 = vmul.f32 %v1580, 1.442695
  %v1582 = vpow.pop %v1581
  %v1583 = vadd.f32 %v1582, 1.0
  %v1584 = vrcp.pop %v1583
  %v1585 = vmul.f32 1.0, %v1584
  %v1586 = vtanh.pop %v1577
  %1588 = vrot.lane.b32.xlu0 %v1505, 32
  %v1589 = vpop.permute.xlu0 %1588
  %v1591 = vmul.f32 %v1585, %v1589
  %1593 = vrot.lane.b32.xlu0 %v1586, 32
  %v1594 = vpop.permute.xlu0 %1593
  %v1596 = vmul.f32 %v1585, %v1594
  %1598 = vrot.lane.b32.xlu0 %v1596, 32
  %v1599 = vpop.permute.xlu0 %1598
  %v1601 = vadd.f32 %v1591, %v1599
  %v1602 = vtanh.pop %v1601
  %1604 = vrot.lane.b32.xlu0 %v1602, 32
  %v1605 = vpop.permute.xlu0 %1604
  %v1607 = vmul.f32 %v1585, %v1605
  %1609 = vrot.lane.b32.xlu0 %v1601, 96
  %v1610 = vpop.permute.xlu0 %1609
  %1612 = vst.msk [vmem:[#allocation5] sm:$0xff] %vm187, %v1610
  %1614 = vrot.lane.b32.xlu0 %v1607, 64
  %v1615 = vpop.permute.xlu0 %1614
  %1617 = vst.msk [vmem:[#allocation4] sm:$0xff] %vm187, %v1615
  %v1618 = vld [vmem:[#allocation4] sm:$0xff]
  %v1619 = vld [vmem:[#allocation5] sm:$0xff]
  %v1620 = vld [vmem:[#allocation2 + $0x18] sm:$0xff]
  %v1622 = vsel %vm187, %v1618, 0
  %1624 = vmatprep.subr.mxu0 0.0
  %1625 = vmatpush1.msra.mxu0 %v1272
  %1626 = vmatprep.subr.mxu0 0.0
  %1627 = vmatpush1.msra.mxu0 %v1273
  %1628 = vmatprep.subr.mxu0 0.0
  %1629 = vmatpush1.msra.mxu0 %v1274
  %1630 = vmatprep.subr.mxu0 0.0
  %1631 = vmatpush1.msra.mxu0 %v1275
  %1632 = vmatprep.subr.mxu0 0.0
  %1633 = vmatpush1.msra.mxu0 0.0
  %1634 = vmatprep.subr.mxu0 0.0
  %1635 = vmatpush1.msra.mxu0 0.0
  %1636 = vmatprep.subr.mxu0 0.0
  %1637 = vmatpush1.msra.mxu0 0.0
  %1638 = vmatprep.subr.mxu0 0.0
  %1639 = vmatpush1.msra.mxu0 0.0
  %1640 = vmatprep.subr.mxu0 0.0
  %1641 = vmatpush1.msra.mxu0 0.0
  %1642 = vmatprep.subr.mxu0 0.0
  %1643 = vmatpush1.msra.mxu0 0.0
  %1644 = vmatprep.subr.mxu0 0.0
  %1645 = vmatpush1.msra.mxu0 0.0
  %1646 = vmatprep.subr.mxu0 0.0
  %1647 = vmatpush1.msra.mxu0 0.0
  %1648 = vmatprep.subr.mxu0 0.0
  %1649 = vmatpush1.msra.mxu0 0.0
  %1650 = vmatprep.subr.mxu0 0.0
  %1651 = vmatpush1.msra.mxu0 0.0
  %1652 = vmatprep.subr.mxu0 0.0
  %1653 = vmatpush1.msra.mxu0 0.0
  %1654 = vmatprep.subr.mxu0 0.0
  %1655 = vmatpush1.msra.mxu0 0.0
  %1656 = vmatprep.subr.mxu0 0.0
  %1657 = vmatpush1.msra.mxu0 0.0
  %1658 = vmatprep.subr.mxu0 0.0
  %1659 = vmatpush1.msra.mxu0 0.0
  %1660 = vmatprep.subr.mxu0 0.0
  %1661 = vmatpush1.msra.mxu0 0.0
  %1662 = vmatprep.subr.mxu0 0.0
  %1663 = vmatpush1.msra.mxu0 0.0
  %1664 = vmatprep.subr.mxu0 0.0
  %1665 = vmatpush1.msra.mxu0 0.0
  %1666 = vmatprep.subr.mxu0 0.0
  %1667 = vmatpush1.msra.mxu0 0.0
  %1668 = vmatprep.subr.mxu0 0.0
  %1669 = vmatpush1.msra.mxu0 0.0
  %1670 = vmatprep.subr.mxu0 0.0
  %1671 = vmatpush1.msra.mxu0 0.0
  %1672 = vmatprep.subr.mxu0 0.0
  %1673 = vmatpush1.msra.mxu0 0.0
  %1674 = vmatprep.subr.mxu0 0.0
  %1675 = vmatpush1.msra.mxu0 0.0
  %1676 = vmatprep.subr.mxu0 0.0
  %1677 = vmatpush1.msra.mxu0 0.0
  %1678 = vmatprep.subr.mxu0 0.0
  %1679 = vmatpush1.msra.mxu0 0.0
  %1680 = vmatprep.subr.mxu0 0.0
  %1681 = vmatpush1.msra.mxu0 0.0
  %1682 = vmatprep.subr.mxu0 0.0
  %1683 = vmatpush1.msra.mxu0 0.0
  %1684 = vmatprep.subr.mxu0 0.0
  %1685 = vmatpush1.msra.mxu0 0.0
  %1686 = vmatprep.subr.mxu0 0.0
  %1687 = vmatpush1.msra.mxu0 0.0
  %1688 = vmatprep.mubr.f32.mxu0 0.0
  %1689 = vmatmul.mubr.f32.gmra.mrb[0].mxu0 %v1622
  %v1690 = vpop.f32.mrb[0].mxu0
  %v1691 = vadd.f32 %v1620, %v1690
  %v1692 = vpop.f32.mrb[0].mxu0
  %1693 = vdwg.mxu0
  %v1694 = vxor.u32 %v1691, 2147483648
  %v1695 = vmul.f32 %v1694, 1.442695
  %v1696 = vpow.pop %v1695
  %v1697 = vadd.f32 %v1696, 1.0
  %v1698 = vrcp.pop %v1697
  %v1699 = vmul.f32 1.0, %v1698
  %v1700 = vtanh.pop %v1691
  %1702 = vrot.lane.b32.xlu0 %v1619, 32
  %v1703 = vpop.permute.xlu0 %1702
  %v1705 = vmul.f32 %v1699, %v1703
  %1707 = vrot.lane.b32.xlu0 %v1700, 32
  %v1708 = vpop.permute.xlu0 %1707
  %v1710 = vmul.f32 %v1699, %v1708
  %1712 = vrot.lane.b32.xlu0 %v1710, 32
  %v1713 = vpop.permute.xlu0 %1712
  %v1715 = vadd.f32 %v1705, %v1713
  %v1716 = vtanh.pop %v1715
  %1718 = vrot.lane.b32.xlu0 %v1716, 32
  %v1719 = vpop.permute.xlu0 %1718
  %v1721 = vmul.f32 %v1699, %v1719
  %1723 = vrot.lane.b32.xlu0 %v1715, 96
  %v1724 = vpop.permute.xlu0 %1723
  %1726 = vst.msk [vmem:[#allocation5] sm:$0xff] %vm187, %v1724
  %1728 = vrot.lane.b32.xlu0 %v1721, 64
  %v1729 = vpop.permute.xlu0 %1728
  %1731 = vst.msk [vmem:[#allocation4] sm:$0xff] %vm187, %v1729
  %v1732 = vld [vmem:[#allocation4] sm:$0xff]
  %v1733 = vld [vmem:[#allocation5] sm:$0xff]
  %v1734 = vld [vmem:[#allocation2 + $0x20] sm:$0xff]
  %v1736 = vsel %vm187, %v1732, 0
  %1738 = vmatprep.subr.mxu0 0.0
  %1739 = vmatpush1.msra.mxu0 %v1272
  %1740 = vmatprep.subr.mxu0 0.0
  %1741 = vmatpush1.msra.mxu0 %v1273
  %1742 = vmatprep.subr.mxu0 0.0
  %1743 = vmatpush1.msra.mxu0 %v1274
  %1744 = vmatprep.subr.mxu0 0.0
  %1745 = vmatpush1.msra.mxu0 %v1275
  %1746 = vmatprep.subr.mxu0 0.0
  %1747 = vmatpush1.msra.mxu0 0.0
  %1748 = vmatprep.subr.mxu0 0.0
  %1749 = vmatpush1.msra.mxu0 0.0
  %1750 = vmatprep.subr.mxu0 0.0
  %1751 = vmatpush1.msra.mxu0 0.0
  %1752 = vmatprep.subr.mxu0 0.0
  %1753 = vmatpush1.msra.mxu0 0.0
  %1754 = vmatprep.subr.mxu0 0.0
  %1755 = vmatpush1.msra.mxu0 0.0
  %1756 = vmatprep.subr.mxu0 0.0
  %1757 = vmatpush1.msra.mxu0 0.0
  %1758 = vmatprep.subr.mxu0 0.0
  %1759 = vmatpush1.msra.mxu0 0.0
  %1760 = vmatprep.subr.mxu0 0.0
  %1761 = vmatpush1.msra.mxu0 0.0
  %1762 = vmatprep.subr.mxu0 0.0
  %1763 = vmatpush1.msra.mxu0 0.0
  %1764 = vmatprep.subr.mxu0 0.0
  %1765 = vmatpush1.msra.mxu0 0.0
  %1766 = vmatprep.subr.mxu0 0.0
  %1767 = vmatpush1.msra.mxu0 0.0
  %1768 = vmatprep.subr.mxu0 0.0
  %1769 = vmatpush1.msra.mxu0 0.0
  %1770 = vmatprep.subr.mxu0 0.0
  %1771 = vmatpush1.msra.mxu0 0.0
  %1772 = vmatprep.subr.mxu0 0.0
  %1773 = vmatpush1.msra.mxu0 0.0
  %1774 = vmatprep.subr.mxu0 0.0
  %1775 = vmatpush1.msra.mxu0 0.0
  %1776 = vmatprep.subr.mxu0 0.0
  %1777 = vmatpush1.msra.mxu0 0.0
  %1778 = vmatprep.subr.mxu0 0.0
  %1779 = vmatpush1.msra.mxu0 0.0
  %1780 = vmatprep.subr.mxu0 0.0
  %1781 = vmatpush1.msra.mxu0 0.0
  %1782 = vmatprep.subr.mxu0 0.0
  %1783 = vmatpush1.msra.mxu0 0.0
  %1784 = vmatprep.subr.mxu0 0.0
  %1785 = vmatpush1.msra.mxu0 0.0
  %1786 = vmatprep.subr.mxu0 0.0
  %1787 = vmatpush1.msra.mxu0 0.0
  %1788 = vmatprep.subr.mxu0 0.0
  %1789 = vmatpush1.msra.mxu0 0.0
  %1790 = vmatprep.subr.mxu0 0.0
  %1791 = vmatpush1.msra.mxu0 0.0
  %1792 = vmatprep.subr.mxu0 0.0
  %1793 = vmatpush1.msra.mxu0 0.0
  %1794 = vmatprep.subr.mxu0 0.0
  %1795 = vmatpush1.msra.mxu0 0.0
  %1796 = vmatprep.subr.mxu0 0.0
  %1797 = vmatpush1.msra.mxu0 0.0
  %1798 = vmatprep.subr.mxu0 0.0
  %1799 = vmatpush1.msra.mxu0 0.0
  %1800 = vmatprep.subr.mxu0 0.0
  %1801 = vmatpush1.msra.mxu0 0.0
  %1802 = vmatprep.mubr.f32.mxu0 0.0
  %1803 = vmatmul.mubr.f32.gmra.mrb[0].mxu0 %v1736
  %v1804 = vpop.f32.mrb[0].mxu0
  %v1805 = vadd.f32 %v1734, %v1804
  %v1806 = vpop.f32.mrb[0].mxu0
  %1807 = vdwg.mxu0
  %v1808 = vxor.u32 %v1805, 2147483648
  %v1809 = vmul.f32 %v1808, 1.442695
  %v1810 = vpow.pop %v1809
  %v1811 = vadd.f32 %v1810, 1.0
  %v1812 = vrcp.pop %v1811
  %v1813 = vmul.f32 1.0, %v1812
  %v1814 = vtanh.pop %v1805
  %1816 = vrot.lane.b32.xlu0 %v1733, 32
  %v1817 = vpop.permute.xlu0 %1816
  %v1819 = vmul.f32 %v1813, %v1817
  %1821 = vrot.lane.b32.xlu0 %v1814, 32
  %v1822 = vpop.permute.xlu0 %1821
  %v1824 = vmul.f32 %v1813, %v1822
  %1826 = vrot.lane.b32.xlu0 %v1824, 32
  %v1827 = vpop.permute.xlu0 %1826
  %v1829 = vadd.f32 %v1819, %v1827
  %v1830 = vtanh.pop %v1829
  %1832 = vrot.lane.b32.xlu0 %v1830, 32
  %v1833 = vpop.permute.xlu0 %1832
  %v1835 = vmul.f32 %v1813, %v1833
  %1837 = vrot.lane.b32.xlu0 %v1829, 96
  %v1838 = vpop.permute.xlu0 %1837
  %1840 = vst.msk [vmem:[#allocation5] sm:$0xff] %vm187, %v1838
  %1842 = vrot.lane.b32.xlu0 %v1835, 64
  %v1843 = vpop.permute.xlu0 %1842
  %1845 = vst.msk [vmem:[#allocation4] sm:$0xff] %vm187, %v1843
  %v1846 = vld [vmem:[#allocation4] sm:$0xff]
  %v1847 = vld [vmem:[#allocation5] sm:$0xff]
  %v1848 = vld [vmem:[#allocation2 + $0x28] sm:$0xff]
  %v1850 = vsel %vm187, %v1846, 0
  %1852 = vmatprep.subr.mxu0 0.0
  %1853 = vmatpush1.msra.mxu0 %v1272
  %1854 = vmatprep.subr.mxu0 0.0
  %1855 = vmatpush1.msra.mxu0 %v1273
  %1856 = vmatprep.subr.mxu0 0.0
  %1857 = vmatpush1.msra.mxu0 %v1274
  %1858 = vmatprep.subr.mxu0 0.0
  %1859 = vmatpush1.msra.mxu0 %v1275
  %1860 = vmatprep.subr.mxu0 0.0
  %1861 = vmatpush1.msra.mxu0 0.0
  %1862 = vmatprep.subr.mxu0 0.0
  %1863 = vmatpush1.msra.mxu0 0.0
  %1864 = vmatprep.subr.mxu0 0.0
  %1865 = vmatpush1.msra.mxu0 0.0
  %1866 = vmatprep.subr.mxu0 0.0
  %1867 = vmatpush1.msra.mxu0 0.0
  %1868 = vmatprep.subr.mxu0 0.0
  %1869 = vmatpush1.msra.mxu0 0.0
  %1870 = vmatprep.subr.mxu0 0.0
  %1871 = vmatpush1.msra.mxu0 0.0
  %1872 = vmatprep.subr.mxu0 0.0
  %1873 = vmatpush1.msra.mxu0 0.0
  %1874 = vmatprep.subr.mxu0 0.0
  %1875 = vmatpush1.msra.mxu0 0.0
  %1876 = vmatprep.subr.mxu0 0.0
  %1877 = vmatpush1.msra.mxu0 0.0
  %1878 = vmatprep.subr.mxu0 0.0
  %1879 = vmatpush1.msra.mxu0 0.0
  %1880 = vmatprep.subr.mxu0 0.0
  %1881 = vmatpush1.msra.mxu0 0.0
  %1882 = vmatprep.subr.mxu0 0.0
  %1883 = vmatpush1.msra.mxu0 0.0
  %1884 = vmatprep.subr.mxu0 0.0
  %1885 = vmatpush1.msra.mxu0 0.0
  %1886 = vmatprep.subr.mxu0 0.0
  %1887 = vmatpush1.msra.mxu0 0.0
  %1888 = vmatprep.subr.mxu0 0.0
  %1889 = vmatpush1.msra.mxu0 0.0
  %1890 = vmatprep.subr.mxu0 0.0
  %1891 = vmatpush1.msra.mxu0 0.0
  %1892 = vmatprep.subr.mxu0 0.0
  %1893 = vmatpush1.msra.mxu0 0.0
  %1894 = vmatprep.subr.mxu0 0.0
  %1895 = vmatpush1.msra.mxu0 0.0
  %1896 = vmatprep.subr.mxu0 0.0
  %1897 = vmatpush1.msra.mxu0 0.0
  %1898 = vmatprep.subr.mxu0 0.0
  %1899 = vmatpush1.msra.mxu0 0.0
  %1900 = vmatprep.subr.mxu0 0.0
  %1901 = vmatpush1.msra.mxu0 0.0
  %1902 = vmatprep.subr.mxu0 0.0
  %1903 = vmatpush1.msra.mxu0 0.0
  %1904 = vmatprep.subr.mxu0 0.0
  %1905 = vmatpush1.msra.mxu0 0.0
  %1906 = vmatprep.subr.mxu0 0.0
  %1907 = vmatpush1.msra.mxu0 0.0
  %1908 = vmatprep.subr.mxu0 0.0
  %1909 = vmatpush1.msra.mxu0 0.0
  %1910 = vmatprep.subr.mxu0 0.0
  %1911 = vmatpush1.msra.mxu0 0.0
  %1912 = vmatprep.subr.mxu0 0.0
  %1913 = vmatpush1.msra.mxu0 0.0
  %1914 = vmatprep.subr.mxu0 0.0
  %1915 = vmatpush1.msra.mxu0 0.0
  %1916 = vmatprep.mubr.f32.mxu0 0.0
  %1917 = vmatmul.mubr.f32.gmra.mrb[0].mxu0 %v1850
  %v1918 = vpop.f32.mrb[0].mxu0
  %v1919 = vadd.f32 %v1848, %v1918
  %v1920 = vpop.f32.mrb[0].mxu0
  %1921 = vdwg.mxu0
  %v1922 = vxor.u32 %v1919, 2147483648
  %v1923 = vmul.f32 %v1922, 1.442695
  %v1924 = vpow.pop %v1923
  %v1925 = vadd.f32 %v1924, 1.0
  %v1926 = vrcp.pop %v1925
  %v1927 = vmul.f32 1.0, %v1926
  %v1928 = vtanh.pop %v1919
  %1930 = vrot.lane.b32.xlu0 %v1847, 32
  %v1931 = vpop.permute.xlu0 %1930
  %v1933 = vmul.f32 %v1927, %v1931
  %1935 = vrot.lane.b32.xlu0 %v1928, 32
  %v1936 = vpop.permute.xlu0 %1935
  %v1938 = vmul.f32 %v1927, %v1936
  %1940 = vrot.lane.b32.xlu0 %v1938, 32
  %v1941 = vpop.permute.xlu0 %1940
  %v1943 = vadd.f32 %v1933, %v1941
  %v1944 = vtanh.pop %v1943
  %1946 = vrot.lane.b32.xlu0 %v1944, 32
  %v1947 = vpop.permute.xlu0 %1946
  %v1949 = vmul.f32 %v1927, %v1947
  %1951 = vrot.lane.b32.xlu0 %v1943, 96
  %v1952 = vpop.permute.xlu0 %1951
  %1954 = vst.msk [vmem:[#allocation5] sm:$0xff] %vm187, %v1952
  %1956 = vrot.lane.b32.xlu0 %v1949, 64
  %v1957 = vpop.permute.xlu0 %1956
  %1959 = vst.msk [vmem:[#allocation4] sm:$0xff] %vm187, %v1957
  %v1960 = vld [vmem:[#allocation4] sm:$0xff]
  %v1961 = vld [vmem:[#allocation5] sm:$0xff]
  %v1962 = vld [vmem:[#allocation2 + $0x30] sm:$0xff]
  %v1964 = vsel %vm187, %v1960, 0
  %1966 = vmatprep.subr.mxu0 0.0
  %1967 = vmatpush1.msra.mxu0 %v1272
  %1968 = vmatprep.subr.mxu0 0.0
  %1969 = vmatpush1.msra.mxu0 %v1273
  %1970 = vmatprep.subr.mxu0 0.0
  %1971 = vmatpush1.msra.mxu0 %v1274
  %1972 = vmatprep.subr.mxu0 0.0
  %1973 = vmatpush1.msra.mxu0 %v1275
  %1974 = vmatprep.subr.mxu0 0.0
  %1975 = vmatpush1.msra.mxu0 0.0
  %1976 = vmatprep.subr.mxu0 0.0
  %1977 = vmatpush1.msra.mxu0 0.0
  %1978 = vmatprep.subr.mxu0 0.0
  %1979 = vmatpush1.msra.mxu0 0.0
  %1980 = vmatprep.subr.mxu0 0.0
  %1981 = vmatpush1.msra.mxu0 0.0
  %1982 = vmatprep.subr.mxu0 0.0
  %1983 = vmatpush1.msra.mxu0 0.0
  %1984 = vmatprep.subr.mxu0 0.0
  %1985 = vmatpush1.msra.mxu0 0.0
  %1986 = vmatprep.subr.mxu0 0.0
  %1987 = vmatpush1.msra.mxu0 0.0
  %1988 = vmatprep.subr.mxu0 0.0
  %1989 = vmatpush1.msra.mxu0 0.0
  %1990 = vmatprep.subr.mxu0 0.0
  %1991 = vmatpush1.msra.mxu0 0.0
  %1992 = vmatprep.subr.mxu0 0.0
  %1993 = vmatpush1.msra.mxu0 0.0
  %1994 = vmatprep.subr.mxu0 0.0
  %1995 = vmatpush1.msra.mxu0 0.0
  %1996 = vmatprep.subr.mxu0 0.0
  %1997 = vmatpush1.msra.mxu0 0.0
  %1998 = vmatprep.subr.mxu0 0.0
  %1999 = vmatpush1.msra.mxu0 0.0
  %2000 = vmatprep.subr.mxu0 0.0
  %2001 = vmatpush1.msra.mxu0 0.0
  %2002 = vmatprep.subr.mxu0 0.0
  %2003 = vmatpush1.msra.mxu0 0.0
  %2004 = vmatprep.subr.mxu0 0.0
  %2005 = vmatpush1.msra.mxu0 0.0
  %2006 = vmatprep.subr.mxu0 0.0
  %2007 = vmatpush1.msra.mxu0 0.0
  %2008 = vmatprep.subr.mxu0 0.0
  %2009 = vmatpush1.msra.mxu0 0.0
  %2010 = vmatprep.subr.mxu0 0.0
  %2011 = vmatpush1.msra.mxu0 0.0
  %2012 = vmatprep.subr.mxu0 0.0
  %2013 = vmatpush1.msra.mxu0 0.0
  %2014 = vmatprep.subr.mxu0 0.0
  %2015 = vmatpush1.msra.mxu0 0.0
  %2016 = vmatprep.subr.mxu0 0.0
  %2017 = vmatpush1.msra.mxu0 0.0
  %2018 = vmatprep.subr.mxu0 0.0
  %2019 = vmatpush1.msra.mxu0 0.0
  %2020 = vmatprep.subr.mxu0 0.0
  %2021 = vmatpush1.msra.mxu0 0.0
  %2022 = vmatprep.subr.mxu0 0.0
  %2023 = vmatpush1.msra.mxu0 0.0
  %2024 = vmatprep.subr.mxu0 0.0
  %2025 = vmatpush1.msra.mxu0 0.0
  %2026 = vmatprep.subr.mxu0 0.0
  %2027 = vmatpush1.msra.mxu0 0.0
  %2028 = vmatprep.subr.mxu0 0.0
  %2029 = vmatpush1.msra.mxu0 0.0
  %2030 = vmatprep.mubr.f32.mxu0 0.0
  %2031 = vmatmul.mubr.f32.gmra.mrb[0].mxu0 %v1964
  %v2032 = vpop.f32.mrb[0].mxu0
  %v2033 = vadd.f32 %v1962, %v2032
  %v2034 = vpop.f32.mrb[0].mxu0
  %2035 = vdwg.mxu0
  %v2036 = vxor.u32 %v2033, 2147483648
  %v2037 = vmul.f32 %v2036, 1.442695
  %v2038 = vpow.pop %v2037
  %v2039 = vadd.f32 %v2038, 1.0
  %v2040 = vrcp.pop %v2039
  %v2041 = vmul.f32 1.0, %v2040
  %v2042 = vtanh.pop %v2033
  %2044 = vrot.lane.b32.xlu0 %v1961, 32
  %v2045 = vpop.permute.xlu0 %2044
  %v2047 = vmul.f32 %v2041, %v2045
  %2049 = vrot.lane.b32.xlu0 %v2042, 32
  %v2050 = vpop.permute.xlu0 %2049
  %v2052 = vmul.f32 %v2041, %v2050
  %2054 = vrot.lane.b32.xlu0 %v2052, 32
  %v2055 = vpop.permute.xlu0 %2054
  %v2057 = vadd.f32 %v2047, %v2055
  %v2058 = vtanh.pop %v2057
  %2060 = vrot.lane.b32.xlu0 %v2058, 32
  %v2061 = vpop.permute.xlu0 %2060
  %v2063 = vmul.f32 %v2041, %v2061
  %2065 = vrot.lane.b32.xlu0 %v2057, 96
  %v2066 = vpop.permute.xlu0 %2065
  %2068 = vst.msk [vmem:[#allocation5] sm:$0xff] %vm187, %v2066
  %2070 = vrot.lane.b32.xlu0 %v2063, 64
  %v2071 = vpop.permute.xlu0 %2070
  %2073 = vst.msk [vmem:[#allocation4] sm:$0xff] %vm187, %v2071
  %v2074 = vld [vmem:[#allocation4] sm:$0xff]
  %v2075 = vld [vmem:[#allocation5] sm:$0xff]
  %v2076 = vld [vmem:[#allocation2 + $0x38] sm:$0xff]
  %v2078 = vsel %vm187, %v2074, 0
  %2080 = vmatprep.subr.mxu0 0.0
  %2081 = vmatpush1.msra.mxu0 %v1272
  %2082 = vmatprep.subr.mxu0 0.0
  %2083 = vmatpush1.msra.mxu0 %v1273
  %2084 = vmatprep.subr.mxu0 0.0
  %2085 = vmatpush1.msra.mxu0 %v1274
  %2086 = vmatprep.subr.mxu0 0.0
  %2087 = vmatpush1.msra.mxu0 %v1275
  %2088 = vmatprep.subr.mxu0 0.0
  %2089 = vmatpush1.msra.mxu0 0.0
  %2090 = vmatprep.subr.mxu0 0.0
  %2091 = vmatpush1.msra.mxu0 0.0
  %2092 = vmatprep.subr.mxu0 0.0
  %2093 = vmatpush1.msra.mxu0 0.0
  %2094 = vmatprep.subr.mxu0 0.0
  %2095 = vmatpush1.msra.mxu0 0.0
  %2096 = vmatprep.subr.mxu0 0.0
  %2097 = vmatpush1.msra.mxu0 0.0
  %2098 = vmatprep.subr.mxu0 0.0
  %2099 = vmatpush1.msra.mxu0 0.0
  %2100 = vmatprep.subr.mxu0 0.0
  %2101 = vmatpush1.msra.mxu0 0.0
  %2102 = vmatprep.subr.mxu0 0.0
  %2103 = vmatpush1.msra.mxu0 0.0
  %2104 = vmatprep.subr.mxu0 0.0
  %2105 = vmatpush1.msra.mxu0 0.0
  %2106 = vmatprep.subr.mxu0 0.0
  %2107 = vmatpush1.msra.mxu0 0.0
  %2108 = vmatprep.subr.mxu0 0.0
  %2109 = vmatpush1.msra.mxu0 0.0
  %2110 = vmatprep.subr.mxu0 0.0
  %2111 = vmatpush1.msra.mxu0 0.0
  %2112 = vmatprep.subr.mxu0 0.0
  %2113 = vmatpush1.msra.mxu0 0.0
  %2114 = vmatprep.subr.mxu0 0.0
  %2115 = vmatpush1.msra.mxu0 0.0
  %2116 = vmatprep.subr.mxu0 0.0
  %2117 = vmatpush1.msra.mxu0 0.0
  %2118 = vmatprep.subr.mxu0 0.0
  %2119 = vmatpush1.msra.mxu0 0.0
  %2120 = vmatprep.subr.mxu0 0.0
  %2121 = vmatpush1.msra.mxu0 0.0
  %2122 = vmatprep.subr.mxu0 0.0
  %2123 = vmatpush1.msra.mxu0 0.0
  %2124 = vmatprep.subr.mxu0 0.0
  %2125 = vmatpush1.msra.mxu0 0.0
  %2126 = vmatprep.subr.mxu0 0.0
  %2127 = vmatpush1.msra.mxu0 0.0
  %2128 = vmatprep.subr.mxu0 0.0
  %2129 = vmatpush1.msra.mxu0 0.0
  %2130 = vmatprep.subr.mxu0 0.0
  %2131 = vmatpush1.msra.mxu0 0.0
  %2132 = vmatprep.subr.mxu0 0.0
  %2133 = vmatpush1.msra.mxu0 0.0
  %2134 = vmatprep.subr.mxu0 0.0
  %2135 = vmatpush1.msra.mxu0 0.0
  %2136 = vmatprep.subr.mxu0 0.0
  %2137 = vmatpush1.msra.mxu0 0.0
  %2138 = vmatprep.subr.mxu0 0.0
  %2139 = vmatpush1.msra.mxu0 0.0
  %2140 = vmatprep.subr.mxu0 0.0
  %2141 = vmatpush1.msra.mxu0 0.0
  %2142 = vmatprep.subr.mxu0 0.0
  %2143 = vmatpush1.msra.mxu0 0.0
  %2144 = vmatprep.mubr.f32.mxu0 0.0
  %2145 = vmatmul.mubr.f32.gmra.mrb[0].mxu0 %v2078
  %v2146 = vpop.f32.mrb[0].mxu0
  %v2147 = vadd.f32 %v2076, %v2146
  %v2148 = vpop.f32.mrb[0].mxu0
  %2149 = vdwg.mxu0
  %v2150 = vxor.u32 %v2147, 2147483648
  %v2151 = vmul.f32 %v2150, 1.442695
  %v2152 = vpow.pop %v2151
  %v2153 = vadd.f32 %v2152, 1.0
  %v2154 = vrcp.pop %v2153
  %v2155 = vmul.f32 1.0, %v2154
  %v2156 = vtanh.pop %v2147
  %2158 = vrot.lane.b32.xlu0 %v2075, 32
  %v2159 = vpop.permute.xlu0 %2158
  %v2161 = vmul.f32 %v2155, %v2159
  %2163 = vrot.lane.b32.xlu0 %v2156, 32
  %v2164 = vpop.permute.xlu0 %2163
  %v2166 = vmul.f32 %v2155, %v2164
  %2168 = vrot.lane.b32.xlu0 %v2166, 32
  %v2169 = vpop.permute.xlu0 %2168
  %v2171 = vadd.f32 %v2161, %v2169
  %v2172 = vtanh.pop %v2171
  %2174 = vrot.lane.b32.xlu0 %v2172, 32
  %v2175 = vpop.permute.xlu0 %2174
  %v2177 = vmul.f32 %v2155, %v2175
  %2179 = vrot.lane.b32.xlu0 %v2171, 96
  %v2180 = vpop.permute.xlu0 %2179
  %2182 = vst.msk [vmem:[#allocation5] sm:$0xff] %vm187, %v2180
  %2184 = vrot.lane.b32.xlu0 %v2177, 64
  %v2185 = vpop.permute.xlu0 %2184
  %2187 = vst.msk [vmem:[#allocation4] sm:$0xff] %vm187, %v2185
  %v2188 = vld [vmem:[#allocation4] sm:$0xff]
  %v2189 = vld [vmem:[%s7] sm:$0xff]
  %v2190 = vld [vmem:[%s7 + $0x8] sm:$0xff]
  %v2191 = vld [vmem:[%s7 + $0x10] sm:$0xff]
  %v2192 = vld [vmem:[%s7 + $0x18] sm:$0xff]
  %v2193 = vld [vmem:[%s8] sm:$0x1]
  %v2195 = vlaneseq
  %v2196 = vshrl.u32 %v2195, 7
  %v2197 = vsub.s32 0, %v2196
  %v2198 = vrot.slane %v2193, %v2197
  %v2201 = vsel %vm187, %v2188, 0
  %2203 = vmatprep.subr.mxu0 0.0
  %2204 = vmatpush1.msra.mxu0 %v2189
  %2205 = vmatprep.subr.mxu0 0.0
  %2206 = vmatpush1.msra.mxu0 %v2190
  %2207 = vmatprep.subr.mxu0 0.0
  %2208 = vmatpush1.msra.mxu0 %v2191
  %2209 = vmatprep.subr.mxu0 0.0
  %2210 = vmatpush1.msra.mxu0 %v2192
  %2211 = vmatprep.subr.mxu0 0.0
  %2212 = vmatpush1.msra.mxu0 0.0
  %2213 = vmatprep.subr.mxu0 0.0
  %2214 = vmatpush1.msra.mxu0 0.0
  %2215 = vmatprep.subr.mxu0 0.0
  %2216 = vmatpush1.msra.mxu0 0.0
  %2217 = vmatprep.subr.mxu0 0.0
  %2218 = vmatpush1.msra.mxu0 0.0
  %2219 = vmatprep.subr.mxu0 0.0
  %2220 = vmatpush1.msra.mxu0 0.0
  %2221 = vmatprep.subr.mxu0 0.0
  %2222 = vmatpush1.msra.mxu0 0.0
  %2223 = vmatprep.subr.mxu0 0.0
  %2224 = vmatpush1.msra.mxu0 0.0
  %2225 = vmatprep.subr.mxu0 0.0
  %2226 = vmatpush1.msra.mxu0 0.0
  %2227 = vmatprep.subr.mxu0 0.0
  %2228 = vmatpush1.msra.mxu0 0.0
  %2229 = vmatprep.subr.mxu0 0.0
  %2230 = vmatpush1.msra.mxu0 0.0
  %2231 = vmatprep.subr.mxu0 0.0
  %2232 = vmatpush1.msra.mxu0 0.0
  %2233 = vmatprep.subr.mxu0 0.0
  %2234 = vmatpush1.msra.mxu0 0.0
  %2235 = vmatprep.subr.mxu0 0.0
  %2236 = vmatpush1.msra.mxu0 0.0
  %2237 = vmatprep.subr.mxu0 0.0
  %2238 = vmatpush1.msra.mxu0 0.0
  %2239 = vmatprep.subr.mxu0 0.0
  %2240 = vmatpush1.msra.mxu0 0.0
  %2241 = vmatprep.subr.mxu0 0.0
  %2242 = vmatpush1.msra.mxu0 0.0
  %2243 = vmatprep.subr.mxu0 0.0
  %2244 = vmatpush1.msra.mxu0 0.0
  %2245 = vmatprep.subr.mxu0 0.0
  %2246 = vmatpush1.msra.mxu0 0.0
  %2247 = vmatprep.subr.mxu0 0.0
  %2248 = vmatpush1.msra.mxu0 0.0
  %2249 = vmatprep.subr.mxu0 0.0
  %2250 = vmatpush1.msra.mxu0 0.0
  %2251 = vmatprep.subr.mxu0 0.0
  %2252 = vmatpush1.msra.mxu0 0.0
  %2253 = vmatprep.subr.mxu0 0.0
  %2254 = vmatpush1.msra.mxu0 0.0
  %2255 = vmatprep.subr.mxu0 0.0
  %2256 = vmatpush1.msra.mxu0 0.0
  %2257 = vmatprep.subr.mxu0 0.0
  %2258 = vmatpush1.msra.mxu0 0.0
  %2259 = vmatprep.subr.mxu0 0.0
  %2260 = vmatpush1.msra.mxu0 0.0
  %2261 = vmatprep.subr.mxu0 0.0
  %2262 = vmatpush1.msra.mxu0 0.0
  %2263 = vmatprep.subr.mxu0 0.0
  %2264 = vmatpush1.msra.mxu0 0.0
  %2265 = vmatprep.subr.mxu0 0.0
  %2266 = vmatpush1.msra.mxu0 0.0
  %2267 = vmatprep.mubr.f32.mxu0 0.0
  %2268 = vmatmul.mubr.f32.gmra.mrb[0].mxu0 %v2201
  %v2269 = vpop.f32.mrb[0].mxu0
  %v2270 = vadd.f32 %v2198, %v2269
  %v2271 = vpop.f32.mrb[0].mxu0
  %2272 = vdwg.mxu0
  %2273 = vst [vmem:[%s9] sm:$0xff] %v2270
  // Predicated region
  $region38: #{lstm0_forward.1} parent=0 // pred_check
    _
  $region39: #{lstm0_forward.1} parent=0 // pred_check_branch
    %2275 = sbr.rel (0) target = $region41
  $region40: #{lstm0_forward.1} parent=0 // pred_region
    _
  $region41: #{lstm0_forward.1} parent=0 // pred_fallthru
    _
  // Predicated region
  $region42: #{lstm0_forward.1} parent=0 // pred_check
    _
  $region43: #{lstm0_forward.1} parent=0 // pred_check_branch
    %2277 = sbr.rel (0) target = $region45
  $region44: #{lstm0_forward.1} parent=0 // pred_region
    _
  $region45: #{lstm0_forward.1} parent=0 // pred_fallthru
    _

</llo_original>
